<compile_context>
chip_gen: v7x
topology: tpu7x:2x2x1
jax: 0.10.0
libtpu: 0.0.40
codegen_flags: <defaults>
</compile_context>

<pallas_src>
import functools
import math

import jax
import jax.numpy as jnp
import numpy as np
from jax.experimental import pallas as pl
from jax.experimental.pallas import tpu as pltpu


def _layernorm(x, gamma, beta, eps=1e-5):
    mu = jnp.mean(x, axis=-1, keepdims=True)
    var = jnp.mean((x - mu) ** 2, axis=-1, keepdims=True)
    return (x - mu) * jax.lax.rsqrt(var + eps) * gamma + beta


def transformer_block_kernel(
    v_ref, k_ref, q_ref,
    wqkv_ref, wo_ref, bo_ref,
    g1_ref, b1_ref,
    w1_ref, bb1_ref, w2_ref, bb2_ref,
    g2_ref, b2_ref,
    o_ref,
    *, mxu_out_dtype,
):
    f32 = jnp.float32
    cdt = wqkv_ref.dtype                     # matmul-operand dtype (bf16)

    B, Lq, E = q_ref.shape
    Lk = k_ref.shape[1]
    Lv = v_ref.shape[1]

    # Flatten (B, L, E) -> (B*L, E): tall, sublane-dense MXU operands.
    # Inputs arrive f32 (no host-side cast); residual path keeps full f32 q.
    q2_f32 = q_ref[...].reshape(B * Lq, E)
    q_op = q2_f32.astype(cdt)
    k_op = k_ref[...].reshape(B * Lk, E).astype(cdt)
    v_op = v_ref[...].reshape(B * Lv, E).astype(cdt)

    # Static, lane-aligned slices of the fused weight slab [wq*scale | wk | wv].
    wq = wqkv_ref[:, 0:E]
    wk = wqkv_ref[:, E:2 * E]
    wv = wqkv_ref[:, 2 * E:3 * E]

    # Projections (bias=False); 1/sqrt(E) already folded into wq on the host.
    # MXU accumulates in f32 internally; emitting bf16 avoids f32 slabs + casts.
    Q3 = jnp.dot(q_op, wq, preferred_element_type=mxu_out_dtype) \
        .astype(cdt).reshape(B, Lq, E)
    K3 = jnp.dot(k_op, wk, preferred_element_type=mxu_out_dtype) \
        .astype(cdt).reshape(B, Lk, E)
    V3 = jnp.dot(v_op, wv, preferred_element_type=mxu_out_dtype) \
        .astype(cdt).reshape(B, Lv, E)

    # energy = einsum('nqhd,nkhd->nhqk') with h == 1  ->  Q @ K^T per batch.
    energy = jnp.einsum("bqe,bke->bqk", Q3, K3, preferred_element_type=f32)

    # softmax over the key axis (f32)
    energy = energy - jnp.max(energy, axis=-1, keepdims=True)
    p = jnp.exp(energy)
    attn = p * pl.reciprocal(jnp.sum(p, axis=-1, keepdims=True), approx=True)

    # out = einsum('nhql,nlhd->nqhd') with h == 1  ->  attn @ V, then fc_out.
    ctx = jnp.einsum("bqk,bke->bqe", attn.astype(cdt), V3,
                     preferred_element_type=mxu_out_dtype).astype(cdt)
    ctx2 = ctx.reshape(B * Lq, E)
    attn_out = jnp.dot(ctx2, wo_ref[...],
                       preferred_element_type=f32) + bo_ref[...]

    # residual + LayerNorm 1 (f32)
    x = _layernorm(attn_out + q2_f32, g1_ref[...], b1_ref[...])

    # feed-forward: Linear -> ReLU -> Linear (elementwise math in f32)
    h = jnp.dot(x.astype(cdt), w1_ref[...],
                preferred_element_type=f32) + bb1_ref[...]
    h = jnp.maximum(h, 0.0)
    ff = jnp.dot(h.astype(cdt), w2_ref[...],
                 preferred_element_type=f32) + bb2_ref[...]

    # residual + LayerNorm 2 (f32), cast only on the lane-dense store.
    out = _layernorm(ff + x, g2_ref[...], b2_ref[...])
    o_ref[...] = out.reshape(B, Lq, E).astype(o_ref.dtype)


def _default_batch_block(N, Lq, Lk, Lv, E, hidden, act_budget_bytes=8 << 20):
    """Batch elements per grid step, from a per-step activation-VMEM budget."""
    # Rough per-batch-element footprint of the live tensors in one step:
    # f32 inputs (double-buffered) + bf16 operands/projections + f32 scores/probs
    # + f32 post-attention activations + bf16 ctx/output + f32 FFN intermediate.
    per_b = (
        (Lv + Lk + Lq) * E * (2 * 4 + 2 * 2)
        + 2 * Lq * Lk * 4
        + Lq * E * (4 * 4 + 3 * 2)
        + Lq * hidden * 4
    )
    bb = max(1, min(N, act_budget_bytes // max(per_b, 1)))
    # Keep >= ~4 grid steps when N allows (>= 2 per TensorCore on v7x) so the
    # software pipeline has DMA/compute overlap to exploit.
    target_steps = min(N, 4)
    bb = min(bb, max(1, N // target_steps))
    # Use whole blocks (batch elements are independent; avoids padded rows).
    while N % bb:
        bb -= 1
    return bb


def _vmem_limit_bytes(batch_block, Lq, Lk, Lv, E, hidden, weight_bytes):
    act = batch_block * (
        (Lv + Lk + Lq) * E * (2 * 4 + 2 * 2)
        + 2 * Lq * Lk * 4
        + Lq * E * (4 * 4 + 3 * 2)
        + Lq * hidden * 4
    )
    est = int((act + 2 * weight_bytes) * 1.5)      # headroom + worst-case 2x weights
    # Floor at the 32 MiB scoped default (safe everywhere), cap below v7x's
    # 64 MiB physical VMEM.
    return min(max(est, 32 << 20), 48 << 20)


def transformer_block(value, key, query, prep, *, batch_block=None,
                      out_dtype=jnp.bfloat16):
    """prep: params from prepare_params() (scale folded, fused/cast weights)."""
    N, Lq, E = query.shape
    Lk = key.shape[1]
    Lv = value.shape[1]
    hidden = prep["w1"].shape[1]
    cdt = prep["w_qkv"].dtype                 # matmul-operand dtype (bf16)

    if batch_block is None:
        batch_block = _default_batch_block(N, Lq, Lk, Lv, E, hidden)
    while N % batch_block:
        batch_block -= 1
    grid = (N // batch_block,)

    weight_args = (
        prep["w_qkv"], prep["wo"], prep["bo"],
        prep["g1"], prep["b1"],
        prep["w1"], prep["bb1"], prep["w2"], prep["bb2"],
        prep["g2"], prep["b2"],
    )
    weight_bytes = sum(int(w.size) * w.dtype.itemsize for w in weight_args)
    vmem_limit = _vmem_limit_bytes(batch_block, Lq, Lk, Lv, E, hidden, weight_bytes)

    def seq_spec(L):
        return pl.BlockSpec((batch_block, L, E), lambda n: (n, 0, 0))

    def build(single_buffer_weights, mxu_out_dtype):
        def full_spec(w):
            nd = w.ndim
            idx = lambda n, _nd=nd: (0,) * _nd   # grid-invariant: DMA'd once
            if single_buffer_weights:
                return pl.BlockSpec(w.shape, idx, pipeline_mode=pl.Buffered(1))
            return pl.BlockSpec(w.shape, idx)

        in_specs = [seq_spec(Lv), seq_spec(Lk), seq_spec(Lq)] + [
            full_spec(w) for w in weight_args
        ]
        kernel = functools.partial(transformer_block_kernel,
                                   mxu_out_dtype=mxu_out_dtype)
        return pl.pallas_call(
            kernel,
            out_shape=jax.ShapeDtypeStruct((N, Lq, E), out_dtype),
            grid_spec=pltpu.PrefetchScalarGridSpec(
                num_scalar_prefetch=0,
                grid=grid,
                in_specs=in_specs,
                out_specs=seq_spec(Lq),
            ),
            compiler_params=pltpu.CompilerParams(
                dimension_semantics=("parallel",),
                vmem_limit_bytes=vmem_limit,
            ),
        )

    # Preferred config: single-buffered weights + bf16 matmul outputs.  If this
    # jax/libtpu combination rejects either feature during lowering, fall back
    # to the conservative, previously-validated configuration.
    try:
        return build(True, cdt)(value, key, query, *weight_args)
    except Exception:  # pragma: no cover - lowering-capability fallback
        return build(False, jnp.float32)(value, key, query, *weight_args)


def init_params(rng, embed_size, heads, forward_expansion):
    assert heads == 1, "reference forward's reshape requires heads == 1"
    head_dim = embed_size // heads
    hidden = forward_expansion * embed_size
    ks = jax.random.split(rng, 9)

    def lin_w(k, fan_in, fan_out):
        # torch.nn.Linear default init: U(-1/sqrt(fan_in), 1/sqrt(fan_in));
        # stored pre-transposed as (in, out) so the kernel does x @ W.
        bound = 1.0 / math.sqrt(fan_in)
        return jax.random.uniform(k, (fan_in, fan_out), jnp.float32, -bound, bound)

    def lin_b(k, fan_in, fan_out):
        bound = 1.0 / math.sqrt(fan_in)
        return jax.random.uniform(k, (1, fan_out), jnp.float32, -bound, bound)

    return {
        "wv": lin_w(ks[0], head_dim, embed_size),
        "wk": lin_w(ks[1], head_dim, embed_size),
        "wq": lin_w(ks[2], head_dim, embed_size),
        "wo": lin_w(ks[3], embed_size, embed_size),
        "bo": lin_b(ks[4], embed_size, embed_size),
        "g1": jnp.ones((1, embed_size), jnp.float32),
        "b1": jnp.zeros((1, embed_size), jnp.float32),
        "w1": lin_w(ks[5], embed_size, hidden),
        "bb1": lin_b(ks[6], embed_size, hidden),
        "w2": lin_w(ks[7], hidden, embed_size),
        "bb2": lin_b(ks[8], hidden, embed_size),
        "g2": jnp.ones((1, embed_size), jnp.float32),
        "b2": jnp.zeros((1, embed_size), jnp.float32),
    }


def prepare_params(params, embed_size, matmul_dtype=jnp.bfloat16):
    """Host-side prep: fold the 1/sqrt(E) softmax scale into wq, fuse the three
    projection weights into one (E, 3E) slab [wq*scale | wk | wv] (one weight
    DMA instead of three), and cast all matmul weights to the MXU dtype.
    Biases / LayerNorm params stay f32."""
    scale = 1.0 / math.sqrt(embed_size)
    w_qkv = jnp.concatenate(
        [params["wq"] * scale, params["wk"], params["wv"]], axis=1
    ).astype(matmul_dtype)
    return {
        "w_qkv": w_qkv,
        "wo": params["wo"].astype(matmul_dtype),
        "bo": params["bo"],
        "g1": params["g1"], "b1": params["b1"],
        "w1": params["w1"].astype(matmul_dtype),
        "bb1": params["bb1"],
        "w2": params["w2"].astype(matmul_dtype),
        "bb2": params["bb2"],
        "g2": params["g2"], "b2": params["b2"],
    }


def reference(value, key, query, prep):
    """Pure-JAX replica of the PyTorch forward (heads == 1, eval mode) with the
    same bf16-matmul-operand contract as the kernel (f32 elementwise math,
    f32 residual on query)."""
    f32 = jnp.float32
    cdt = prep["w_qkv"].dtype
    E = query.shape[-1]
    as_op = lambda a: a.astype(cdt).astype(f32)   # round to matmul-operand dtype

    wq = prep["w_qkv"][:, 0:E].astype(f32)        # 1/sqrt(E) already folded in
    wk = prep["w_qkv"][:, E:2 * E].astype(f32)
    wv = prep["w_qkv"][:, 2 * E:3 * E].astype(f32)

    Q = as_op(query) @ wq
    K = as_op(key) @ wk
    V = as_op(value) @ wv
    energy = jnp.einsum("nqd,nkd->nqk", as_op(Q), as_op(K))
    attn = jax.nn.softmax(energy, axis=-1)
    ctx = jnp.einsum("nqk,nkd->nqd", as_op(attn), as_op(V))
    attn_out = as_op(ctx) @ prep["wo"].astype(f32) + prep["bo"]
    x = _layernorm(attn_out + query, prep["g1"], prep["b1"])
    h = jax.nn.relu(as_op(x) @ prep["w1"].astype(f32) + prep["bb1"])
    ff = as_op(h) @ prep["w2"].astype(f32) + prep["bb2"]
    return _layernorm(ff + x, prep["g2"], prep["b2"])


if __name__ == "__main__":
    # Lane/sublane-friendly toy sizes: E multiple of 128, seq multiple of 8.
    embed_size, heads, forward_expansion = 128, 1, 4
    N, L = 8, 128

    rng = jax.random.PRNGKey(0)
    k1, k2, k3, kp = jax.random.split(rng, 4)
    value = jax.random.normal(k1, (N, L, embed_size), jnp.float32)
    key = jax.random.normal(k2, (N, L, embed_size), jnp.float32)
    query = jax.random.normal(k3, (N, L, embed_size), jnp.float32)

    params = init_params(kp, embed_size, heads, forward_expansion)
    prep = prepare_params(params, embed_size, jnp.bfloat16)

    out = transformer_block(value, key, query, prep)
    out = jax.block_until_ready(out)

    ref = reference(value, key, query, prep)
    ref = ref.astype(out.dtype).astype(jnp.float32)   # mirror the bf16 store
    np.testing.assert_allclose(np.asarray(out, dtype=np.float32), np.asarray(ref),
                               atol=2e-2, rtol=2e-2)
    print("KERNEL_OK")
</pallas_src>

<mosaic_0001>
module attributes {stable_mosaic.version = 11 : i64} {
  func.func @transformer_block_kernel(%arg0: i32, %arg1: memref<2x128x128xf32, #tpu.memory_space<vmem>>, %arg2: memref<2x128x128xf32, #tpu.memory_space<vmem>>, %arg3: memref<2x128x128xf32, #tpu.memory_space<vmem>>, %arg4: memref<128x384xbf16, #tpu.memory_space<vmem>>, %arg5: memref<128x128xbf16, #tpu.memory_space<vmem>>, %arg6: memref<1x128xf32, #tpu.memory_space<vmem>>, %arg7: memref<1x128xf32, #tpu.memory_space<vmem>>, %arg8: memref<1x128xf32, #tpu.memory_space<vmem>>, %arg9: memref<128x512xbf16, #tpu.memory_space<vmem>>, %arg10: memref<1x512xf32, #tpu.memory_space<vmem>>, %arg11: memref<512x128xbf16, #tpu.memory_space<vmem>>, %arg12: memref<1x128xf32, #tpu.memory_space<vmem>>, %arg13: memref<1x128xf32, #tpu.memory_space<vmem>>, %arg14: memref<1x128xf32, #tpu.memory_space<vmem>>, %arg15: memref<2x128x128xbf16, #tpu.memory_space<vmem>>) attributes {dimension_semantics = [#tpu.dimension_semantics<parallel>], iteration_bounds = array<i64: 4>, scalar_prefetch = 0 : i64, scratch_operands = 0 : i64, tpu.core_type = #tpu.core_type<tc>, window_params = [{transform_indices = @transform_0, window_bounds = array<i64: 2, 128, 128>}, {transform_indices = @transform_1, window_bounds = array<i64: 2, 128, 128>}, {transform_indices = @transform_2, window_bounds = array<i64: 2, 128, 128>}, {pipeline_mode = #tpu.pipeline_mode<synchronous>, transform_indices = @transform_3, window_bounds = array<i64: 128, 384>}, {pipeline_mode = #tpu.pipeline_mode<synchronous>, transform_indices = @transform_4, window_bounds = array<i64: 128, 128>}, {pipeline_mode = #tpu.pipeline_mode<synchronous>, transform_indices = @transform_5, window_bounds = array<i64: 1, 128>}, {pipeline_mode = #tpu.pipeline_mode<synchronous>, transform_indices = @transform_6, window_bounds = array<i64: 1, 128>}, {pipeline_mode = #tpu.pipeline_mode<synchronous>, transform_indices = @transform_7, window_bounds = array<i64: 1, 128>}, {pipeline_mode = #tpu.pipeline_mode<synchronous>, transform_indices = @transform_8, window_bounds = array<i64: 128, 512>}, {pipeline_mode = #tpu.pipeline_mode<synchronous>, transform_indices = @transform_9, window_bounds = array<i64: 1, 512>}, {pipeline_mode = #tpu.pipeline_mode<synchronous>, transform_indices = @transform_10, window_bounds = array<i64: 512, 128>}, {pipeline_mode = #tpu.pipeline_mode<synchronous>, transform_indices = @transform_11, window_bounds = array<i64: 1, 128>}, {pipeline_mode = #tpu.pipeline_mode<synchronous>, transform_indices = @transform_12, window_bounds = array<i64: 1, 128>}, {pipeline_mode = #tpu.pipeline_mode<synchronous>, transform_indices = @transform_13, window_bounds = array<i64: 1, 128>}, {transform_indices = @transform_14, window_bounds = array<i64: 2, 128, 128>}]} {
    %c0 = arith.constant 0 : index
    %c0_0 = arith.constant 0 : index
    %c0_1 = arith.constant 0 : index
    %0 = vector.load %arg3[%c0, %c0_0, %c0_1] : memref<2x128x128xf32, #tpu.memory_space<vmem>>, vector<2x128x128xf32>
    %1 = vector.shape_cast %0 : vector<2x128x128xf32> to vector<256x128xf32>
    %2 = arith.truncf %1 : vector<256x128xf32> to vector<256x128xbf16>
    %c0_2 = arith.constant 0 : index
    %c0_3 = arith.constant 0 : index
    %c0_4 = arith.constant 0 : index
    %3 = vector.load %arg2[%c0_2, %c0_3, %c0_4] : memref<2x128x128xf32, #tpu.memory_space<vmem>>, vector<2x128x128xf32>
    %4 = vector.shape_cast %3 : vector<2x128x128xf32> to vector<256x128xf32>
    %5 = arith.truncf %4 : vector<256x128xf32> to vector<256x128xbf16>
    %c0_5 = arith.constant 0 : index
    %c0_6 = arith.constant 0 : index
    %c0_7 = arith.constant 0 : index
    %6 = vector.load %arg1[%c0_5, %c0_6, %c0_7] : memref<2x128x128xf32, #tpu.memory_space<vmem>>, vector<2x128x128xf32>
    %7 = vector.shape_cast %6 : vector<2x128x128xf32> to vector<256x128xf32>
    %8 = arith.truncf %7 : vector<256x128xf32> to vector<256x128xbf16>
    %c0_8 = arith.constant 0 : index
    %c0_9 = arith.constant 0 : index
    %9 = vector.load %arg4[%c0_8, %c0_9] : memref<128x384xbf16, #tpu.memory_space<vmem>>, vector<128x128xbf16>
    %c0_10 = arith.constant 0 : index
    %c128 = arith.constant 128 : index
    %10 = vector.load %arg4[%c0_10, %c128] : memref<128x384xbf16, #tpu.memory_space<vmem>>, vector<128x128xbf16>
    %c0_11 = arith.constant 0 : index
    %c256 = arith.constant 256 : index
    %11 = vector.load %arg4[%c0_11, %c256] : memref<128x384xbf16, #tpu.memory_space<vmem>>, vector<128x128xbf16>
    %cst = arith.constant dense<0.000000e+00> : vector<256x128xf32>
    %12 = tpu.matmul %2, %9, %cst {dimension_numbers = #tpu.dot_dimension_numbers<[1], [0], [0], [1], [0, 0, 1, 1], [], []>} : vector<256x128xbf16>, vector<128x128xbf16>, vector<256x128xf32> -> vector<256x128xf32>
    %13 = arith.truncf %12 : vector<256x128xf32> to vector<256x128xbf16>
    %14 = vector.shape_cast %13 : vector<256x128xbf16> to vector<2x128x128xbf16>
    %cst_12 = arith.constant dense<0.000000e+00> : vector<256x128xf32>
    %15 = tpu.matmul %5, %10, %cst_12 {dimension_numbers = #tpu.dot_dimension_numbers<[1], [0], [0], [1], [0, 0, 1, 1], [], []>} : vector<256x128xbf16>, vector<128x128xbf16>, vector<256x128xf32> -> vector<256x128xf32>
    %16 = arith.truncf %15 : vector<256x128xf32> to vector<256x128xbf16>
    %17 = vector.shape_cast %16 : vector<256x128xbf16> to vector<2x128x128xbf16>
    %cst_13 = arith.constant dense<0.000000e+00> : vector<256x128xf32>
    %18 = tpu.matmul %8, %11, %cst_13 {dimension_numbers = #tpu.dot_dimension_numbers<[1], [0], [0], [1], [0, 0, 1, 1], [], []>} : vector<256x128xbf16>, vector<128x128xbf16>, vector<256x128xf32> -> vector<256x128xf32>
    %19 = arith.truncf %18 : vector<256x128xf32> to vector<256x128xbf16>
    %20 = vector.shape_cast %19 : vector<256x128xbf16> to vector<2x128x128xbf16>
    "tpu.trace_start"() <{level = 10 : i32, message = "bqe,bke->bqk"}> : () -> ()
    %cst_14 = arith.constant dense<0.000000e+00> : vector<2x128x128xf32>
    %21 = tpu.matmul %14, %17, %cst_14 {dimension_numbers = #tpu.dot_dimension_numbers<[2], [2], [1], [1], [0, 0, 0, 1, 1, 1], [0], [0]>} : vector<2x128x128xbf16>, vector<2x128x128xbf16>, vector<2x128x128xf32> -> vector<2x128x128xf32>
    "tpu.trace_stop"() : () -> ()
    %cst_15 = arith.constant dense<0xFF800000> : vector<2x128xf32>
    %22 = vector.multi_reduction <maximumf>, %21, %cst_15 [2] : vector<2x128x128xf32> to vector<2x128xf32>
    %23 = vector.shape_cast %22 : vector<2x128xf32> to vector<2x128x1xf32>
    %24 = vector.broadcast %23 : vector<2x128x1xf32> to vector<2x128x128xf32>
    %25 = arith.subf %21, %24 : vector<2x128x128xf32>
    %26 = math.exp %25 : vector<2x128x128xf32>
    %cst_16 = arith.constant dense<0.000000e+00> : vector<2x128xf32>
    %27 = vector.multi_reduction <add>, %26, %cst_16 [2] : vector<2x128x128xf32> to vector<2x128xf32>
    %28 = vector.shape_cast %27 : vector<2x128xf32> to vector<2x128x1xf32>
    %29 = tpu.reciprocal %28 {approx = true} : vector<2x128x1xf32> -> vector<2x128x1xf32>
    %30 = vector.broadcast %29 : vector<2x128x1xf32> to vector<2x128x128xf32>
    %31 = arith.mulf %26, %30 : vector<2x128x128xf32>
    %32 = arith.truncf %31 : vector<2x128x128xf32> to vector<2x128x128xbf16>
    "tpu.trace_start"() <{level = 10 : i32, message = "bqk,bke->bqe"}> : () -> ()
    %cst_17 = arith.constant dense<0.000000e+00> : vector<2x128x128xf32>
    %33 = tpu.matmul %32, %20, %cst_17 {dimension_numbers = #tpu.dot_dimension_numbers<[2], [1], [1], [2], [0, 0, 0, 1, 1, 2], [0], [0]>} : vector<2x128x128xbf16>, vector<2x128x128xbf16>, vector<2x128x128xf32> -> vector<2x128x128xf32>
    "tpu.trace_stop"() : () -> ()
    %34 = arith.truncf %33 : vector<2x128x128xf32> to vector<2x128x128xbf16>
    %35 = vector.shape_cast %34 : vector<2x128x128xbf16> to vector<256x128xbf16>
    %c0_18 = arith.constant 0 : index
    %c0_19 = arith.constant 0 : index
    %36 = vector.load %arg5[%c0_18, %c0_19] : memref<128x128xbf16, #tpu.memory_space<vmem>>, vector<128x128xbf16>
    %cst_20 = arith.constant dense<0.000000e+00> : vector<256x128xf32>
    %37 = tpu.matmul %35, %36, %cst_20 {dimension_numbers = #tpu.dot_dimension_numbers<[1], [0], [0], [1], [0, 0, 1, 1], [], []>} : vector<256x128xbf16>, vector<128x128xbf16>, vector<256x128xf32> -> vector<256x128xf32>
    %c0_21 = arith.constant 0 : index
    %c0_22 = arith.constant 0 : index
    %38 = vector.load %arg6[%c0_21, %c0_22] : memref<1x128xf32, #tpu.memory_space<vmem>>, vector<1x128xf32>
    %39 = vector.broadcast %38 : vector<1x128xf32> to vector<256x128xf32>
    %40 = arith.addf %37, %39 : vector<256x128xf32>
    %41 = arith.addf %40, %1 : vector<256x128xf32>
    %c0_23 = arith.constant 0 : index
    %c0_24 = arith.constant 0 : index
    %42 = vector.load %arg7[%c0_23, %c0_24] : memref<1x128xf32, #tpu.memory_space<vmem>>, vector<1x128xf32>
    %c0_25 = arith.constant 0 : index
    %c0_26 = arith.constant 0 : index
    %43 = vector.load %arg8[%c0_25, %c0_26] : memref<1x128xf32, #tpu.memory_space<vmem>>, vector<1x128xf32>
    %cst_27 = arith.constant dense<0.000000e+00> : vector<256xf32>
    %44 = vector.multi_reduction <add>, %41, %cst_27 [1] : vector<256x128xf32> to vector<256xf32>
    %45 = vector.shape_cast %44 : vector<256xf32> to vector<256x1xf32>
    %cst_28 = arith.constant 1.280000e+02 : f32
    %46 = vector.broadcast %cst_28 : f32 to vector<256x1xf32>
    %47 = arith.divf %45, %46 : vector<256x1xf32>
    %48 = vector.broadcast %47 : vector<256x1xf32> to vector<256x128xf32>
    %49 = arith.subf %41, %48 : vector<256x128xf32>
    %50 = arith.mulf %49, %49 : vector<256x128xf32>
    %cst_29 = arith.constant dense<0.000000e+00> : vector<256xf32>
    %51 = vector.multi_reduction <add>, %50, %cst_29 [1] : vector<256x128xf32> to vector<256xf32>
    %52 = vector.shape_cast %51 : vector<256xf32> to vector<256x1xf32>
    %cst_30 = arith.constant 1.280000e+02 : f32
    %53 = vector.broadcast %cst_30 : f32 to vector<256x1xf32>
    %54 = arith.divf %52, %53 : vector<256x1xf32>
    %55 = vector.broadcast %47 : vector<256x1xf32> to vector<256x128xf32>
    %56 = arith.subf %41, %55 : vector<256x128xf32>
    %cst_31 = arith.constant 9.99999974E-6 : f32
    %57 = vector.broadcast %cst_31 : f32 to vector<256x1xf32>
    %58 = arith.addf %54, %57 : vector<256x1xf32>
    %59 = math.rsqrt %58 : vector<256x1xf32>
    %60 = vector.broadcast %59 : vector<256x1xf32> to vector<256x128xf32>
    %61 = arith.mulf %56, %60 : vector<256x128xf32>
    %62 = vector.broadcast %42 : vector<1x128xf32> to vector<256x128xf32>
    %63 = arith.mulf %61, %62 : vector<256x128xf32>
    %64 = vector.broadcast %43 : vector<1x128xf32> to vector<256x128xf32>
    %65 = arith.addf %63, %64 : vector<256x128xf32>
    %66 = arith.truncf %65 : vector<256x128xf32> to vector<256x128xbf16>
    %c0_32 = arith.constant 0 : index
    %c0_33 = arith.constant 0 : index
    %67 = vector.load %arg9[%c0_32, %c0_33] : memref<128x512xbf16, #tpu.memory_space<vmem>>, vector<128x512xbf16>
    %cst_34 = arith.constant dense<0.000000e+00> : vector<256x512xf32>
    %68 = tpu.matmul %66, %67, %cst_34 {dimension_numbers = #tpu.dot_dimension_numbers<[1], [0], [0], [1], [0, 0, 1, 1], [], []>} : vector<256x128xbf16>, vector<128x512xbf16>, vector<256x512xf32> -> vector<256x512xf32>
    %c0_35 = arith.constant 0 : index
    %c0_36 = arith.constant 0 : index
    %69 = vector.load %arg10[%c0_35, %c0_36] : memref<1x512xf32, #tpu.memory_space<vmem>>, vector<1x512xf32>
    %70 = vector.broadcast %69 : vector<1x512xf32> to vector<256x512xf32>
    %71 = arith.addf %68, %70 : vector<256x512xf32>
    %cst_37 = arith.constant 0.000000e+00 : f32
    %72 = vector.broadcast %cst_37 : f32 to vector<256x512xf32>
    %73 = arith.maximumf %71, %72 : vector<256x512xf32>
    %74 = arith.truncf %73 : vector<256x512xf32> to vector<256x512xbf16>
    %c0_38 = arith.constant 0 : index
    %c0_39 = arith.constant 0 : index
    %75 = vector.load %arg11[%c0_38, %c0_39] : memref<512x128xbf16, #tpu.memory_space<vmem>>, vector<512x128xbf16>
    %cst_40 = arith.constant dense<0.000000e+00> : vector<256x128xf32>
    %76 = tpu.matmul %74, %75, %cst_40 {dimension_numbers = #tpu.dot_dimension_numbers<[1], [0], [0], [1], [0, 0, 1, 1], [], []>} : vector<256x512xbf16>, vector<512x128xbf16>, vector<256x128xf32> -> vector<256x128xf32>
    %c0_41 = arith.constant 0 : index
    %c0_42 = arith.constant 0 : index
    %77 = vector.load %arg12[%c0_41, %c0_42] : memref<1x128xf32, #tpu.memory_space<vmem>>, vector<1x128xf32>
    %78 = vector.broadcast %77 : vector<1x128xf32> to vector<256x128xf32>
    %79 = arith.addf %76, %78 : vector<256x128xf32>
    %80 = arith.addf %79, %65 : vector<256x128xf32>
    %c0_43 = arith.constant 0 : index
    %c0_44 = arith.constant 0 : index
    %81 = vector.load %arg13[%c0_43, %c0_44] : memref<1x128xf32, #tpu.memory_space<vmem>>, vector<1x128xf32>
    %c0_45 = arith.constant 0 : index
    %c0_46 = arith.constant 0 : index
    %82 = vector.load %arg14[%c0_45, %c0_46] : memref<1x128xf32, #tpu.memory_space<vmem>>, vector<1x128xf32>
    %cst_47 = arith.constant dense<0.000000e+00> : vector<256xf32>
    %83 = vector.multi_reduction <add>, %80, %cst_47 [1] : vector<256x128xf32> to vector<256xf32>
    %84 = vector.shape_cast %83 : vector<256xf32> to vector<256x1xf32>
    %cst_48 = arith.constant 1.280000e+02 : f32
    %85 = vector.broadcast %cst_48 : f32 to vector<256x1xf32>
    %86 = arith.divf %84, %85 : vector<256x1xf32>
    %87 = vector.broadcast %86 : vector<256x1xf32> to vector<256x128xf32>
    %88 = arith.subf %80, %87 : vector<256x128xf32>
    %89 = arith.mulf %88, %88 : vector<256x128xf32>
    %cst_49 = arith.constant dense<0.000000e+00> : vector<256xf32>
    %90 = vector.multi_reduction <add>, %89, %cst_49 [1] : vector<256x128xf32> to vector<256xf32>
    %91 = vector.shape_cast %90 : vector<256xf32> to vector<256x1xf32>
    %cst_50 = arith.constant 1.280000e+02 : f32
    %92 = vector.broadcast %cst_50 : f32 to vector<256x1xf32>
    %93 = arith.divf %91, %92 : vector<256x1xf32>
    %94 = vector.broadcast %86 : vector<256x1xf32> to vector<256x128xf32>
    %95 = arith.subf %80, %94 : vector<256x128xf32>
    %cst_51 = arith.constant 9.99999974E-6 : f32
    %96 = vector.broadcast %cst_51 : f32 to vector<256x1xf32>
    %97 = arith.addf %93, %96 : vector<256x1xf32>
    %98 = math.rsqrt %97 : vector<256x1xf32>
    %99 = vector.broadcast %98 : vector<256x1xf32> to vector<256x128xf32>
    %100 = arith.mulf %95, %99 : vector<256x128xf32>
    %101 = vector.broadcast %81 : vector<1x128xf32> to vector<256x128xf32>
    %102 = arith.mulf %100, %101 : vector<256x128xf32>
    %103 = vector.broadcast %82 : vector<1x128xf32> to vector<256x128xf32>
    %104 = arith.addf %102, %103 : vector<256x128xf32>
    %105 = vector.shape_cast %104 : vector<256x128xf32> to vector<2x128x128xf32>
    %106 = arith.truncf %105 : vector<2x128x128xf32> to vector<2x128x128xbf16>
    %c0_52 = arith.constant 0 : index
    %c0_53 = arith.constant 0 : index
    %c0_54 = arith.constant 0 : index
    %107 = vector.load %arg15[%c0_52, %c0_53, %c0_54] : memref<2x128x128xbf16, #tpu.memory_space<vmem>>, vector<2x128x128xbf16>
    tpu.vector_store %arg15[%c0_52, %c0_53, %c0_54], %106 {strides = array<i32>} : memref<2x128x128xbf16, #tpu.memory_space<vmem>>, vector<2x128x128xbf16>,
    return
  }
  func.func @transform_0(%arg0: i32) -> (i32, i32, i32) {
    %c0_i32 = arith.constant 0 : i32
    %c0_i32_0 = arith.constant 0 : i32
    %c0_i32_1 = arith.constant 0 : i32
    return %arg0, %c0_i32, %c0_i32_0 : i32, i32, i32
  }
  func.func @transform_1(%arg0: i32) -> (i32, i32, i32) {
    %c0_i32 = arith.constant 0 : i32
    %c0_i32_0 = arith.constant 0 : i32
    %c0_i32_1 = arith.constant 0 : i32
    return %arg0, %c0_i32, %c0_i32_0 : i32, i32, i32
  }
  func.func @transform_2(%arg0: i32) -> (i32, i32, i32) {
    %c0_i32 = arith.constant 0 : i32
    %c0_i32_0 = arith.constant 0 : i32
    %c0_i32_1 = arith.constant 0 : i32
    return %arg0, %c0_i32, %c0_i32_0 : i32, i32, i32
  }
  func.func @transform_3(%arg0: i32) -> (i32, i32) {
    %c0_i32 = arith.constant 0 : i32
    %c0_i32_0 = arith.constant 0 : i32
    %c0_i32_1 = arith.constant 0 : i32
    return %c0_i32, %c0_i32_0 : i32, i32
  }
  func.func @transform_4(%arg0: i32) -> (i32, i32) {
    %c0_i32 = arith.constant 0 : i32
    %c0_i32_0 = arith.constant 0 : i32
    %c0_i32_1 = arith.constant 0 : i32
    return %c0_i32, %c0_i32_0 : i32, i32
  }
  func.func @transform_5(%arg0: i32) -> (i32, i32) {
    %c0_i32 = arith.constant 0 : i32
    %c0_i32_0 = arith.constant 0 : i32
    %c0_i32_1 = arith.constant 0 : i32
    return %c0_i32, %c0_i32_0 : i32, i32
  }
  func.func @transform_6(%arg0: i32) -> (i32, i32) {
    %c0_i32 = arith.constant 0 : i32
    %c0_i32_0 = arith.constant 0 : i32
    %c0_i32_1 = arith.constant 0 : i32
    return %c0_i32, %c0_i32_0 : i32, i32
  }
  func.func @transform_7(%arg0: i32) -> (i32, i32) {
    %c0_i32 = arith.constant 0 : i32
    %c0_i32_0 = arith.constant 0 : i32
    %c0_i32_1 = arith.constant 0 : i32
    return %c0_i32, %c0_i32_0 : i32, i32
  }
  func.func @transform_8(%arg0: i32) -> (i32, i32) {
    %c0_i32 = arith.constant 0 : i32
    %c0_i32_0 = arith.constant 0 : i32
    %c0_i32_1 = arith.constant 0 : i32
    return %c0_i32, %c0_i32_0 : i32, i32
  }
  func.func @transform_9(%arg0: i32) -> (i32, i32) {
    %c0_i32 = arith.constant 0 : i32
    %c0_i32_0 = arith.constant 0 : i32
    %c0_i32_1 = arith.constant 0 : i32
    return %c0_i32, %c0_i32_0 : i32, i32
  }
  func.func @transform_10(%arg0: i32) -> (i32, i32) {
    %c0_i32 = arith.constant 0 : i32
    %c0_i32_0 = arith.constant 0 : i32
    %c0_i32_1 = arith.constant 0 : i32
    return %c0_i32, %c0_i32_0 : i32, i32
  }
  func.func @transform_11(%arg0: i32) -> (i32, i32) {
    %c0_i32 = arith.constant 0 : i32
    %c0_i32_0 = arith.constant 0 : i32
    %c0_i32_1 = arith.constant 0 : i32
    return %c0_i32, %c0_i32_0 : i32, i32
  }
  func.func @transform_12(%arg0: i32) -> (i32, i32) {
    %c0_i32 = arith.constant 0 : i32
    %c0_i32_0 = arith.constant 0 : i32
    %c0_i32_1 = arith.constant 0 : i32
    return %c0_i32, %c0_i32_0 : i32, i32
  }
  func.func @transform_13(%arg0: i32) -> (i32, i32) {
    %c0_i32 = arith.constant 0 : i32
    %c0_i32_0 = arith.constant 0 : i32
    %c0_i32_1 = arith.constant 0 : i32
    return %c0_i32, %c0_i32_0 : i32, i32
  }
  func.func @transform_14(%arg0: i32) -> (i32, i32, i32) {
    %c0_i32 = arith.constant 0 : i32
    %c0_i32_0 = arith.constant 0 : i32
    %c0_i32_1 = arith.constant 0 : i32
    return %arg0, %c0_i32, %c0_i32_0 : i32, i32, i32
  }
}

</mosaic_0001>

<llo_original>
// kernel: tpu_custom_call.1
$region0: #{tpu_custom_call.1}
  #allocation0 [shape = 'u32[]', space=smem, size = 0x4, offset = 0x4, fixed_abs, tag = 'smem constant byte address 0x4 - core index']
  #allocation1 [shape = 'u32[144,128]{1,0:T(1,128)}', space=vmem, size = 0x12000, scoped, tag = 'internal scratch']
  %s0 = inlined_call_operand.hbm [shape: f32[8,128,128], index: 0, kind: input, shape index: {}]
  %s1 = inlined_call_operand.hbm [shape: f32[8,128,128], index: 1, kind: input, shape index: {}]
  %s2 = inlined_call_operand.hbm [shape: f32[8,128,128], index: 2, kind: input, shape index: {}]
  %s3 = inlined_call_operand.hbm [shape: bf16[128,384], index: 3, kind: input, shape index: {}]
  %s4 = inlined_call_operand.hbm [shape: bf16[128,128], index: 4, kind: input, shape index: {}]
  %s5 = inlined_call_operand.vmem [shape: f32[1,128], index: 5, kind: input, shape index: {}]
  %s6 = inlined_call_operand.vmem [shape: f32[1,128], index: 6, kind: input, shape index: {}]
  %s7 = inlined_call_operand.vmem [shape: f32[1,128], index: 7, kind: input, shape index: {}]
  %s8 = inlined_call_operand.hbm [shape: bf16[128,512], index: 8, kind: input, shape index: {}]
  %s9 = inlined_call_operand.vmem [shape: f32[1,512], index: 9, kind: input, shape index: {}]
  %s10 = inlined_call_operand.hbm [shape: bf16[512,128], index: 10, kind: input, shape index: {}]
  %s11 = inlined_call_operand.vmem [shape: f32[1,128], index: 11, kind: input, shape index: {}]
  %s12 = inlined_call_operand.vmem [shape: f32[1,128], index: 12, kind: input, shape index: {}]
  %s13 = inlined_call_operand.vmem [shape: f32[1,128], index: 13, kind: input, shape index: {}]
  %s14 = inlined_call_operand.hbm [shape: bf16[8,128,128], index: 14, kind: output, shape index: {}]
  %s15 = sld [smem:[#allocation0]]
  $region117: #{tpu_custom_call.1} parent=0
    _
  %s17 = ssub.s32 1, %s15
  %s18 = scalar_select 0, %s17, %s15
  $region1: #{tpu_custom_call.1} parent=0
    #allocation2 [shape = 'u8[262144]{0}', space=vmem, size = 0x40000, scoped, tag = 'input window, operand 0']
    #allocation3 [shape = 's32[2]{0}', space=sflag, size = 0x8, scoped, tag = 'scoped memory for tpu_custom_call.1']
    #allocation4 [shape = 's32[2]{0}', space=sflag, size = 0x8, scoped, tag = 'scoped memory for tpu_custom_call.1']
    #allocation5 [shape = 'u8[262144]{0}', space=vmem, size = 0x40000, scoped, tag = 'input window, operand 1']
    #allocation6 [shape = 's32[2]{0}', space=sflag, size = 0x8, scoped, tag = 'scoped memory for tpu_custom_call.1']
    #allocation7 [shape = 'u8[262144]{0}', space=vmem, size = 0x40000, scoped, tag = 'input window, operand 2']
    #allocation8 [shape = 'u8[98304]{0}', space=vmem, size = 0x18000, scoped, tag = 'input window, operand 3, single buffered']
    #allocation9 [shape = 's32[1]{0}', space=sflag, size = 0x4, scoped, tag = 'scoped memory for tpu_custom_call.1']
    #allocation10 [shape = 'u8[32768]{0}', space=vmem, size = 0x8000, scoped, tag = 'input window, operand 4, single buffered']
    #allocation11 [shape = 'u8[131072]{0}', space=vmem, size = 0x20000, scoped, tag = 'input window, operand 8, single buffered']
    #allocation12 [shape = 's32[1]{0}', space=sflag, size = 0x4, scoped, tag = 'scoped memory for tpu_custom_call.1']
    #allocation13 [shape = 'u8[131072]{0}', space=vmem, size = 0x20000, scoped, tag = 'input window, operand 10, single buffered']
    #allocation14 [shape = 'u8[131072]{0}', space=vmem, size = 0x20000, scoped, tag = 'output window, operand 0']
    %19 = vsyncpa [#allocation3], 0
    %s20 = scalar_lea.sflag [#allocation3], 1
    %21 = vsyncpa %s20, 0
    %22 = vsyncpa [#allocation6], 0
    %s23 = scalar_lea.sflag [#allocation6], 1
    %24 = vsyncpa %s23, 0
    %25 = vsyncpa [#allocation9], 0
    %26 = vsyncpa [#allocation12], 0
    %27 = vsyncpa [#allocation4], 0
    %s28 = scalar_lea.sflag [#allocation4], 1
    %29 = vsyncpa %s28, 0
    loop: start=0, step=1, limit=6
    $region2: #{tpu_custom_call.1} parent=1 // loop_pre_header
      _
    $region3: #{tpu_custom_call.1} parent=1 // loop_header
      %s31 = sphi 0, %s35
      %p32 = scmp.ge.s32.totalorder %s31, 6
      %s41 = sphi 0, %s43
      %s44 = sphi 0, %s41
      %s45 = sphi 0, %s44
      %s61 = sphi 0, %s45
      %s67 = sphi 0, %s69
      %s70 = sphi 0, %s67
      %s71 = sphi 0, %s70
      %s87 = sphi 0, %s71
      %s93 = sphi 0, %s95
      %s96 = sphi 0, %s93
      %s97 = sphi 0, %s96
      %s113 = sphi 0, %s97
      %s117 = sphi 0, %s117
      %s119 = sphi 0, %s117
      %s120 = sphi 0, %s119
      %s134 = sphi 0, %s120
      %s138 = sphi 0, %s138
      %s140 = sphi 0, %s138
      %s141 = sphi 0, %s140
      %s155 = sphi 0, %s141
      %s159 = sphi 0, %s159
      %s161 = sphi 0, %s159
      %s162 = sphi 0, %s161
      %s176 = sphi 0, %s162
      %s180 = sphi 0, %s180
      %s182 = sphi 0, %s180
      %s183 = sphi 0, %s182
      %s197 = sphi 0, %s183
      %s201 = sphi 0, %s201
      %s203 = sphi 0, %s201
      %s204 = sphi 0, %s203
      %s218 = sphi 0, %s204
      %s222 = sphi 0, %s222
      %s224 = sphi 0, %s222
      %s225 = sphi 0, %s224
      %s239 = sphi 0, %s225
      %s243 = sphi 0, %s243
      %s245 = sphi 0, %s243
      %s246 = sphi 0, %s245
      %s260 = sphi 0, %s246
      %s264 = sphi 0, %s264
      %s266 = sphi 0, %s264
      %s267 = sphi 0, %s266
      %s281 = sphi 0, %s267
      %s285 = sphi 0, %s285
      %s287 = sphi 0, %s285
      %s288 = sphi 0, %s287
      %s302 = sphi 0, %s288
      %s306 = sphi 0, %s306
      %s308 = sphi 0, %s306
      %s309 = sphi 0, %s308
      %s323 = sphi 0, %s309
      %s327 = sphi 0, %s327
      %s329 = sphi 0, %s327
      %s330 = sphi 0, %s329
      %s344 = sphi 0, %s330
      %s350 = sphi 0, %s352
      %s353 = sphi 0, %s350
      %s354 = sphi 0, %s353
      %s370 = sphi 0, %s354
    $region4: #{tpu_custom_call.1} parent=1 // loop_header_branch
      %34 = sbr.rel (%p32) target = $region8
    $region5: #{tpu_custom_call.1} parent=1 // loop_body
      %s36 = ssub.s32 %s31, 1
      %s37 = ssub.s32 %s31, 2
      %s38 = sadd.s32 %s31, 1
      %s39 = ssub.s32 %s31, %s38
      %p40 = scmp.eq.s32.totalorder %s39, 0
      %s42 = sadd.s32 %s41, 1
      %s43 = scalar_select %p40, %s41, %s42
      %p46 = pneg %p40
      %p47 = scmp.eq.s32.totalorder %s31, 3
      %p48 = por %p46, %p47
      %p49 = scmp.ne.s32.totalorder %s41, %s44
      %p50 = scmp.eq.s32.totalorder %s31, 0
      %p51 = por %p49, %p50
      %p52 = scmp.ne.s32.totalorder %s41, %s44
      %p53 = scmp.eq.s32.totalorder %s36, 3
      %p54 = por %p52, %p53
      %p55 = scmp.ne.s32.totalorder %s44, %s45
      %p56 = scmp.eq.s32.totalorder %s36, 0
      %p57 = por %p55, %p56
      %p58 = scmp.ne.s32.totalorder %s44, %s45
      %p59 = scmp.eq.s32.totalorder %s37, 3
      %p60 = por %p58, %p59
      %p62 = scmp.ne.s32.totalorder %s45, %s61
      %p63 = scmp.eq.s32.totalorder %s37, 0
      %p64 = por %p62, %p63
      %s65 = ssub.s32 %s31, %s38
      %p66 = scmp.eq.s32.totalorder %s65, 0
      %s68 = sadd.s32 %s67, 1
      %s69 = scalar_select %p66, %s67, %s68
      %p72 = pneg %p66
      %p73 = scmp.eq.s32.totalorder %s31, 3
      %p74 = por %p72, %p73
      %p75 = scmp.ne.s32.totalorder %s67, %s70
      %p76 = scmp.eq.s32.totalorder %s31, 0
      %p77 = por %p75, %p76
      %p78 = scmp.ne.s32.totalorder %s67, %s70
      %p79 = scmp.eq.s32.totalorder %s36, 3
      %p80 = por %p78, %p79
      %p81 = scmp.ne.s32.totalorder %s70, %s71
      %p82 = scmp.eq.s32.totalorder %s36, 0
      %p83 = por %p81, %p82
      %p84 = scmp.ne.s32.totalorder %s70, %s71
      %p85 = scmp.eq.s32.totalorder %s37, 3
      %p86 = por %p84, %p85
      %p88 = scmp.ne.s32.totalorder %s71, %s87
      %p89 = scmp.eq.s32.totalorder %s37, 0
      %p90 = por %p88, %p89
      %s91 = ssub.s32 %s31, %s38
      %p92 = scmp.eq.s32.totalorder %s91, 0
      %s94 = sadd.s32 %s93, 1
      %s95 = scalar_select %p92, %s93, %s94
      %p98 = pneg %p92
      %p99 = scmp.eq.s32.totalorder %s31, 3
      %p100 = por %p98, %p99
      %p101 = scmp.ne.s32.totalorder %s93, %s96
      %p102 = scmp.eq.s32.totalorder %s31, 0
      %p103 = por %p101, %p102
      %p104 = scmp.ne.s32.totalorder %s93, %s96
      %p105 = scmp.eq.s32.totalorder %s36, 3
      %p106 = por %p104, %p105
      %p107 = scmp.ne.s32.totalorder %s96, %s97
      %p108 = scmp.eq.s32.totalorder %s36, 0
      %p109 = por %p107, %p108
      %p110 = scmp.ne.s32.totalorder %s96, %s97
      %p111 = scmp.eq.s32.totalorder %s37, 3
      %p112 = por %p110, %p111
      %p114 = scmp.ne.s32.totalorder %s97, %s113
      %p115 = scmp.eq.s32.totalorder %s37, 0
      %p116 = por %p114, %p115
      %s118 = sadd.s32 %s117, 1
      %p121 = scmp.eq.s32.totalorder %s31, 3
      %p122 = scmp.ne.s32.totalorder %s117, %s119
      %p123 = scmp.eq.s32.totalorder %s31, 0
      %p124 = por %p122, %p123
      %p125 = scmp.ne.s32.totalorder %s117, %s119
      %p126 = scmp.eq.s32.totalorder %s36, 3
      %p127 = por %p125, %p126
      %p128 = scmp.ne.s32.totalorder %s119, %s120
      %p129 = scmp.eq.s32.totalorder %s36, 0
      %p130 = por %p128, %p129
      %p131 = scmp.ne.s32.totalorder %s119, %s120
      %p132 = scmp.eq.s32.totalorder %s37, 3
      %p133 = por %p131, %p132
      %p135 = scmp.ne.s32.totalorder %s120, %s134
      %p136 = scmp.eq.s32.totalorder %s37, 0
      %p137 = por %p135, %p136
      %s139 = sadd.s32 %s138, 1
      %p142 = scmp.eq.s32.totalorder %s31, 3
      %p143 = scmp.ne.s32.totalorder %s138, %s140
      %p144 = scmp.eq.s32.totalorder %s31, 0
      %p145 = por %p143, %p144
      %p146 = scmp.ne.s32.totalorder %s138, %s140
      %p147 = scmp.eq.s32.totalorder %s36, 3
      %p148 = por %p146, %p147
      %p149 = scmp.ne.s32.totalorder %s140, %s141
      %p150 = scmp.eq.s32.totalorder %s36, 0
      %p151 = por %p149, %p150
      %p152 = scmp.ne.s32.totalorder %s140, %s141
      %p153 = scmp.eq.s32.totalorder %s37, 3
      %p154 = por %p152, %p153
      %p156 = scmp.ne.s32.totalorder %s141, %s155
      %p157 = scmp.eq.s32.totalorder %s37, 0
      %p158 = por %p156, %p157
      %s160 = sadd.s32 %s159, 1
      %p163 = scmp.eq.s32.totalorder %s31, 3
      %p164 = scmp.ne.s32.totalorder %s159, %s161
      %p165 = scmp.eq.s32.totalorder %s31, 0
      %p166 = por %p164, %p165
      %p167 = scmp.ne.s32.totalorder %s159, %s161
      %p168 = scmp.eq.s32.totalorder %s36, 3
      %p169 = por %p167, %p168
      %p170 = scmp.ne.s32.totalorder %s161, %s162
      %p171 = scmp.eq.s32.totalorder %s36, 0
      %p172 = por %p170, %p171
      %p173 = scmp.ne.s32.totalorder %s161, %s162
      %p174 = scmp.eq.s32.totalorder %s37, 3
      %p175 = por %p173, %p174
      %p177 = scmp.ne.s32.totalorder %s162, %s176
      %p178 = scmp.eq.s32.totalorder %s37, 0
      %p179 = por %p177, %p178
      %s181 = sadd.s32 %s180, 1
      %p184 = scmp.eq.s32.totalorder %s31, 3
      %p185 = scmp.ne.s32.totalorder %s180, %s182
      %p186 = scmp.eq.s32.totalorder %s31, 0
      %p187 = por %p185, %p186
      %p188 = scmp.ne.s32.totalorder %s180, %s182
      %p189 = scmp.eq.s32.totalorder %s36, 3
      %p190 = por %p188, %p189
      %p191 = scmp.ne.s32.totalorder %s182, %s183
      %p192 = scmp.eq.s32.totalorder %s36, 0
      %p193 = por %p191, %p192
      %p194 = scmp.ne.s32.totalorder %s182, %s183
      %p195 = scmp.eq.s32.totalorder %s37, 3
      %p196 = por %p194, %p195
      %p198 = scmp.ne.s32.totalorder %s183, %s197
      %p199 = scmp.eq.s32.totalorder %s37, 0
      %p200 = por %p198, %p199
      %s202 = sadd.s32 %s201, 1
      %p205 = scmp.eq.s32.totalorder %s31, 3
      %p206 = scmp.ne.s32.totalorder %s201, %s203
      %p207 = scmp.eq.s32.totalorder %s31, 0
      %p208 = por %p206, %p207
      %p209 = scmp.ne.s32.totalorder %s201, %s203
      %p210 = scmp.eq.s32.totalorder %s36, 3
      %p211 = por %p209, %p210
      %p212 = scmp.ne.s32.totalorder %s203, %s204
      %p213 = scmp.eq.s32.totalorder %s36, 0
      %p214 = por %p212, %p213
      %p215 = scmp.ne.s32.totalorder %s203, %s204
      %p216 = scmp.eq.s32.totalorder %s37, 3
      %p217 = por %p215, %p216
      %p219 = scmp.ne.s32.totalorder %s204, %s218
      %p220 = scmp.eq.s32.totalorder %s37, 0
      %p221 = por %p219, %p220
      %s223 = sadd.s32 %s222, 1
      %p226 = scmp.eq.s32.totalorder %s31, 3
      %p227 = scmp.ne.s32.totalorder %s222, %s224
      %p228 = scmp.eq.s32.totalorder %s31, 0
      %p229 = por %p227, %p228
      %p230 = scmp.ne.s32.totalorder %s222, %s224
      %p231 = scmp.eq.s32.totalorder %s36, 3
      %p232 = por %p230, %p231
      %p233 = scmp.ne.s32.totalorder %s224, %s225
      %p234 = scmp.eq.s32.totalorder %s36, 0
      %p235 = por %p233, %p234
      %p236 = scmp.ne.s32.totalorder %s224, %s225
      %p237 = scmp.eq.s32.totalorder %s37, 3
      %p238 = por %p236, %p237
      %p240 = scmp.ne.s32.totalorder %s225, %s239
      %p241 = scmp.eq.s32.totalorder %s37, 0
      %p242 = por %p240, %p241
      %s244 = sadd.s32 %s243, 1
      %p247 = scmp.eq.s32.totalorder %s31, 3
      %p248 = scmp.ne.s32.totalorder %s243, %s245
      %p249 = scmp.eq.s32.totalorder %s31, 0
      %p250 = por %p248, %p249
      %p251 = scmp.ne.s32.totalorder %s243, %s245
      %p252 = scmp.eq.s32.totalorder %s36, 3
      %p253 = por %p251, %p252
      %p254 = scmp.ne.s32.totalorder %s245, %s246
      %p255 = scmp.eq.s32.totalorder %s36, 0
      %p256 = por %p254, %p255
      %p257 = scmp.ne.s32.totalorder %s245, %s246
      %p258 = scmp.eq.s32.totalorder %s37, 3
      %p259 = por %p257, %p258
      %p261 = scmp.ne.s32.totalorder %s246, %s260
      %p262 = scmp.eq.s32.totalorder %s37, 0
      %p263 = por %p261, %p262
      %s265 = sadd.s32 %s264, 1
      %p268 = scmp.eq.s32.totalorder %s31, 3
      %p269 = scmp.ne.s32.totalorder %s264, %s266
      %p270 = scmp.eq.s32.totalorder %s31, 0
      %p271 = por %p269, %p270
      %p272 = scmp.ne.s32.totalorder %s264, %s266
      %p273 = scmp.eq.s32.totalorder %s36, 3
      %p274 = por %p272, %p273
      %p275 = scmp.ne.s32.totalorder %s266, %s267
      %p276 = scmp.eq.s32.totalorder %s36, 0
      %p277 = por %p275, %p276
      %p278 = scmp.ne.s32.totalorder %s266, %s267
      %p279 = scmp.eq.s32.totalorder %s37, 3
      %p280 = por %p278, %p279
      %p282 = scmp.ne.s32.totalorder %s267, %s281
      %p283 = scmp.eq.s32.totalorder %s37, 0
      %p284 = por %p282, %p283
      %s286 = sadd.s32 %s285, 1
      %p289 = scmp.eq.s32.totalorder %s31, 3
      %p290 = scmp.ne.s32.totalorder %s285, %s287
      %p291 = scmp.eq.s32.totalorder %s31, 0
      %p292 = por %p290, %p291
      %p293 = scmp.ne.s32.totalorder %s285, %s287
      %p294 = scmp.eq.s32.totalorder %s36, 3
      %p295 = por %p293, %p294
      %p296 = scmp.ne.s32.totalorder %s287, %s288
      %p297 = scmp.eq.s32.totalorder %s36, 0
      %p298 = por %p296, %p297
      %p299 = scmp.ne.s32.totalorder %s287, %s288
      %p300 = scmp.eq.s32.totalorder %s37, 3
      %p301 = por %p299, %p300
      %p303 = scmp.ne.s32.totalorder %s288, %s302
      %p304 = scmp.eq.s32.totalorder %s37, 0
      %p305 = por %p303, %p304
      %s307 = sadd.s32 %s306, 1
      %p310 = scmp.eq.s32.totalorder %s31, 3
      %p311 = scmp.ne.s32.totalorder %s306, %s308
      %p312 = scmp.eq.s32.totalorder %s31, 0
      %p313 = por %p311, %p312
      %p314 = scmp.ne.s32.totalorder %s306, %s308
      %p315 = scmp.eq.s32.totalorder %s36, 3
      %p316 = por %p314, %p315
      %p317 = scmp.ne.s32.totalorder %s308, %s309
      %p318 = scmp.eq.s32.totalorder %s36, 0
      %p319 = por %p317, %p318
      %p320 = scmp.ne.s32.totalorder %s308, %s309
      %p321 = scmp.eq.s32.totalorder %s37, 3
      %p322 = por %p320, %p321
      %p324 = scmp.ne.s32.totalorder %s309, %s323
      %p325 = scmp.eq.s32.totalorder %s37, 0
      %p326 = por %p324, %p325
      %s328 = sadd.s32 %s327, 1
      %p331 = scmp.eq.s32.totalorder %s31, 3
      %p332 = scmp.ne.s32.totalorder %s327, %s329
      %p333 = scmp.eq.s32.totalorder %s31, 0
      %p334 = por %p332, %p333
      %p335 = scmp.ne.s32.totalorder %s327, %s329
      %p336 = scmp.eq.s32.totalorder %s36, 3
      %p337 = por %p335, %p336
      %p338 = scmp.ne.s32.totalorder %s329, %s330
      %p339 = scmp.eq.s32.totalorder %s36, 0
      %p340 = por %p338, %p339
      %p341 = scmp.ne.s32.totalorder %s329, %s330
      %p342 = scmp.eq.s32.totalorder %s37, 3
      %p343 = por %p341, %p342
      %p345 = scmp.ne.s32.totalorder %s330, %s344
      %p346 = scmp.eq.s32.totalorder %s37, 0
      %p347 = por %p345, %p346
      %s348 = ssub.s32 %s31, %s38
      %p349 = scmp.eq.s32.totalorder %s348, 0
      %s351 = sadd.s32 %s350, 1
      %s352 = scalar_select %p349, %s350, %s351
      %p355 = pneg %p349
      %p356 = scmp.eq.s32.totalorder %s31, 3
      %p357 = por %p355, %p356
      %p358 = scmp.ne.s32.totalorder %s350, %s353
      %p359 = scmp.eq.s32.totalorder %s31, 0
      %p360 = por %p358, %p359
      %p361 = scmp.ne.s32.totalorder %s350, %s353
      %p362 = scmp.eq.s32.totalorder %s36, 3
      %p363 = por %p361, %p362
      %p364 = scmp.ne.s32.totalorder %s353, %s354
      %p365 = scmp.eq.s32.totalorder %s36, 0
      %p366 = por %p364, %p365
      %p367 = scmp.ne.s32.totalorder %s353, %s354
      %p368 = scmp.eq.s32.totalorder %s37, 3
      %p369 = por %p367, %p368
      %p371 = scmp.ne.s32.totalorder %s354, %s370
      %p372 = scmp.eq.s32.totalorder %s37, 0
      %p373 = por %p371, %p372
      %p374 = scmp.le.s32.totalorder 1, %s31
      %p375 = scmp.lt.s32.totalorder %s31, 5
      %p376 = pnand %p374, %p375
      %p377 = pneg %p376
      // Predicated region
      $region9: #{tpu_custom_call.1} parent=5 // pred_check
        _
      $region10: #{tpu_custom_call.1} parent=5 // pred_check_branch
        %379 = sbr.rel (%p376) target = $region12
      $region11: #{tpu_custom_call.1} parent=5 // pred_region
        %s380 = ssub.s32 %s31, 1
        // Predicated region
        $region13: #{tpu_custom_call.1} parent=11 // pred_check
          %p381 = pneg %p130
        $region14: #{tpu_custom_call.1} parent=11 // pred_check_branch
          %383 = sbr.rel (%p381) target = $region16
        $region15: #{tpu_custom_call.1} parent=11 // pred_region
          %s385 = ssub.s32 3072, 3072
          %386 = vsyncadd [#allocation9], %s385
          %s387 = sshll.u32 [#allocation8], 4
          %s388 = int_to_ptr.vmem [resolvable:$true] %s387
          %393 = dma.hbm_to_vmem [thread:$0]  %s3, 3072, %s388, [#allocation9], 192, 192, 12
        $region16: #{tpu_custom_call.1} parent=11 // pred_fallthru
          _
        // Predicated region
        $region17: #{tpu_custom_call.1} parent=11 // pred_check
          %p394 = pneg %p151
        $region18: #{tpu_custom_call.1} parent=11 // pred_check_branch
          %396 = sbr.rel (%p394) target = $region20
        $region19: #{tpu_custom_call.1} parent=11 // pred_region
          %s398 = ssub.s32 1024, 1024
          %399 = vsyncadd [#allocation9], %s398
          %s400 = sshll.u32 [#allocation10], 4
          %s401 = int_to_ptr.vmem [resolvable:$true] %s400
          %406 = dma.hbm_to_vmem [thread:$0]  %s4, 1024, %s401, [#allocation9], 64, 64, 4
        $region20: #{tpu_custom_call.1} parent=11 // pred_fallthru
          _
        // Predicated region
        $region21: #{tpu_custom_call.1} parent=11 // pred_check
          %p407 = pneg %p172
        $region22: #{tpu_custom_call.1} parent=11 // pred_check_branch
          %409 = sbr.rel (%p407) target = $region24
        $region23: #{tpu_custom_call.1} parent=11 // pred_region
          _
        $region24: #{tpu_custom_call.1} parent=11 // pred_fallthru
          _
        // Predicated region
        $region25: #{tpu_custom_call.1} parent=11 // pred_check
          %p410 = pneg %p193
        $region26: #{tpu_custom_call.1} parent=11 // pred_check_branch
          %412 = sbr.rel (%p410) target = $region28
        $region27: #{tpu_custom_call.1} parent=11 // pred_region
          _
        $region28: #{tpu_custom_call.1} parent=11 // pred_fallthru
          _
        // Predicated region
        $region29: #{tpu_custom_call.1} parent=11 // pred_check
          %p413 = pneg %p214
        $region30: #{tpu_custom_call.1} parent=11 // pred_check_branch
          %415 = sbr.rel (%p413) target = $region32
        $region31: #{tpu_custom_call.1} parent=11 // pred_region
          _
        $region32: #{tpu_custom_call.1} parent=11 // pred_fallthru
          _
        // Predicated region
        $region33: #{tpu_custom_call.1} parent=11 // pred_check
          %p416 = pneg %p235
        $region34: #{tpu_custom_call.1} parent=11 // pred_check_branch
          %418 = sbr.rel (%p416) target = $region36
        $region35: #{tpu_custom_call.1} parent=11 // pred_region
          %s420 = ssub.s32 4096, 4096
          %421 = vsyncadd [#allocation12], %s420
          %s422 = sshll.u32 [#allocation11], 4
          %s423 = int_to_ptr.vmem [resolvable:$true] %s422
          %428 = dma.hbm_to_vmem [thread:$0]  %s8, 4096, %s423, [#allocation12], 256, 256, 16
        $region36: #{tpu_custom_call.1} parent=11 // pred_fallthru
          _
        // Predicated region
        $region37: #{tpu_custom_call.1} parent=11 // pred_check
          %p429 = pneg %p256
        $region38: #{tpu_custom_call.1} parent=11 // pred_check_branch
          %431 = sbr.rel (%p429) target = $region40
        $region39: #{tpu_custom_call.1} parent=11 // pred_region
          _
        $region40: #{tpu_custom_call.1} parent=11 // pred_fallthru
          _
        // Predicated region
        $region41: #{tpu_custom_call.1} parent=11 // pred_check
          %p432 = pneg %p277
        $region42: #{tpu_custom_call.1} parent=11 // pred_check_branch
          %434 = sbr.rel (%p432) target = $region44
        $region43: #{tpu_custom_call.1} parent=11 // pred_region
          %s436 = ssub.s32 4096, 4096
          %437 = vsyncadd [#allocation12], %s436
          %s438 = sshll.u32 [#allocation13], 4
          %s439 = int_to_ptr.vmem [resolvable:$true] %s438
          %444 = dma.hbm_to_vmem [thread:$0]  %s10, 4096, %s439, [#allocation12], 64, 64, 4
        $region44: #{tpu_custom_call.1} parent=11 // pred_fallthru
          _
        // Predicated region
        $region45: #{tpu_custom_call.1} parent=11 // pred_check
          %p445 = pneg %p298
        $region46: #{tpu_custom_call.1} parent=11 // pred_check_branch
          %447 = sbr.rel (%p445) target = $region48
        $region47: #{tpu_custom_call.1} parent=11 // pred_region
          _
        $region48: #{tpu_custom_call.1} parent=11 // pred_fallthru
          _
        // Predicated region
        $region49: #{tpu_custom_call.1} parent=11 // pred_check
          %p448 = pneg %p319
        $region50: #{tpu_custom_call.1} parent=11 // pred_check_branch
          %450 = sbr.rel (%p448) target = $region52
        $region51: #{tpu_custom_call.1} parent=11 // pred_region
          _
        $region52: #{tpu_custom_call.1} parent=11 // pred_fallthru
          _
        // Predicated region
        $region53: #{tpu_custom_call.1} parent=11 // pred_check
          %p451 = pneg %p340
        $region54: #{tpu_custom_call.1} parent=11 // pred_check_branch
          %453 = sbr.rel (%p451) target = $region56
        $region55: #{tpu_custom_call.1} parent=11 // pred_region
          _
        $region56: #{tpu_custom_call.1} parent=11 // pred_fallthru
          _
      $region12: #{tpu_custom_call.1} parent=5 // pred_fallthru
        _
      %p454 = scmp.lt.s32.totalorder %s31, 4
      // Predicated region
      $region57: #{tpu_custom_call.1} parent=5 // pred_check
        %p455 = pneg %p454
      $region58: #{tpu_custom_call.1} parent=5 // pred_check_branch
        %457 = sbr.rel (%p455) target = $region60
      $region59: #{tpu_custom_call.1} parent=5 // pred_region
        // Predicated region
        $region61: #{tpu_custom_call.1} parent=59 // pred_check
          %p458 = pneg %p51
        $region62: #{tpu_custom_call.1} parent=59 // pred_check_branch
          %460 = sbr.rel (%p458) target = $region64
        $region63: #{tpu_custom_call.1} parent=59 // pred_region
          %s461 = sand.u32 %s41, 1
          %s462 = scalar_lea.sflag [#allocation3], %s461
          %s463 = sand.u32 %s41, 1
          %s464 = smul.addr %s463, 256
          %s465 = scalar_lea.vmem [#allocation2], %s464
          %s466 = smul.u32 2, %s31
          %s468 = ssub.s32 4096, 4096
          %469 = vsyncadd %s462, %s468
          %s470 = smul.addr %s466, 16
          %s471 = smul.addr %s470, 128
          %s472 = scalar_lea.hbm %s0, %s471
          %s473 = sshll.u32 %s465, 4
          %s474 = int_to_ptr.vmem [resolvable:$true] %s473
          %479 = dma.hbm_to_vmem [thread:$0]  %s472, 4096, %s474, %s462, 128, 128, 8
        $region64: #{tpu_custom_call.1} parent=59 // pred_fallthru
          _
        // Predicated region
        $region65: #{tpu_custom_call.1} parent=59 // pred_check
          %p480 = pneg %p77
        $region66: #{tpu_custom_call.1} parent=59 // pred_check_branch
          %482 = sbr.rel (%p480) target = $region68
        $region67: #{tpu_custom_call.1} parent=59 // pred_region
          %s483 = sand.u32 %s31, 1
          %s484 = scalar_lea.sflag [#allocation6], %s483
          %s485 = sand.u32 %s67, 1
          %s486 = smul.addr %s485, 256
          %s487 = scalar_lea.vmem [#allocation5], %s486
          %s488 = smul.u32 2, %s31
          %s490 = ssub.s32 4096, 4096
          %491 = vsyncadd %s484, %s490
          %s492 = smul.addr %s488, 16
          %s493 = smul.addr %s492, 128
          %s494 = scalar_lea.hbm %s1, %s493
          %s495 = sshll.u32 %s487, 4
          %s496 = int_to_ptr.vmem [resolvable:$true] %s495
          %501 = dma.hbm_to_vmem [thread:$0]  %s494, 4096, %s496, %s484, 128, 128, 8
        $region68: #{tpu_custom_call.1} parent=59 // pred_fallthru
          _
        // Predicated region
        $region69: #{tpu_custom_call.1} parent=59 // pred_check
          %p502 = pneg %p103
        $region70: #{tpu_custom_call.1} parent=59 // pred_check_branch
          %504 = sbr.rel (%p502) target = $region72
        $region71: #{tpu_custom_call.1} parent=59 // pred_region
          %s505 = sand.u32 %s31, 1
          %s506 = scalar_lea.sflag [#allocation6], %s505
          %s507 = sand.u32 %s93, 1
          %s508 = smul.addr %s507, 256
          %s509 = scalar_lea.vmem [#allocation7], %s508
          %s510 = smul.u32 2, %s31
          %s512 = ssub.s32 4096, 4096
          %513 = vsyncadd %s506, %s512
          %s514 = smul.addr %s510, 16
          %s515 = smul.addr %s514, 128
          %s516 = scalar_lea.hbm %s2, %s515
          %s517 = sshll.u32 %s509, 4
          %s518 = int_to_ptr.vmem [resolvable:$true] %s517
          %523 = dma.hbm_to_vmem [thread:$0]  %s516, 4096, %s518, %s506, 128, 128, 8
        $region72: #{tpu_custom_call.1} parent=59 // pred_fallthru
          _
      $region60: #{tpu_custom_call.1} parent=5 // pred_fallthru
        _
      %p524 = scmp.le.s32.totalorder 1, %s31
      %p525 = scmp.lt.s32.totalorder %s31, 5
      %p526 = pnand %p524, %p525
      %p527 = pneg %p526
      // Predicated region
      $region73: #{tpu_custom_call.1} parent=5 // pred_check
        _
      $region74: #{tpu_custom_call.1} parent=5 // pred_check_branch
        %529 = sbr.rel (%p526) target = $region76
      $region75: #{tpu_custom_call.1} parent=5 // pred_region
        %s530 = ssub.s32 %s31, 1
        %s531 = sand.u32 %s44, 1
        %s532 = scalar_lea.sflag [#allocation3], %s531
        %s533 = sand.u32 %s44, 1
        %s534 = smul.addr %s533, 256
        %s535 = scalar_lea.vmem [#allocation2], %s534
        // Predicated region
        $region77: #{tpu_custom_call.1} parent=75 // pred_check
          %p536 = pneg %p57
        $region78: #{tpu_custom_call.1} parent=75 // pred_check_branch
          %538 = sbr.rel (%p536) target = $region80
        $region79: #{tpu_custom_call.1} parent=75 // pred_region
          %539 = dma.done %s532, 4096
        $region80: #{tpu_custom_call.1} parent=75 // pred_fallthru
          _
        %s540 = sand.u32 %s36, 1
        %s541 = scalar_lea.sflag [#allocation6], %s540
        %s542 = sand.u32 %s70, 1
        %s543 = smul.addr %s542, 256
        %s544 = scalar_lea.vmem [#allocation5], %s543
        // Predicated region
        $region81: #{tpu_custom_call.1} parent=75 // pred_check
          %p545 = pneg %p83
        $region82: #{tpu_custom_call.1} parent=75 // pred_check_branch
          %547 = sbr.rel (%p545) target = $region84
        $region83: #{tpu_custom_call.1} parent=75 // pred_region
          %548 = dma.done %s541, 4096
        $region84: #{tpu_custom_call.1} parent=75 // pred_fallthru
          _
        %s549 = sand.u32 %s36, 1
        %s550 = scalar_lea.sflag [#allocation6], %s549
        %s551 = sand.u32 %s96, 1
        %s552 = smul.addr %s551, 256
        %s553 = scalar_lea.vmem [#allocation7], %s552
        // Predicated region
        $region85: #{tpu_custom_call.1} parent=75 // pred_check
          %p554 = pneg %p109
        $region86: #{tpu_custom_call.1} parent=75 // pred_check_branch
          %556 = sbr.rel (%p554) target = $region88
        $region87: #{tpu_custom_call.1} parent=75 // pred_region
          %557 = dma.done %s550, 4096
        $region88: #{tpu_custom_call.1} parent=75 // pred_fallthru
          _
        // Predicated region
        $region89: #{tpu_custom_call.1} parent=75 // pred_check
          %p558 = pneg %p130
        $region90: #{tpu_custom_call.1} parent=75 // pred_check_branch
          %560 = sbr.rel (%p558) target = $region92
        $region91: #{tpu_custom_call.1} parent=75 // pred_region
          %561 = dma.done [#allocation9], 3072
        $region92: #{tpu_custom_call.1} parent=75 // pred_fallthru
          _
        // Predicated region
        $region93: #{tpu_custom_call.1} parent=75 // pred_check
          %p562 = pneg %p151
        $region94: #{tpu_custom_call.1} parent=75 // pred_check_branch
          %564 = sbr.rel (%p562) target = $region96
        $region95: #{tpu_custom_call.1} parent=75 // pred_region
          %565 = dma.done [#allocation9], 1024
        $region96: #{tpu_custom_call.1} parent=75 // pred_fallthru
          _
        // Predicated region
        $region97: #{tpu_custom_call.1} parent=75 // pred_check
          %p566 = pneg %p235
        $region98: #{tpu_custom_call.1} parent=75 // pred_check_branch
          %568 = sbr.rel (%p566) target = $region100
        $region99: #{tpu_custom_call.1} parent=75 // pred_region
          %569 = dma.done [#allocation12], 4096
        $region100: #{tpu_custom_call.1} parent=75 // pred_fallthru
          _
        // Predicated region
        $region101: #{tpu_custom_call.1} parent=75 // pred_check
          %p570 = pneg %p277
        $region102: #{tpu_custom_call.1} parent=75 // pred_check_branch
          %572 = sbr.rel (%p570) target = $region104
        $region103: #{tpu_custom_call.1} parent=75 // pred_region
          %573 = dma.done [#allocation12], 4096
        $region104: #{tpu_custom_call.1} parent=75 // pred_fallthru
          _
        %s574 = sand.u32 %s44, 1
        %s575 = scalar_lea.sflag [#allocation3], %s574
        %s576 = sand.u32 %s44, 1
        %s577 = smul.addr %s576, 256
        %s578 = scalar_lea.vmem [#allocation2], %s577
        %p579 = pneg %p57
        %p580 = pneg %p54
        %s581 = sand.u32 %s36, 1
        %s582 = scalar_lea.sflag [#allocation6], %s581
        %s583 = sand.u32 %s70, 1
        %s584 = smul.addr %s583, 256
        %s585 = scalar_lea.vmem [#allocation5], %s584
        %p586 = pneg %p83
        %p587 = pneg %p80
        %s588 = sand.u32 %s36, 1
        %s589 = scalar_lea.sflag [#allocation6], %s588
        %s590 = sand.u32 %s96, 1
        %s591 = smul.addr %s590, 256
        %s592 = scalar_lea.vmem [#allocation7], %s591
        %p593 = pneg %p109
        %p594 = pneg %p106
        %p595 = pneg %p130
        %p596 = pneg %p127
        %p597 = pneg %p151
        %p598 = pneg %p148
        %p599 = pneg %p172
        %p600 = pneg %p169
        %p601 = pneg %p193
        %p602 = pneg %p190
        %p603 = pneg %p214
        %p604 = pneg %p211
        %p605 = pneg %p235
        %p606 = pneg %p232
        %p607 = pneg %p256
        %p608 = pneg %p253
        %p609 = pneg %p277
        %p610 = pneg %p274
        %p611 = pneg %p298
        %p612 = pneg %p295
        %p613 = pneg %p319
        %p614 = pneg %p316
        %p615 = pneg %p340
        %p616 = pneg %p337
        %p617 = pneg %p366
        %p618 = pneg %p363
        %s619 = sand.u32 %s353, 1
        %s620 = scalar_lea.sflag [#allocation4], %s619
        %s621 = sand.u32 %s353, 1
        %s622 = smul.addr %s621, 128
        %s623 = scalar_lea.vmem [#allocation14], %s622
        %s624 = smul.u32 2, %s36
        %s625 = smul.u32 2, %s36
        %s626 = smul.u32 2, %s36
        %s627 = smul.u32 2, %s36
        %v629 = vld [vmem:[%s553] sm:$0xff]
        %v630 = vld [vmem:[%s553 + $0x8] sm:$0xff]
        %v631 = vld [vmem:[%s553 + $0x10] sm:$0xff]
        %v632 = vld [vmem:[%s553 + $0x18] sm:$0xff]
        %v633 = vld [vmem:[%s553 + $0x20] sm:$0xff]
        %v634 = vld [vmem:[%s553 + $0x28] sm:$0xff]
        %v635 = vld [vmem:[%s553 + $0x30] sm:$0xff]
        %v636 = vld [vmem:[%s553 + $0x38] sm:$0xff]
        %v637 = vld [vmem:[%s553 + $0x40] sm:$0xff]
        %v638 = vld [vmem:[%s553 + $0x48] sm:$0xff]
        %v639 = vld [vmem:[%s553 + $0x50] sm:$0xff]
        %v640 = vld [vmem:[%s553 + $0x58] sm:$0xff]
        %v641 = vld [vmem:[%s553 + $0x60] sm:$0xff]
        %v642 = vld [vmem:[%s553 + $0x68] sm:$0xff]
        %v643 = vld [vmem:[%s553 + $0x70] sm:$0xff]
        %v644 = vld [vmem:[%s553 + $0x78] sm:$0xff]
        %v645 = vld [vmem:[%s553 + $0x80] sm:$0xff]
        %v646 = vld [vmem:[%s553 + $0x88] sm:$0xff]
        %v647 = vld [vmem:[%s553 + $0x90] sm:$0xff]
        %v648 = vld [vmem:[%s553 + $0x98] sm:$0xff]
        %v649 = vld [vmem:[%s553 + $0xa0] sm:$0xff]
        %v650 = vld [vmem:[%s553 + $0xa8] sm:$0xff]
        %v651 = vld [vmem:[%s553 + $0xb0] sm:$0xff]
        %v652 = vld [vmem:[%s553 + $0xb8] sm:$0xff]
        %v653 = vld [vmem:[%s553 + $0xc0] sm:$0xff]
        %v654 = vld [vmem:[%s553 + $0xc8] sm:$0xff]
        %v655 = vld [vmem:[%s553 + $0xd0] sm:$0xff]
        %v656 = vld [vmem:[%s553 + $0xd8] sm:$0xff]
        %v657 = vld [vmem:[%s553 + $0xe0] sm:$0xff]
        %v658 = vld [vmem:[%s553 + $0xe8] sm:$0xff]
        %v659 = vld [vmem:[%s553 + $0xf0] sm:$0xff]
        %v660 = vld [vmem:[%s553 + $0xf8] sm:$0xff]
        %v661 = vpack.c.bf16 %v630, %v629
        %v662 = vpack.c.bf16 %v632, %v631
        %v663 = vpack.c.bf16 %v634, %v633
        %v664 = vpack.c.bf16 %v636, %v635
        %v665 = vpack.c.bf16 %v638, %v637
        %v666 = vpack.c.bf16 %v640, %v639
        %v667 = vpack.c.bf16 %v642, %v641
        %v668 = vpack.c.bf16 %v644, %v643
        %v669 = vpack.c.bf16 %v646, %v645
        %v670 = vpack.c.bf16 %v648, %v647
        %v671 = vpack.c.bf16 %v650, %v649
        %v672 = vpack.c.bf16 %v652, %v651
        %v673 = vpack.c.bf16 %v654, %v653
        %v674 = vpack.c.bf16 %v656, %v655
        %v675 = vpack.c.bf16 %v658, %v657
        %v676 = vpack.c.bf16 %v660, %v659
        %v677 = vld [vmem:[%s544] sm:$0xff]
        %v678 = vld [vmem:[%s544 + $0x8] sm:$0xff]
        %v679 = vld [vmem:[%s544 + $0x10] sm:$0xff]
        %v680 = vld [vmem:[%s544 + $0x18] sm:$0xff]
        %v681 = vld [vmem:[%s544 + $0x20] sm:$0xff]
        %v682 = vld [vmem:[%s544 + $0x28] sm:$0xff]
        %v683 = vld [vmem:[%s544 + $0x30] sm:$0xff]
        %v684 = vld [vmem:[%s544 + $0x38] sm:$0xff]
        %v685 = vld [vmem:[%s544 + $0x40] sm:$0xff]
        %v686 = vld [vmem:[%s544 + $0x48] sm:$0xff]
        %v687 = vld [vmem:[%s544 + $0x50] sm:$0xff]
        %v688 = vld [vmem:[%s544 + $0x58] sm:$0xff]
        %v689 = vld [vmem:[%s544 + $0x60] sm:$0xff]
        %v690 = vld [vmem:[%s544 + $0x68] sm:$0xff]
        %v691 = vld [vmem:[%s544 + $0x70] sm:$0xff]
        %v692 = vld [vmem:[%s544 + $0x78] sm:$0xff]
        %v693 = vld [vmem:[%s544 + $0x80] sm:$0xff]
        %v694 = vld [vmem:[%s544 + $0x88] sm:$0xff]
        %v695 = vld [vmem:[%s544 + $0x90] sm:$0xff]
        %v696 = vld [vmem:[%s544 + $0x98] sm:$0xff]
        %v697 = vld [vmem:[%s544 + $0xa0] sm:$0xff]
        %v698 = vld [vmem:[%s544 + $0xa8] sm:$0xff]
        %v699 = vld [vmem:[%s544 + $0xb0] sm:$0xff]
        %v700 = vld [vmem:[%s544 + $0xb8] sm:$0xff]
        %v701 = vld [vmem:[%s544 + $0xc0] sm:$0xff]
        %v702 = vld [vmem:[%s544 + $0xc8] sm:$0xff]
        %v703 = vld [vmem:[%s544 + $0xd0] sm:$0xff]
        %v704 = vld [vmem:[%s544 + $0xd8] sm:$0xff]
        %v705 = vld [vmem:[%s544 + $0xe0] sm:$0xff]
        %v706 = vld [vmem:[%s544 + $0xe8] sm:$0xff]
        %v707 = vld [vmem:[%s544 + $0xf0] sm:$0xff]
        %v708 = vld [vmem:[%s544 + $0xf8] sm:$0xff]
        %v709 = vpack.c.bf16 %v678, %v677
        %v710 = vpack.c.bf16 %v680, %v679
        %v711 = vpack.c.bf16 %v682, %v681
        %v712 = vpack.c.bf16 %v684, %v683
        %v713 = vpack.c.bf16 %v686, %v685
        %v714 = vpack.c.bf16 %v688, %v687
        %v715 = vpack.c.bf16 %v690, %v689
        %v716 = vpack.c.bf16 %v692, %v691
        %v717 = vpack.c.bf16 %v694, %v693
        %v718 = vpack.c.bf16 %v696, %v695
        %v719 = vpack.c.bf16 %v698, %v697
        %v720 = vpack.c.bf16 %v700, %v699
        %v721 = vpack.c.bf16 %v702, %v701
        %v722 = vpack.c.bf16 %v704, %v703
        %v723 = vpack.c.bf16 %v706, %v705
        %v724 = vpack.c.bf16 %v708, %v707
        %v725 = vld [vmem:[%s535] sm:$0xff]
        %v726 = vld [vmem:[%s535 + $0x8] sm:$0xff]
        %v727 = vld [vmem:[%s535 + $0x10] sm:$0xff]
        %v728 = vld [vmem:[%s535 + $0x18] sm:$0xff]
        %v729 = vld [vmem:[%s535 + $0x20] sm:$0xff]
        %v730 = vld [vmem:[%s535 + $0x28] sm:$0xff]
        %v731 = vld [vmem:[%s535 + $0x30] sm:$0xff]
        %v732 = vld [vmem:[%s535 + $0x38] sm:$0xff]
        %v733 = vld [vmem:[%s535 + $0x40] sm:$0xff]
        %v734 = vld [vmem:[%s535 + $0x48] sm:$0xff]
        %v735 = vld [vmem:[%s535 + $0x50] sm:$0xff]
        %v736 = vld [vmem:[%s535 + $0x58] sm:$0xff]
        %v737 = vld [vmem:[%s535 + $0x60] sm:$0xff]
        %v738 = vld [vmem:[%s535 + $0x68] sm:$0xff]
        %v739 = vld [vmem:[%s535 + $0x70] sm:$0xff]
        %v740 = vld [vmem:[%s535 + $0x78] sm:$0xff]
        %v741 = vld [vmem:[%s535 + $0x80] sm:$0xff]
        %v742 = vld [vmem:[%s535 + $0x88] sm:$0xff]
        %v743 = vld [vmem:[%s535 + $0x90] sm:$0xff]
        %v744 = vld [vmem:[%s535 + $0x98] sm:$0xff]
        %v745 = vld [vmem:[%s535 + $0xa0] sm:$0xff]
        %v746 = vld [vmem:[%s535 + $0xa8] sm:$0xff]
        %v747 = vld [vmem:[%s535 + $0xb0] sm:$0xff]
        %v748 = vld [vmem:[%s535 + $0xb8] sm:$0xff]
        %v749 = vld [vmem:[%s535 + $0xc0] sm:$0xff]
        %v750 = vld [vmem:[%s535 + $0xc8] sm:$0xff]
        %v751 = vld [vmem:[%s535 + $0xd0] sm:$0xff]
        %v752 = vld [vmem:[%s535 + $0xd8] sm:$0xff]
        %v753 = vld [vmem:[%s535 + $0xe0] sm:$0xff]
        %v754 = vld [vmem:[%s535 + $0xe8] sm:$0xff]
        %v755 = vld [vmem:[%s535 + $0xf0] sm:$0xff]
        %v756 = vld [vmem:[%s535 + $0xf8] sm:$0xff]
        %v757 = vpack.c.bf16 %v726, %v725
        %v758 = vpack.c.bf16 %v728, %v727
        %v759 = vpack.c.bf16 %v730, %v729
        %v760 = vpack.c.bf16 %v732, %v731
        %v761 = vpack.c.bf16 %v734, %v733
        %v762 = vpack.c.bf16 %v736, %v735
        %v763 = vpack.c.bf16 %v738, %v737
        %v764 = vpack.c.bf16 %v740, %v739
        %v765 = vpack.c.bf16 %v742, %v741
        %v766 = vpack.c.bf16 %v744, %v743
        %v767 = vpack.c.bf16 %v746, %v745
        %v768 = vpack.c.bf16 %v748, %v747
        %v769 = vpack.c.bf16 %v750, %v749
        %v770 = vpack.c.bf16 %v752, %v751
        %v771 = vpack.c.bf16 %v754, %v753
        %v772 = vpack.c.bf16 %v756, %v755
        %v773 = vld [vmem:[#allocation8] sm:$0xf]
        %v774 = vld [vmem:[#allocation8 + $0xc] sm:$0xf]
        %v775 = vld [vmem:[#allocation8 + $0x18] sm:$0xf]
        %v776 = vld [vmem:[#allocation8 + $0x24] sm:$0xf]
        %v777 = vld [vmem:[#allocation8 + $0x30] sm:$0xf]
        %v778 = vld [vmem:[#allocation8 + $0x3c] sm:$0xf]
        %v779 = vld [vmem:[#allocation8 + $0x48] sm:$0xf]
        %v780 = vld [vmem:[#allocation8 + $0x54] sm:$0xf]
        %v781 = vld [vmem:[#allocation8 + $0x60] sm:$0xf]
        %v782 = vld [vmem:[#allocation8 + $0x6c] sm:$0xf]
        %v783 = vld [vmem:[#allocation8 + $0x78] sm:$0xf]
        %v784 = vld [vmem:[#allocation8 + $0x84] sm:$0xf]
        %v785 = vld [vmem:[#allocation8 + $0x90] sm:$0xf]
        %v786 = vld [vmem:[#allocation8 + $0x9c] sm:$0xf]
        %v787 = vld [vmem:[#allocation8 + $0xa8] sm:$0xf]
        %v788 = vld [vmem:[#allocation8 + $0xb4] sm:$0xf]
        %v789 = vld [vmem:[#allocation8 + $0x4] sm:$0xf]
        %v790 = vld [vmem:[#allocation8 + $0x10] sm:$0xf]
        %v791 = vld [vmem:[#allocation8 + $0x1c] sm:$0xf]
        %v792 = vld [vmem:[#allocation8 + $0x28] sm:$0xf]
        %v793 = vld [vmem:[#allocation8 + $0x34] sm:$0xf]
        %v794 = vld [vmem:[#allocation8 + $0x40] sm:$0xf]
        %v795 = vld [vmem:[#allocation8 + $0x4c] sm:$0xf]
        %v796 = vld [vmem:[#allocation8 + $0x58] sm:$0xf]
        %v797 = vld [vmem:[#allocation8 + $0x64] sm:$0xf]
        %v798 = vld [vmem:[#allocation8 + $0x70] sm:$0xf]
        %v799 = vld [vmem:[#allocation8 + $0x7c] sm:$0xf]
        %v800 = vld [vmem:[#allocation8 + $0x88] sm:$0xf]
        %v801 = vld [vmem:[#allocation8 + $0x94] sm:$0xf]
        %v802 = vld [vmem:[#allocation8 + $0xa0] sm:$0xf]
        %v803 = vld [vmem:[#allocation8 + $0xac] sm:$0xf]
        %v804 = vld [vmem:[#allocation8 + $0xb8] sm:$0xf]
        %v805 = vld [vmem:[#allocation8 + $0x8] sm:$0xf]
        %v806 = vld [vmem:[#allocation8 + $0x14] sm:$0xf]
        %v807 = vld [vmem:[#allocation8 + $0x20] sm:$0xf]
        %v808 = vld [vmem:[#allocation8 + $0x2c] sm:$0xf]
        %v809 = vld [vmem:[#allocation8 + $0x38] sm:$0xf]
        %v810 = vld [vmem:[#allocation8 + $0x44] sm:$0xf]
        %v811 = vld [vmem:[#allocation8 + $0x50] sm:$0xf]
        %v812 = vld [vmem:[#allocation8 + $0x5c] sm:$0xf]
        %v813 = vld [vmem:[#allocation8 + $0x68] sm:$0xf]
        %v814 = vld [vmem:[#allocation8 + $0x74] sm:$0xf]
        %v815 = vld [vmem:[#allocation8 + $0x80] sm:$0xf]
        %v816 = vld [vmem:[#allocation8 + $0x8c] sm:$0xf]
        %v817 = vld [vmem:[#allocation8 + $0x98] sm:$0xf]
        %v818 = vld [vmem:[#allocation8 + $0xa4] sm:$0xf]
        %v819 = vld [vmem:[#allocation8 + $0xb0] sm:$0xf]
        %v820 = vld [vmem:[#allocation8 + $0xbc] sm:$0xf]
        %v837 = vunpack.c.l.b16 %v773
        %v838 = vunpack.c.l.b16 %v774
        %v839 = vunpack.c.l.b16 %v775
        %v840 = vunpack.c.l.b16 %v776
        %v841 = vunpack.c.l.b16 %v777
        %v842 = vunpack.c.l.b16 %v778
        %v843 = vunpack.c.l.b16 %v779
        %v844 = vunpack.c.l.b16 %v780
        %v845 = vunpack.c.l.b16 %v781
        %v846 = vunpack.c.l.b16 %v782
        %v847 = vunpack.c.l.b16 %v783
        %v848 = vunpack.c.l.b16 %v784
        %v849 = vunpack.c.l.b16 %v785
        %v850 = vunpack.c.l.b16 %v786
        %v851 = vunpack.c.l.b16 %v787
        %v852 = vunpack.c.l.b16 %v788
        %v853 = vpack.c.b16 %v838, %v837
        %v854 = vpack.c.b16 %v840, %v839
        %v855 = vpack.c.b16 %v842, %v841
        %v856 = vpack.c.b16 %v844, %v843
        %v857 = vpack.c.b16 %v846, %v845
        %v858 = vpack.c.b16 %v848, %v847
        %v859 = vpack.c.b16 %v850, %v849
        %v860 = vpack.c.b16 %v852, %v851
        %869 = vmatprep.subr.bf16.mxu0 0
        %870 = vmatpush1.bf16.msra.mxu0 %v853
        %871 = vmatprep.subr.bf16.mxu0 0
        %872 = vmatpush1.bf16.msra.mxu0 %v854
        %873 = vmatprep.subr.bf16.mxu0 0
        %874 = vmatpush1.bf16.msra.mxu0 %v855
        %875 = vmatprep.subr.bf16.mxu0 0
        %876 = vmatpush1.bf16.msra.mxu0 %v856
        %877 = vmatprep.subr.bf16.mxu0 0
        %878 = vmatpush1.bf16.msra.mxu0 %v857
        %879 = vmatprep.subr.bf16.mxu0 0
        %880 = vmatpush1.bf16.msra.mxu0 %v858
        %881 = vmatprep.subr.bf16.mxu0 0
        %882 = vmatpush1.bf16.msra.mxu0 %v859
        %883 = vmatprep.subr.bf16.mxu0 0
        %884 = vmatpush1.bf16.msra.mxu0 %v860
        %885 = vmatprep.subr.bf16.mxu0 0
        %886 = vmatpush1.bf16.msra.mxu0 0
        %887 = vmatprep.subr.bf16.mxu0 0
        %888 = vmatpush1.bf16.msra.mxu0 0
        %889 = vmatprep.subr.bf16.mxu0 0
        %890 = vmatpush1.bf16.msra.mxu0 0
        %891 = vmatprep.subr.bf16.mxu0 0
        %892 = vmatpush1.bf16.msra.mxu0 0
        %893 = vmatprep.subr.bf16.mxu0 0
        %894 = vmatpush1.bf16.msra.mxu0 0
        %895 = vmatprep.subr.bf16.mxu0 0
        %896 = vmatpush1.bf16.msra.mxu0 0
        %897 = vmatprep.subr.bf16.mxu0 0
        %898 = vmatpush1.bf16.msra.mxu0 0
        %899 = vmatprep.subr.bf16.mxu0 0
        %900 = vmatpush1.bf16.msra.mxu0 0
        %901 = vmatprep.mubr.bf16.mxu0 0
        %902 = vmatmul.mubr.bf16.gmra.mrb[0].mxu0 %v661
        %v903 = vpop.f32.mrb[0].mxu0
        %v904 = vadd.f32 0.0, %v903
        %v905 = vpop.f32.mrb[0].mxu0
        %v906 = vpop.f32.mrb[0].mxu0
        %v907 = vadd.f32 0.0, %v906
        %v908 = vpop.f32.mrb[0].mxu0
        %909 = vmatprep.mubr.bf16.mxu0 0
        %910 = vmatmul.mubr.bf16.gmra.mrb[0].mxu0 %v662
        %v911 = vpop.f32.mrb[0].mxu0
        %v912 = vadd.f32 0.0, %v911
        %v913 = vpop.f32.mrb[0].mxu0
        %v914 = vpop.f32.mrb[0].mxu0
        %v915 = vadd.f32 0.0, %v914
        %v916 = vpop.f32.mrb[0].mxu0
        %917 = vmatprep.mubr.bf16.mxu0 0
        %918 = vmatmul.mubr.bf16.gmra.mrb[0].mxu0 %v663
        %v919 = vpop.f32.mrb[0].mxu0
        %v920 = vadd.f32 0.0, %v919
        %v921 = vpop.f32.mrb[0].mxu0
        %v922 = vpop.f32.mrb[0].mxu0
        %v923 = vadd.f32 0.0, %v922
        %v924 = vpop.f32.mrb[0].mxu0
        %925 = vmatprep.mubr.bf16.mxu0 0
        %926 = vmatmul.mubr.bf16.gmra.mrb[0].mxu0 %v664
        %v927 = vpop.f32.mrb[0].mxu0
        %v928 = vadd.f32 0.0, %v927
        %v929 = vpop.f32.mrb[0].mxu0
        %v930 = vpop.f32.mrb[0].mxu0
        %v931 = vadd.f32 0.0, %v930
        %v932 = vpop.f32.mrb[0].mxu0
        %933 = vmatprep.mubr.bf16.mxu0 0
        %934 = vmatmul.mubr.bf16.gmra.mrb[0].mxu0 %v665
        %v935 = vpop.f32.mrb[0].mxu0
        %v936 = vadd.f32 0.0, %v935
        %v937 = vpop.f32.mrb[0].mxu0
        %v938 = vpop.f32.mrb[0].mxu0
        %v939 = vadd.f32 0.0, %v938
        %v940 = vpop.f32.mrb[0].mxu0
        %941 = vmatprep.mubr.bf16.mxu0 0
        %942 = vmatmul.mubr.bf16.gmra.mrb[0].mxu0 %v666
        %v943 = vpop.f32.mrb[0].mxu0
        %v944 = vadd.f32 0.0, %v943
        %v945 = vpop.f32.mrb[0].mxu0
        %v946 = vpop.f32.mrb[0].mxu0
        %v947 = vadd.f32 0.0, %v946
        %v948 = vpop.f32.mrb[0].mxu0
        %949 = vmatprep.mubr.bf16.mxu0 0
        %950 = vmatmul.mubr.bf16.gmra.mrb[0].mxu0 %v667
        %v951 = vpop.f32.mrb[0].mxu0
        %v952 = vadd.f32 0.0, %v951
        %v953 = vpop.f32.mrb[0].mxu0
        %v954 = vpop.f32.mrb[0].mxu0
        %v955 = vadd.f32 0.0, %v954
        %v956 = vpop.f32.mrb[0].mxu0
        %957 = vmatprep.mubr.bf16.mxu0 0
        %958 = vmatmul.mubr.bf16.gmra.mrb[0].mxu0 %v668
        %v959 = vpop.f32.mrb[0].mxu0
        %v960 = vadd.f32 0.0, %v959
        %v961 = vpop.f32.mrb[0].mxu0
        %v962 = vpop.f32.mrb[0].mxu0
        %v963 = vadd.f32 0.0, %v962
        %v964 = vpop.f32.mrb[0].mxu0
        %965 = vmatprep.mubr.bf16.mxu0 0
        %966 = vmatmul.mubr.bf16.gmra.mrb[0].mxu0 %v669
        %v967 = vpop.f32.mrb[0].mxu0
        %v968 = vadd.f32 0.0, %v967
        %v969 = vpop.f32.mrb[0].mxu0
        %v970 = vpop.f32.mrb[0].mxu0
        %v971 = vadd.f32 0.0, %v970
        %v972 = vpop.f32.mrb[0].mxu0
        %973 = vmatprep.mubr.bf16.mxu0 0
        %974 = vmatmul.mubr.bf16.gmra.mrb[0].mxu0 %v670
        %v975 = vpop.f32.mrb[0].mxu0
        %v976 = vadd.f32 0.0, %v975
        %v977 = vpop.f32.mrb[0].mxu0
        %v978 = vpop.f32.mrb[0].mxu0
        %v979 = vadd.f32 0.0, %v978
        %v980 = vpop.f32.mrb[0].mxu0
        %981 = vmatprep.mubr.bf16.mxu0 0
        %982 = vmatmul.mubr.bf16.gmra.mrb[0].mxu0 %v671
        %v983 = vpop.f32.mrb[0].mxu0
        %v984 = vadd.f32 0.0, %v983
        %v985 = vpop.f32.mrb[0].mxu0
        %v986 = vpop.f32.mrb[0].mxu0
        %v987 = vadd.f32 0.0, %v986
        %v988 = vpop.f32.mrb[0].mxu0
        %989 = vmatprep.mubr.bf16.mxu0 0
        %990 = vmatmul.mubr.bf16.gmra.mrb[0].mxu0 %v672
        %v991 = vpop.f32.mrb[0].mxu0
        %v992 = vadd.f32 0.0, %v991
        %v993 = vpop.f32.mrb[0].mxu0
        %v994 = vpop.f32.mrb[0].mxu0
        %v995 = vadd.f32 0.0, %v994
        %v996 = vpop.f32.mrb[0].mxu0
        %997 = vmatprep.mubr.bf16.mxu0 0
        %998 = vmatmul.mubr.bf16.gmra.mrb[0].mxu0 %v673
        %v999 = vpop.f32.mrb[0].mxu0
        %v1000 = vadd.f32 0.0, %v999
        %v1001 = vpop.f32.mrb[0].mxu0
        %v1002 = vpop.f32.mrb[0].mxu0
        %v1003 = vadd.f32 0.0, %v1002
        %v1004 = vpop.f32.mrb[0].mxu0
        %1005 = vmatprep.mubr.bf16.mxu0 0
        %1006 = vmatmul.mubr.bf16.gmra.mrb[0].mxu0 %v674
        %v1007 = vpop.f32.mrb[0].mxu0
        %v1008 = vadd.f32 0.0, %v1007
        %v1009 = vpop.f32.mrb[0].mxu0
        %v1010 = vpop.f32.mrb[0].mxu0
        %v1011 = vadd.f32 0.0, %v1010
        %v1012 = vpop.f32.mrb[0].mxu0
        %1013 = vmatprep.mubr.bf16.mxu0 0
        %1014 = vmatmul.mubr.bf16.gmra.mrb[0].mxu0 %v675
        %v1015 = vpop.f32.mrb[0].mxu0
        %v1016 = vadd.f32 0.0, %v1015
        %v1017 = vpop.f32.mrb[0].mxu0
        %v1018 = vpop.f32.mrb[0].mxu0
        %v1019 = vadd.f32 0.0, %v1018
        %v1020 = vpop.f32.mrb[0].mxu0
        %1021 = vmatprep.mubr.bf16.mxu0 0
        %1022 = vmatmul.mubr.bf16.gmra.mrb[0].mxu0 %v676
        %v1023 = vpop.f32.mrb[0].mxu0
        %v1024 = vadd.f32 0.0, %v1023
        %v1025 = vpop.f32.mrb[0].mxu0
        %v1026 = vpop.f32.mrb[0].mxu0
        %v1027 = vadd.f32 0.0, %v1026
        %v1028 = vpop.f32.mrb[0].mxu0
        %1029 = vdwg.mxu0
        %v1030 = vpack.c.bf16 %v907, %v904
        %v1031 = vpack.c.bf16 %v915, %v912
        %v1032 = vpack.c.bf16 %v923, %v920
        %v1033 = vpack.c.bf16 %v931, %v928
        %v1034 = vpack.c.bf16 %v939, %v936
        %v1035 = vpack.c.bf16 %v947, %v944
        %v1036 = vpack.c.bf16 %v955, %v952
        %v1037 = vpack.c.bf16 %v963, %v960
        %v1038 = vpack.c.bf16 %v971, %v968
        %v1039 = vpack.c.bf16 %v979, %v976
        %v1040 = vpack.c.bf16 %v987, %v984
        %v1041 = vpack.c.bf16 %v995, %v992
        %v1042 = vpack.c.bf16 %v1003, %v1000
        %v1043 = vpack.c.bf16 %v1011, %v1008
        %v1044 = vpack.c.bf16 %v1019, %v1016
        %v1045 = vpack.c.bf16 %v1027, %v1024
        %v1062 = vunpack.c.l.b16 %v789
        %v1063 = vunpack.c.l.b16 %v790
        %v1064 = vunpack.c.l.b16 %v791
        %v1065 = vunpack.c.l.b16 %v792
        %v1066 = vunpack.c.l.b16 %v793
        %v1067 = vunpack.c.l.b16 %v794
        %v1068 = vunpack.c.l.b16 %v795
        %v1069 = vunpack.c.l.b16 %v796
        %v1070 = vunpack.c.l.b16 %v797
        %v1071 = vunpack.c.l.b16 %v798
        %v1072 = vunpack.c.l.b16 %v799
        %v1073 = vunpack.c.l.b16 %v800
        %v1074 = vunpack.c.l.b16 %v801
        %v1075 = vunpack.c.l.b16 %v802
        %v1076 = vunpack.c.l.b16 %v803
        %v1077 = vunpack.c.l.b16 %v804
        %v1078 = vpack.c.b16 %v1063, %v1062
        %v1079 = vpack.c.b16 %v1065, %v1064
        %v1080 = vpack.c.b16 %v1067, %v1066
        %v1081 = vpack.c.b16 %v1069, %v1068
        %v1082 = vpack.c.b16 %v1071, %v1070
        %v1083 = vpack.c.b16 %v1073, %v1072
        %v1084 = vpack.c.b16 %v1075, %v1074
        %v1085 = vpack.c.b16 %v1077, %v1076
        %1094 = vmatprep.subr.bf16.mxu0 0
        %1095 = vmatpush1.bf16.msra.mxu0 %v1078
        %1096 = vmatprep.subr.bf16.mxu0 0
        %1097 = vmatpush1.bf16.msra.mxu0 %v1079
        %1098 = vmatprep.subr.bf16.mxu0 0
        %1099 = vmatpush1.bf16.msra.mxu0 %v1080
        %1100 = vmatprep.subr.bf16.mxu0 0
        %1101 = vmatpush1.bf16.msra.mxu0 %v1081
        %1102 = vmatprep.subr.bf16.mxu0 0
        %1103 = vmatpush1.bf16.msra.mxu0 %v1082
        %1104 = vmatprep.subr.bf16.mxu0 0
        %1105 = vmatpush1.bf16.msra.mxu0 %v1083
        %1106 = vmatprep.subr.bf16.mxu0 0
        %1107 = vmatpush1.bf16.msra.mxu0 %v1084
        %1108 = vmatprep.subr.bf16.mxu0 0
        %1109 = vmatpush1.bf16.msra.mxu0 %v1085
        %1110 = vmatprep.subr.bf16.mxu0 0
        %1111 = vmatpush1.bf16.msra.mxu0 0
        %1112 = vmatprep.subr.bf16.mxu0 0
        %1113 = vmatpush1.bf16.msra.mxu0 0
        %1114 = vmatprep.subr.bf16.mxu0 0
        %1115 = vmatpush1.bf16.msra.mxu0 0
        %1116 = vmatprep.subr.bf16.mxu0 0
        %1117 = vmatpush1.bf16.msra.mxu0 0
        %1118 = vmatprep.subr.bf16.mxu0 0
        %1119 = vmatpush1.bf16.msra.mxu0 0
        %1120 = vmatprep.subr.bf16.mxu0 0
        %1121 = vmatpush1.bf16.msra.mxu0 0
        %1122 = vmatprep.subr.bf16.mxu0 0
        %1123 = vmatpush1.bf16.msra.mxu0 0
        %1124 = vmatprep.subr.bf16.mxu0 0
        %1125 = vmatpush1.bf16.msra.mxu0 0
        %1126 = vmatprep.mubr.bf16.mxu0 0
        %1127 = vmatmul.mubr.bf16.gmra.mrb[0].mxu0 %v709
        %v1128 = vpop.f32.mrb[0].mxu0
        %v1129 = vadd.f32 0.0, %v1128
        %v1130 = vpop.f32.mrb[0].mxu0
        %v1131 = vpop.f32.mrb[0].mxu0
        %v1132 = vadd.f32 0.0, %v1131
        %v1133 = vpop.f32.mrb[0].mxu0
        %1134 = vmatprep.mubr.bf16.mxu0 0
        %1135 = vmatmul.mubr.bf16.gmra.mrb[0].mxu0 %v710
        %v1136 = vpop.f32.mrb[0].mxu0
        %v1137 = vadd.f32 0.0, %v1136
        %v1138 = vpop.f32.mrb[0].mxu0
        %v1139 = vpop.f32.mrb[0].mxu0
        %v1140 = vadd.f32 0.0, %v1139
        %v1141 = vpop.f32.mrb[0].mxu0
        %1142 = vmatprep.mubr.bf16.mxu0 0
        %1143 = vmatmul.mubr.bf16.gmra.mrb[0].mxu0 %v711
        %v1144 = vpop.f32.mrb[0].mxu0
        %v1145 = vadd.f32 0.0, %v1144
        %v1146 = vpop.f32.mrb[0].mxu0
        %v1147 = vpop.f32.mrb[0].mxu0
        %v1148 = vadd.f32 0.0, %v1147
        %v1149 = vpop.f32.mrb[0].mxu0
        %1150 = vmatprep.mubr.bf16.mxu0 0
        %1151 = vmatmul.mubr.bf16.gmra.mrb[0].mxu0 %v712
        %v1152 = vpop.f32.mrb[0].mxu0
        %v1153 = vadd.f32 0.0, %v1152
        %v1154 = vpop.f32.mrb[0].mxu0
        %v1155 = vpop.f32.mrb[0].mxu0
        %v1156 = vadd.f32 0.0, %v1155
        %v1157 = vpop.f32.mrb[0].mxu0
        %1158 = vmatprep.mubr.bf16.mxu0 0
        %1159 = vmatmul.mubr.bf16.gmra.mrb[0].mxu0 %v713
        %v1160 = vpop.f32.mrb[0].mxu0
        %v1161 = vadd.f32 0.0, %v1160
        %v1162 = vpop.f32.mrb[0].mxu0
        %v1163 = vpop.f32.mrb[0].mxu0
        %v1164 = vadd.f32 0.0, %v1163
        %v1165 = vpop.f32.mrb[0].mxu0
        %1166 = vmatprep.mubr.bf16.mxu0 0
        %1167 = vmatmul.mubr.bf16.gmra.mrb[0].mxu0 %v714
        %v1168 = vpop.f32.mrb[0].mxu0
        %v1169 = vadd.f32 0.0, %v1168
        %v1170 = vpop.f32.mrb[0].mxu0
        %v1171 = vpop.f32.mrb[0].mxu0
        %v1172 = vadd.f32 0.0, %v1171
        %v1173 = vpop.f32.mrb[0].mxu0
        %1174 = vmatprep.mubr.bf16.mxu0 0
        %1175 = vmatmul.mubr.bf16.gmra.mrb[0].mxu0 %v715
        %v1176 = vpop.f32.mrb[0].mxu0
        %v1177 = vadd.f32 0.0, %v1176
        %v1178 = vpop.f32.mrb[0].mxu0
        %v1179 = vpop.f32.mrb[0].mxu0
        %v1180 = vadd.f32 0.0, %v1179
        %v1181 = vpop.f32.mrb[0].mxu0
        %1182 = vmatprep.mubr.bf16.mxu0 0
        %1183 = vmatmul.mubr.bf16.gmra.mrb[0].mxu0 %v716
        %v1184 = vpop.f32.mrb[0].mxu0
        %v1185 = vadd.f32 0.0, %v1184
        %v1186 = vpop.f32.mrb[0].mxu0
        %v1187 = vpop.f32.mrb[0].mxu0
        %v1188 = vadd.f32 0.0, %v1187
        %v1189 = vpop.f32.mrb[0].mxu0
        %1190 = vmatprep.mubr.bf16.mxu0 0
        %1191 = vmatmul.mubr.bf16.gmra.mrb[0].mxu0 %v717
        %v1192 = vpop.f32.mrb[0].mxu0
        %v1193 = vadd.f32 0.0, %v1192
        %v1194 = vpop.f32.mrb[0].mxu0
        %v1195 = vpop.f32.mrb[0].mxu0
        %v1196 = vadd.f32 0.0, %v1195
        %v1197 = vpop.f32.mrb[0].mxu0
        %1198 = vmatprep.mubr.bf16.mxu0 0
        %1199 = vmatmul.mubr.bf16.gmra.mrb[0].mxu0 %v718
        %v1200 = vpop.f32.mrb[0].mxu0
        %v1201 = vadd.f32 0.0, %v1200
        %v1202 = vpop.f32.mrb[0].mxu0
        %v1203 = vpop.f32.mrb[0].mxu0
        %v1204 = vadd.f32 0.0, %v1203
        %v1205 = vpop.f32.mrb[0].mxu0
        %1206 = vmatprep.mubr.bf16.mxu0 0
        %1207 = vmatmul.mubr.bf16.gmra.mrb[0].mxu0 %v719
        %v1208 = vpop.f32.mrb[0].mxu0
        %v1209 = vadd.f32 0.0, %v1208
        %v1210 = vpop.f32.mrb[0].mxu0
        %v1211 = vpop.f32.mrb[0].mxu0
        %v1212 = vadd.f32 0.0, %v1211
        %v1213 = vpop.f32.mrb[0].mxu0
        %1214 = vmatprep.mubr.bf16.mxu0 0
        %1215 = vmatmul.mubr.bf16.gmra.mrb[0].mxu0 %v720
        %v1216 = vpop.f32.mrb[0].mxu0
        %v1217 = vadd.f32 0.0, %v1216
        %v1218 = vpop.f32.mrb[0].mxu0
        %v1219 = vpop.f32.mrb[0].mxu0
        %v1220 = vadd.f32 0.0, %v1219
        %v1221 = vpop.f32.mrb[0].mxu0
        %1222 = vmatprep.mubr.bf16.mxu0 0
        %1223 = vmatmul.mubr.bf16.gmra.mrb[0].mxu0 %v721
        %v1224 = vpop.f32.mrb[0].mxu0
        %v1225 = vadd.f32 0.0, %v1224
        %v1226 = vpop.f32.mrb[0].mxu0
        %v1227 = vpop.f32.mrb[0].mxu0
        %v1228 = vadd.f32 0.0, %v1227
        %v1229 = vpop.f32.mrb[0].mxu0
        %1230 = vmatprep.mubr.bf16.mxu0 0
        %1231 = vmatmul.mubr.bf16.gmra.mrb[0].mxu0 %v722
        %v1232 = vpop.f32.mrb[0].mxu0
        %v1233 = vadd.f32 0.0, %v1232
        %v1234 = vpop.f32.mrb[0].mxu0
        %v1235 = vpop.f32.mrb[0].mxu0
        %v1236 = vadd.f32 0.0, %v1235
        %v1237 = vpop.f32.mrb[0].mxu0
        %1238 = vmatprep.mubr.bf16.mxu0 0
        %1239 = vmatmul.mubr.bf16.gmra.mrb[0].mxu0 %v723
        %v1240 = vpop.f32.mrb[0].mxu0
        %v1241 = vadd.f32 0.0, %v1240
        %v1242 = vpop.f32.mrb[0].mxu0
        %v1243 = vpop.f32.mrb[0].mxu0
        %v1244 = vadd.f32 0.0, %v1243
        %v1245 = vpop.f32.mrb[0].mxu0
        %1246 = vmatprep.mubr.bf16.mxu0 0
        %1247 = vmatmul.mubr.bf16.gmra.mrb[0].mxu0 %v724
        %v1248 = vpop.f32.mrb[0].mxu0
        %v1249 = vadd.f32 0.0, %v1248
        %v1250 = vpop.f32.mrb[0].mxu0
        %v1251 = vpop.f32.mrb[0].mxu0
        %v1252 = vadd.f32 0.0, %v1251
        %v1253 = vpop.f32.mrb[0].mxu0
        %1254 = vdwg.mxu0
        %v1255 = vpack.c.bf16 %v1132, %v1129
        %v1256 = vpack.c.bf16 %v1140, %v1137
        %v1257 = vpack.c.bf16 %v1148, %v1145
        %v1258 = vpack.c.bf16 %v1156, %v1153
        %v1259 = vpack.c.bf16 %v1164, %v1161
        %v1260 = vpack.c.bf16 %v1172, %v1169
        %v1261 = vpack.c.bf16 %v1180, %v1177
        %v1262 = vpack.c.bf16 %v1188, %v1185
        %v1263 = vpack.c.bf16 %v1196, %v1193
        %v1264 = vpack.c.bf16 %v1204, %v1201
        %v1265 = vpack.c.bf16 %v1212, %v1209
        %v1266 = vpack.c.bf16 %v1220, %v1217
        %v1267 = vpack.c.bf16 %v1228, %v1225
        %v1268 = vpack.c.bf16 %v1236, %v1233
        %v1269 = vpack.c.bf16 %v1244, %v1241
        %v1270 = vpack.c.bf16 %v1252, %v1249
        %v1287 = vunpack.c.l.b16 %v805
        %v1288 = vunpack.c.l.b16 %v806
        %v1289 = vunpack.c.l.b16 %v807
        %v1290 = vunpack.c.l.b16 %v808
        %v1291 = vunpack.c.l.b16 %v809
        %v1292 = vunpack.c.l.b16 %v810
        %v1293 = vunpack.c.l.b16 %v811
        %v1294 = vunpack.c.l.b16 %v812
        %v1295 = vunpack.c.l.b16 %v813
        %v1296 = vunpack.c.l.b16 %v814
        %v1297 = vunpack.c.l.b16 %v815
        %v1298 = vunpack.c.l.b16 %v816
        %v1299 = vunpack.c.l.b16 %v817
        %v1300 = vunpack.c.l.b16 %v818
        %v1301 = vunpack.c.l.b16 %v819
        %v1302 = vunpack.c.l.b16 %v820
        %v1303 = vpack.c.b16 %v1288, %v1287
        %v1304 = vpack.c.b16 %v1290, %v1289
        %v1305 = vpack.c.b16 %v1292, %v1291
        %v1306 = vpack.c.b16 %v1294, %v1293
        %v1307 = vpack.c.b16 %v1296, %v1295
        %v1308 = vpack.c.b16 %v1298, %v1297
        %v1309 = vpack.c.b16 %v1300, %v1299
        %v1310 = vpack.c.b16 %v1302, %v1301
        %1319 = vmatprep.subr.bf16.mxu0 0
        %1320 = vmatpush1.bf16.msra.mxu0 %v1303
        %1321 = vmatprep.subr.bf16.mxu0 0
        %1322 = vmatpush1.bf16.msra.mxu0 %v1304
        %1323 = vmatprep.subr.bf16.mxu0 0
        %1324 = vmatpush1.bf16.msra.mxu0 %v1305
        %1325 = vmatprep.subr.bf16.mxu0 0
        %1326 = vmatpush1.bf16.msra.mxu0 %v1306
        %1327 = vmatprep.subr.bf16.mxu0 0
        %1328 = vmatpush1.bf16.msra.mxu0 %v1307
        %1329 = vmatprep.subr.bf16.mxu0 0
        %1330 = vmatpush1.bf16.msra.mxu0 %v1308
        %1331 = vmatprep.subr.bf16.mxu0 0
        %1332 = vmatpush1.bf16.msra.mxu0 %v1309
        %1333 = vmatprep.subr.bf16.mxu0 0
        %1334 = vmatpush1.bf16.msra.mxu0 %v1310
        %1335 = vmatprep.subr.bf16.mxu0 0
        %1336 = vmatpush1.bf16.msra.mxu0 0
        %1337 = vmatprep.subr.bf16.mxu0 0
        %1338 = vmatpush1.bf16.msra.mxu0 0
        %1339 = vmatprep.subr.bf16.mxu0 0
        %1340 = vmatpush1.bf16.msra.mxu0 0
        %1341 = vmatprep.subr.bf16.mxu0 0
        %1342 = vmatpush1.bf16.msra.mxu0 0
        %1343 = vmatprep.subr.bf16.mxu0 0
        %1344 = vmatpush1.bf16.msra.mxu0 0
        %1345 = vmatprep.subr.bf16.mxu0 0
        %1346 = vmatpush1.bf16.msra.mxu0 0
        %1347 = vmatprep.subr.bf16.mxu0 0
        %1348 = vmatpush1.bf16.msra.mxu0 0
        %1349 = vmatprep.subr.bf16.mxu0 0
        %1350 = vmatpush1.bf16.msra.mxu0 0
        %1351 = vmatprep.mubr.bf16.mxu0 0
        %1352 = vmatmul.mubr.bf16.gmra.mrb[0].mxu0 %v757
        %v1353 = vpop.f32.mrb[0].mxu0
        %v1354 = vadd.f32 0.0, %v1353
        %v1355 = vpop.f32.mrb[0].mxu0
        %v1356 = vpop.f32.mrb[0].mxu0
        %v1357 = vadd.f32 0.0, %v1356
        %v1358 = vpop.f32.mrb[0].mxu0
        %1359 = vmatprep.mubr.bf16.mxu0 0
        %1360 = vmatmul.mubr.bf16.gmra.mrb[0].mxu0 %v758
        %v1361 = vpop.f32.mrb[0].mxu0
        %v1362 = vadd.f32 0.0, %v1361
        %v1363 = vpop.f32.mrb[0].mxu0
        %v1364 = vpop.f32.mrb[0].mxu0
        %v1365 = vadd.f32 0.0, %v1364
        %v1366 = vpop.f32.mrb[0].mxu0
        %1367 = vmatprep.mubr.bf16.mxu0 0
        %1368 = vmatmul.mubr.bf16.gmra.mrb[0].mxu0 %v759
        %v1369 = vpop.f32.mrb[0].mxu0
        %v1370 = vadd.f32 0.0, %v1369
        %v1371 = vpop.f32.mrb[0].mxu0
        %v1372 = vpop.f32.mrb[0].mxu0
        %v1373 = vadd.f32 0.0, %v1372
        %v1374 = vpop.f32.mrb[0].mxu0
        %1375 = vmatprep.mubr.bf16.mxu0 0
        %1376 = vmatmul.mubr.bf16.gmra.mrb[0].mxu0 %v760
        %v1377 = vpop.f32.mrb[0].mxu0
        %v1378 = vadd.f32 0.0, %v1377
        %v1379 = vpop.f32.mrb[0].mxu0
        %v1380 = vpop.f32.mrb[0].mxu0
        %v1381 = vadd.f32 0.0, %v1380
        %v1382 = vpop.f32.mrb[0].mxu0
        %1383 = vmatprep.mubr.bf16.mxu0 0
        %1384 = vmatmul.mubr.bf16.gmra.mrb[0].mxu0 %v761
        %v1385 = vpop.f32.mrb[0].mxu0
        %v1386 = vadd.f32 0.0, %v1385
        %v1387 = vpop.f32.mrb[0].mxu0
        %v1388 = vpop.f32.mrb[0].mxu0
        %v1389 = vadd.f32 0.0, %v1388
        %v1390 = vpop.f32.mrb[0].mxu0
        %1391 = vmatprep.mubr.bf16.mxu0 0
        %1392 = vmatmul.mubr.bf16.gmra.mrb[0].mxu0 %v762
        %v1393 = vpop.f32.mrb[0].mxu0
        %v1394 = vadd.f32 0.0, %v1393
        %v1395 = vpop.f32.mrb[0].mxu0
        %v1396 = vpop.f32.mrb[0].mxu0
        %v1397 = vadd.f32 0.0, %v1396
        %v1398 = vpop.f32.mrb[0].mxu0
        %1399 = vmatprep.mubr.bf16.mxu0 0
        %1400 = vmatmul.mubr.bf16.gmra.mrb[0].mxu0 %v763
        %v1401 = vpop.f32.mrb[0].mxu0
        %v1402 = vadd.f32 0.0, %v1401
        %v1403 = vpop.f32.mrb[0].mxu0
        %v1404 = vpop.f32.mrb[0].mxu0
        %v1405 = vadd.f32 0.0, %v1404
        %v1406 = vpop.f32.mrb[0].mxu0
        %1407 = vmatprep.mubr.bf16.mxu0 0
        %1408 = vmatmul.mubr.bf16.gmra.mrb[0].mxu0 %v764
        %v1409 = vpop.f32.mrb[0].mxu0
        %v1410 = vadd.f32 0.0, %v1409
        %v1411 = vpop.f32.mrb[0].mxu0
        %v1412 = vpop.f32.mrb[0].mxu0
        %v1413 = vadd.f32 0.0, %v1412
        %v1414 = vpop.f32.mrb[0].mxu0
        %1415 = vmatprep.mubr.bf16.mxu0 0
        %1416 = vmatmul.mubr.bf16.gmra.mrb[0].mxu0 %v765
        %v1417 = vpop.f32.mrb[0].mxu0
        %v1418 = vadd.f32 0.0, %v1417
        %v1419 = vpop.f32.mrb[0].mxu0
        %v1420 = vpop.f32.mrb[0].mxu0
        %v1421 = vadd.f32 0.0, %v1420
        %v1422 = vpop.f32.mrb[0].mxu0
        %1423 = vmatprep.mubr.bf16.mxu0 0
        %1424 = vmatmul.mubr.bf16.gmra.mrb[0].mxu0 %v766
        %v1425 = vpop.f32.mrb[0].mxu0
        %v1426 = vadd.f32 0.0, %v1425
        %v1427 = vpop.f32.mrb[0].mxu0
        %v1428 = vpop.f32.mrb[0].mxu0
        %v1429 = vadd.f32 0.0, %v1428
        %v1430 = vpop.f32.mrb[0].mxu0
        %1431 = vmatprep.mubr.bf16.mxu0 0
        %1432 = vmatmul.mubr.bf16.gmra.mrb[0].mxu0 %v767
        %v1433 = vpop.f32.mrb[0].mxu0
        %v1434 = vadd.f32 0.0, %v1433
        %v1435 = vpop.f32.mrb[0].mxu0
        %v1436 = vpop.f32.mrb[0].mxu0
        %v1437 = vadd.f32 0.0, %v1436
        %v1438 = vpop.f32.mrb[0].mxu0
        %1439 = vmatprep.mubr.bf16.mxu0 0
        %1440 = vmatmul.mubr.bf16.gmra.mrb[0].mxu0 %v768
        %v1441 = vpop.f32.mrb[0].mxu0
        %v1442 = vadd.f32 0.0, %v1441
        %v1443 = vpop.f32.mrb[0].mxu0
        %v1444 = vpop.f32.mrb[0].mxu0
        %v1445 = vadd.f32 0.0, %v1444
        %v1446 = vpop.f32.mrb[0].mxu0
        %1447 = vmatprep.mubr.bf16.mxu0 0
        %1448 = vmatmul.mubr.bf16.gmra.mrb[0].mxu0 %v769
        %v1449 = vpop.f32.mrb[0].mxu0
        %v1450 = vadd.f32 0.0, %v1449
        %v1451 = vpop.f32.mrb[0].mxu0
        %v1452 = vpop.f32.mrb[0].mxu0
        %v1453 = vadd.f32 0.0, %v1452
        %v1454 = vpop.f32.mrb[0].mxu0
        %1455 = vmatprep.mubr.bf16.mxu0 0
        %1456 = vmatmul.mubr.bf16.gmra.mrb[0].mxu0 %v770
        %v1457 = vpop.f32.mrb[0].mxu0
        %v1458 = vadd.f32 0.0, %v1457
        %v1459 = vpop.f32.mrb[0].mxu0
        %v1460 = vpop.f32.mrb[0].mxu0
        %v1461 = vadd.f32 0.0, %v1460
        %v1462 = vpop.f32.mrb[0].mxu0
        %1463 = vmatprep.mubr.bf16.mxu0 0
        %1464 = vmatmul.mubr.bf16.gmra.mrb[0].mxu0 %v771
        %v1465 = vpop.f32.mrb[0].mxu0
        %v1466 = vadd.f32 0.0, %v1465
        %v1467 = vpop.f32.mrb[0].mxu0
        %v1468 = vpop.f32.mrb[0].mxu0
        %v1469 = vadd.f32 0.0, %v1468
        %v1470 = vpop.f32.mrb[0].mxu0
        %1471 = vmatprep.mubr.bf16.mxu0 0
        %1472 = vmatmul.mubr.bf16.gmra.mrb[0].mxu0 %v772
        %v1473 = vpop.f32.mrb[0].mxu0
        %v1474 = vadd.f32 0.0, %v1473
        %v1475 = vpop.f32.mrb[0].mxu0
        %v1476 = vpop.f32.mrb[0].mxu0
        %v1477 = vadd.f32 0.0, %v1476
        %v1478 = vpop.f32.mrb[0].mxu0
        %1479 = vdwg.mxu0
        %v1480 = vpack.c.bf16 %v1357, %v1354
        %v1481 = vpack.c.bf16 %v1365, %v1362
        %v1482 = vpack.c.bf16 %v1373, %v1370
        %v1483 = vpack.c.bf16 %v1381, %v1378
        %v1484 = vpack.c.bf16 %v1389, %v1386
        %v1485 = vpack.c.bf16 %v1397, %v1394
        %v1486 = vpack.c.bf16 %v1405, %v1402
        %v1487 = vpack.c.bf16 %v1413, %v1410
        %v1488 = vpack.c.bf16 %v1421, %v1418
        %v1489 = vpack.c.bf16 %v1429, %v1426
        %v1490 = vpack.c.bf16 %v1437, %v1434
        %v1491 = vpack.c.bf16 %v1445, %v1442
        %v1492 = vpack.c.bf16 %v1453, %v1450
        %v1493 = vpack.c.bf16 %v1461, %v1458
        %v1494 = vpack.c.bf16 %v1469, %v1466
        %v1495 = vpack.c.bf16 %v1477, %v1474
        %1496 = vmatprep.subr.bf16.mxu0 0
        %1497 = vmatpush1.bf16.xpose.msra.mxu0 %v1255
        %1498 = vmatprep.subr.bf16.mxu0 0
        %1499 = vmatpush1.bf16.xpose.msra.mxu0 %v1256
        %1500 = vmatprep.subr.bf16.mxu0 0
        %1501 = vmatpush1.bf16.xpose.msra.mxu0 %v1257
        %1502 = vmatprep.subr.bf16.mxu0 0
        %1503 = vmatpush1.bf16.xpose.msra.mxu0 %v1258
        %1504 = vmatprep.subr.bf16.mxu0 0
        %1505 = vmatpush1.bf16.xpose.msra.mxu0 %v1259
        %1506 = vmatprep.subr.bf16.mxu0 0
        %1507 = vmatpush1.bf16.xpose.msra.mxu0 %v1260
        %1508 = vmatprep.subr.bf16.mxu0 0
        %1509 = vmatpush1.bf16.xpose.msra.mxu0 %v1261
        %1510 = vmatprep.subr.bf16.mxu0 0
        %1511 = vmatpush1.bf16.xpose.msra.mxu0 %v1262
        %1512 = vmatprep.subr.bf16.mxu0 0
        %1513 = vmatpush1.bf16.xpose.msra.mxu0 0
        %1514 = vmatprep.subr.bf16.mxu0 0
        %1515 = vmatpush1.bf16.xpose.msra.mxu0 0
        %1516 = vmatprep.subr.bf16.mxu0 0
        %1517 = vmatpush1.bf16.xpose.msra.mxu0 0
        %1518 = vmatprep.subr.bf16.mxu0 0
        %1519 = vmatpush1.bf16.xpose.msra.mxu0 0
        %1520 = vmatprep.subr.bf16.mxu0 0
        %1521 = vmatpush1.bf16.xpose.msra.mxu0 0
        %1522 = vmatprep.subr.bf16.mxu0 0
        %1523 = vmatpush1.bf16.xpose.msra.mxu0 0
        %1524 = vmatprep.subr.bf16.mxu0 0
        %1525 = vmatpush1.bf16.xpose.msra.mxu0 0
        %1526 = vmatprep.subr.bf16.mxu0 0
        %1527 = vmatpush1.bf16.xpose.msra.mxu0 0
        %1528 = vmatprep.mubr.bf16.mxu0 0
        %1529 = vmatmul.mubr.bf16.gmra.mrb[0].mxu0 %v1030
        %v1530 = vpop.f32.mrb[0].mxu0
        %v1531 = vadd.f32 0.0, %v1530
        %v1532 = vpop.f32.mrb[0].mxu0
        %v1533 = vpop.f32.mrb[0].mxu0
        %v1534 = vadd.f32 0.0, %v1533
        %v1535 = vpop.f32.mrb[0].mxu0
        %1536 = vmatprep.mubr.bf16.mxu0 0
        %1537 = vmatmul.mubr.bf16.gmra.mrb[0].mxu0 %v1031
        %v1538 = vpop.f32.mrb[0].mxu0
        %v1539 = vadd.f32 0.0, %v1538
        %v1540 = vpop.f32.mrb[0].mxu0
        %v1541 = vpop.f32.mrb[0].mxu0
        %v1542 = vadd.f32 0.0, %v1541
        %v1543 = vpop.f32.mrb[0].mxu0
        %1544 = vmatprep.mubr.bf16.mxu0 0
        %1545 = vmatmul.mubr.bf16.gmra.mrb[0].mxu0 %v1032
        %v1546 = vpop.f32.mrb[0].mxu0
        %v1547 = vadd.f32 0.0, %v1546
        %v1548 = vpop.f32.mrb[0].mxu0
        %v1549 = vpop.f32.mrb[0].mxu0
        %v1550 = vadd.f32 0.0, %v1549
        %v1551 = vpop.f32.mrb[0].mxu0
        %1552 = vmatprep.mubr.bf16.mxu0 0
        %1553 = vmatmul.mubr.bf16.gmra.mrb[0].mxu0 %v1033
        %v1554 = vpop.f32.mrb[0].mxu0
        %v1555 = vadd.f32 0.0, %v1554
        %v1556 = vpop.f32.mrb[0].mxu0
        %v1557 = vpop.f32.mrb[0].mxu0
        %v1558 = vadd.f32 0.0, %v1557
        %v1559 = vpop.f32.mrb[0].mxu0
        %1560 = vmatprep.mubr.bf16.mxu0 0
        %1561 = vmatmul.mubr.bf16.gmra.mrb[0].mxu0 %v1034
        %v1562 = vpop.f32.mrb[0].mxu0
        %v1563 = vadd.f32 0.0, %v1562
        %v1564 = vpop.f32.mrb[0].mxu0
        %v1565 = vpop.f32.mrb[0].mxu0
        %v1566 = vadd.f32 0.0, %v1565
        %v1567 = vpop.f32.mrb[0].mxu0
        %1568 = vmatprep.mubr.bf16.mxu0 0
        %1569 = vmatmul.mubr.bf16.gmra.mrb[0].mxu0 %v1035
        %v1570 = vpop.f32.mrb[0].mxu0
        %v1571 = vadd.f32 0.0, %v1570
        %v1572 = vpop.f32.mrb[0].mxu0
        %v1573 = vpop.f32.mrb[0].mxu0
        %v1574 = vadd.f32 0.0, %v1573
        %v1575 = vpop.f32.mrb[0].mxu0
        %1576 = vmatprep.mubr.bf16.mxu0 0
        %1577 = vmatmul.mubr.bf16.gmra.mrb[0].mxu0 %v1036
        %v1578 = vpop.f32.mrb[0].mxu0
        %v1579 = vadd.f32 0.0, %v1578
        %v1580 = vpop.f32.mrb[0].mxu0
        %v1581 = vpop.f32.mrb[0].mxu0
        %v1582 = vadd.f32 0.0, %v1581
        %v1583 = vpop.f32.mrb[0].mxu0
        %1584 = vmatprep.mubr.bf16.mxu0 0
        %1585 = vmatmul.mubr.bf16.gmra.mrb[0].mxu0 %v1037
        %v1586 = vpop.f32.mrb[0].mxu0
        %v1587 = vadd.f32 0.0, %v1586
        %v1588 = vpop.f32.mrb[0].mxu0
        %v1589 = vpop.f32.mrb[0].mxu0
        %v1590 = vadd.f32 0.0, %v1589
        %v1591 = vpop.f32.mrb[0].mxu0
        %1592 = vdwg.mxu0
        %1593 = vmatprep.subr.bf16.mxu0 0
        %1594 = vmatpush1.bf16.xpose.msra.mxu0 %v1263
        %1595 = vmatprep.subr.bf16.mxu0 0
        %1596 = vmatpush1.bf16.xpose.msra.mxu0 %v1264
        %1597 = vmatprep.subr.bf16.mxu0 0
        %1598 = vmatpush1.bf16.xpose.msra.mxu0 %v1265
        %1599 = vmatprep.subr.bf16.mxu0 0
        %1600 = vmatpush1.bf16.xpose.msra.mxu0 %v1266
        %1601 = vmatprep.subr.bf16.mxu0 0
        %1602 = vmatpush1.bf16.xpose.msra.mxu0 %v1267
        %1603 = vmatprep.subr.bf16.mxu0 0
        %1604 = vmatpush1.bf16.xpose.msra.mxu0 %v1268
        %1605 = vmatprep.subr.bf16.mxu0 0
        %1606 = vmatpush1.bf16.xpose.msra.mxu0 %v1269
        %1607 = vmatprep.subr.bf16.mxu0 0
        %1608 = vmatpush1.bf16.xpose.msra.mxu0 %v1270
        %1609 = vmatprep.subr.bf16.mxu0 0
        %1610 = vmatpush1.bf16.xpose.msra.mxu0 0
        %1611 = vmatprep.subr.bf16.mxu0 0
        %1612 = vmatpush1.bf16.xpose.msra.mxu0 0
        %1613 = vmatprep.subr.bf16.mxu0 0
        %1614 = vmatpush1.bf16.xpose.msra.mxu0 0
        %1615 = vmatprep.subr.bf16.mxu0 0
        %1616 = vmatpush1.bf16.xpose.msra.mxu0 0
        %1617 = vmatprep.subr.bf16.mxu0 0
        %1618 = vmatpush1.bf16.xpose.msra.mxu0 0
        %1619 = vmatprep.subr.bf16.mxu0 0
        %1620 = vmatpush1.bf16.xpose.msra.mxu0 0
        %1621 = vmatprep.subr.bf16.mxu0 0
        %1622 = vmatpush1.bf16.xpose.msra.mxu0 0
        %1623 = vmatprep.subr.bf16.mxu0 0
        %1624 = vmatpush1.bf16.xpose.msra.mxu0 0
        %1625 = vmatprep.mubr.bf16.mxu0 0
        %1626 = vmatmul.mubr.bf16.gmra.mrb[0].mxu0 %v1038
        %v1627 = vpop.f32.mrb[0].mxu0
        %v1628 = vadd.f32 0.0, %v1627
        %v1629 = vpop.f32.mrb[0].mxu0
        %v1630 = vpop.f32.mrb[0].mxu0
        %v1631 = vadd.f32 0.0, %v1630
        %v1632 = vpop.f32.mrb[0].mxu0
        %1633 = vmatprep.mubr.bf16.mxu0 0
        %1634 = vmatmul.mubr.bf16.gmra.mrb[0].mxu0 %v1039
        %v1635 = vpop.f32.mrb[0].mxu0
        %v1636 = vadd.f32 0.0, %v1635
        %v1637 = vpop.f32.mrb[0].mxu0
        %v1638 = vpop.f32.mrb[0].mxu0
        %v1639 = vadd.f32 0.0, %v1638
        %v1640 = vpop.f32.mrb[0].mxu0
        %1641 = vmatprep.mubr.bf16.mxu0 0
        %1642 = vmatmul.mubr.bf16.gmra.mrb[0].mxu0 %v1040
        %v1643 = vpop.f32.mrb[0].mxu0
        %v1644 = vadd.f32 0.0, %v1643
        %v1645 = vpop.f32.mrb[0].mxu0
        %v1646 = vpop.f32.mrb[0].mxu0
        %v1647 = vadd.f32 0.0, %v1646
        %v1648 = vpop.f32.mrb[0].mxu0
        %1649 = vmatprep.mubr.bf16.mxu0 0
        %1650 = vmatmul.mubr.bf16.gmra.mrb[0].mxu0 %v1041
        %v1651 = vpop.f32.mrb[0].mxu0
        %v1652 = vadd.f32 0.0, %v1651
        %v1653 = vpop.f32.mrb[0].mxu0
        %v1654 = vpop.f32.mrb[0].mxu0
        %v1655 = vadd.f32 0.0, %v1654
        %v1656 = vpop.f32.mrb[0].mxu0
        %1657 = vmatprep.mubr.bf16.mxu0 0
        %1658 = vmatmul.mubr.bf16.gmra.mrb[0].mxu0 %v1042
        %v1659 = vpop.f32.mrb[0].mxu0
        %v1660 = vadd.f32 0.0, %v1659
        %v1661 = vpop.f32.mrb[0].mxu0
        %v1662 = vpop.f32.mrb[0].mxu0
        %v1663 = vadd.f32 0.0, %v1662
        %v1664 = vpop.f32.mrb[0].mxu0
        %1665 = vmatprep.mubr.bf16.mxu0 0
        %1666 = vmatmul.mubr.bf16.gmra.mrb[0].mxu0 %v1043
        %v1667 = vpop.f32.mrb[0].mxu0
        %v1668 = vadd.f32 0.0, %v1667
        %v1669 = vpop.f32.mrb[0].mxu0
        %v1670 = vpop.f32.mrb[0].mxu0
        %v1671 = vadd.f32 0.0, %v1670
        %v1672 = vpop.f32.mrb[0].mxu0
        %1673 = vmatprep.mubr.bf16.mxu0 0
        %1674 = vmatmul.mubr.bf16.gmra.mrb[0].mxu0 %v1044
        %v1675 = vpop.f32.mrb[0].mxu0
        %v1676 = vadd.f32 0.0, %v1675
        %v1677 = vpop.f32.mrb[0].mxu0
        %v1678 = vpop.f32.mrb[0].mxu0
        %v1679 = vadd.f32 0.0, %v1678
        %v1680 = vpop.f32.mrb[0].mxu0
        %1681 = vmatprep.mubr.bf16.mxu0 0
        %1682 = vmatmul.mubr.bf16.gmra.mrb[0].mxu0 %v1045
        %v1683 = vpop.f32.mrb[0].mxu0
        %v1684 = vadd.f32 0.0, %v1683
        %v1685 = vpop.f32.mrb[0].mxu0
        %v1686 = vpop.f32.mrb[0].mxu0
        %v1687 = vadd.f32 0.0, %v1686
        %v1688 = vpop.f32.mrb[0].mxu0
        %1689 = vdwg.mxu0
        %1690 = vmax.xlane.f32.xlu0 %v1531
        %v1691 = vpop.xlane.xlu0 %1690
        %1692 = vmax.xlane.f32.xlu0 %v1534
        %v1693 = vpop.xlane.xlu0 %1692
        %1694 = vmax.xlane.f32.xlu0 %v1539
        %v1695 = vpop.xlane.xlu0 %1694
        %1696 = vmax.xlane.f32.xlu0 %v1542
        %v1697 = vpop.xlane.xlu0 %1696
        %1698 = vmax.xlane.f32.xlu0 %v1547
        %v1699 = vpop.xlane.xlu0 %1698
        %1700 = vmax.xlane.f32.xlu0 %v1550
        %v1701 = vpop.xlane.xlu0 %1700
        %1702 = vmax.xlane.f32.xlu0 %v1555
        %v1703 = vpop.xlane.xlu0 %1702
        %1704 = vmax.xlane.f32.xlu0 %v1558
        %v1705 = vpop.xlane.xlu0 %1704
        %1706 = vmax.xlane.f32.xlu0 %v1563
        %v1707 = vpop.xlane.xlu0 %1706
        %1708 = vmax.xlane.f32.xlu0 %v1566
        %v1709 = vpop.xlane.xlu0 %1708
        %1710 = vmax.xlane.f32.xlu0 %v1571
        %v1711 = vpop.xlane.xlu0 %1710
        %1712 = vmax.xlane.f32.xlu0 %v1574
        %v1713 = vpop.xlane.xlu0 %1712
        %1714 = vmax.xlane.f32.xlu0 %v1579
        %v1715 = vpop.xlane.xlu0 %1714
        %1716 = vmax.xlane.f32.xlu0 %v1582
        %v1717 = vpop.xlane.xlu0 %1716
        %1718 = vmax.xlane.f32.xlu0 %v1587
        %v1719 = vpop.xlane.xlu0 %1718
        %1720 = vmax.xlane.f32.xlu0 %v1590
        %v1721 = vpop.xlane.xlu0 %1720
        %1722 = vmax.xlane.f32.xlu0 %v1628
        %v1723 = vpop.xlane.xlu0 %1722
        %1724 = vmax.xlane.f32.xlu0 %v1631
        %v1725 = vpop.xlane.xlu0 %1724
        %1726 = vmax.xlane.f32.xlu0 %v1636
        %v1727 = vpop.xlane.xlu0 %1726
        %1728 = vmax.xlane.f32.xlu0 %v1639
        %v1729 = vpop.xlane.xlu0 %1728
        %1730 = vmax.xlane.f32.xlu0 %v1644
        %v1731 = vpop.xlane.xlu0 %1730
        %1732 = vmax.xlane.f32.xlu0 %v1647
        %v1733 = vpop.xlane.xlu0 %1732
        %1734 = vmax.xlane.f32.xlu0 %v1652
        %v1735 = vpop.xlane.xlu0 %1734
        %1736 = vmax.xlane.f32.xlu0 %v1655
        %v1737 = vpop.xlane.xlu0 %1736
        %1738 = vmax.xlane.f32.xlu0 %v1660
        %v1739 = vpop.xlane.xlu0 %1738
        %1740 = vmax.xlane.f32.xlu0 %v1663
        %v1741 = vpop.xlane.xlu0 %1740
        %1742 = vmax.xlane.f32.xlu0 %v1668
        %v1743 = vpop.xlane.xlu0 %1742
        %1744 = vmax.xlane.f32.xlu0 %v1671
        %v1745 = vpop.xlane.xlu0 %1744
        %1746 = vmax.xlane.f32.xlu0 %v1676
        %v1747 = vpop.xlane.xlu0 %1746
        %1748 = vmax.xlane.f32.xlu0 %v1679
        %v1749 = vpop.xlane.xlu0 %1748
        %1750 = vmax.xlane.f32.xlu0 %v1684
        %v1751 = vpop.xlane.xlu0 %1750
        %1752 = vmax.xlane.f32.xlu0 %v1687
        %v1753 = vpop.xlane.xlu0 %1752
        %v1754 = vsub.f32 %v1531, %v1691
        %v1755 = vsub.f32 %v1534, %v1693
        %v1756 = vsub.f32 %v1539, %v1695
        %v1757 = vsub.f32 %v1542, %v1697
        %v1758 = vsub.f32 %v1547, %v1699
        %v1759 = vsub.f32 %v1550, %v1701
        %v1760 = vsub.f32 %v1555, %v1703
        %v1761 = vsub.f32 %v1558, %v1705
        %v1762 = vsub.f32 %v1563, %v1707
        %v1763 = vsub.f32 %v1566, %v1709
        %v1764 = vsub.f32 %v1571, %v1711
        %v1765 = vsub.f32 %v1574, %v1713
        %v1766 = vsub.f32 %v1579, %v1715
        %v1767 = vsub.f32 %v1582, %v1717
        %v1768 = vsub.f32 %v1587, %v1719
        %v1769 = vsub.f32 %v1590, %v1721
        %v1770 = vsub.f32 %v1628, %v1723
        %v1771 = vsub.f32 %v1631, %v1725
        %v1772 = vsub.f32 %v1636, %v1727
        %v1773 = vsub.f32 %v1639, %v1729
        %v1774 = vsub.f32 %v1644, %v1731
        %v1775 = vsub.f32 %v1647, %v1733
        %v1776 = vsub.f32 %v1652, %v1735
        %v1777 = vsub.f32 %v1655, %v1737
        %v1778 = vsub.f32 %v1660, %v1739
        %v1779 = vsub.f32 %v1663, %v1741
        %v1780 = vsub.f32 %v1668, %v1743
        %v1781 = vsub.f32 %v1671, %v1745
        %v1782 = vsub.f32 %v1676, %v1747
        %v1783 = vsub.f32 %v1679, %v1749
        %v1784 = vsub.f32 %v1684, %v1751
        %v1785 = vsub.f32 %v1687, %v1753
        %v1786 = vmul.f32 %v1754, 1.442695
        %v1787 = vpow.pop %v1786
        %v1788 = vmul.f32 %v1755, 1.442695
        %v1789 = vpow.pop %v1788
        %v1790 = vmul.f32 %v1756, 1.442695
        %v1791 = vpow.pop %v1790
        %v1792 = vmul.f32 %v1757, 1.442695
        %v1793 = vpow.pop %v1792
        %v1794 = vmul.f32 %v1758, 1.442695
        %v1795 = vpow.pop %v1794
        %v1796 = vmul.f32 %v1759, 1.442695
        %v1797 = vpow.pop %v1796
        %v1798 = vmul.f32 %v1760, 1.442695
        %v1799 = vpow.pop %v1798
        %v1800 = vmul.f32 %v1761, 1.442695
        %v1801 = vpow.pop %v1800
        %v1802 = vmul.f32 %v1762, 1.442695
        %v1803 = vpow.pop %v1802
        %v1804 = vmul.f32 %v1763, 1.442695
        %v1805 = vpow.pop %v1804
        %v1806 = vmul.f32 %v1764, 1.442695
        %v1807 = vpow.pop %v1806
        %v1808 = vmul.f32 %v1765, 1.442695
        %v1809 = vpow.pop %v1808
        %v1810 = vmul.f32 %v1766, 1.442695
        %v1811 = vpow.pop %v1810
        %v1812 = vmul.f32 %v1767, 1.442695
        %v1813 = vpow.pop %v1812
        %v1814 = vmul.f32 %v1768, 1.442695
        %v1815 = vpow.pop %v1814
        %v1816 = vmul.f32 %v1769, 1.442695
        %v1817 = vpow.pop %v1816
        %v1818 = vmul.f32 %v1770, 1.442695
        %v1819 = vpow.pop %v1818
        %v1820 = vmul.f32 %v1771, 1.442695
        %v1821 = vpow.pop %v1820
        %v1822 = vmul.f32 %v1772, 1.442695
        %v1823 = vpow.pop %v1822
        %v1824 = vmul.f32 %v1773, 1.442695
        %v1825 = vpow.pop %v1824
        %v1826 = vmul.f32 %v1774, 1.442695
        %v1827 = vpow.pop %v1826
        %v1828 = vmul.f32 %v1775, 1.442695
        %v1829 = vpow.pop %v1828
        %v1830 = vmul.f32 %v1776, 1.442695
        %v1831 = vpow.pop %v1830
        %v1832 = vmul.f32 %v1777, 1.442695
        %v1833 = vpow.pop %v1832
        %v1834 = vmul.f32 %v1778, 1.442695
        %v1835 = vpow.pop %v1834
        %v1836 = vmul.f32 %v1779, 1.442695
        %v1837 = vpow.pop %v1836
        %v1838 = vmul.f32 %v1780, 1.442695
        %v1839 = vpow.pop %v1838
        %v1840 = vmul.f32 %v1781, 1.442695
        %v1841 = vpow.pop %v1840
        %v1842 = vmul.f32 %v1782, 1.442695
        %v1843 = vpow.pop %v1842
        %v1844 = vmul.f32 %v1783, 1.442695
        %v1845 = vpow.pop %v1844
        %v1846 = vmul.f32 %v1784, 1.442695
        %v1847 = vpow.pop %v1846
        %v1848 = vmul.f32 %v1785, 1.442695
        %v1849 = vpow.pop %v1848
        %1850 = vadd.xlane.f32.xlu0 %v1787
        %v1851 = vpop.xlane.xlu0 %1850
        %1852 = vadd.xlane.f32.xlu0 %v1789
        %v1853 = vpop.xlane.xlu0 %1852
        %1854 = vadd.xlane.f32.xlu0 %v1791
        %v1855 = vpop.xlane.xlu0 %1854
        %1856 = vadd.xlane.f32.xlu0 %v1793
        %v1857 = vpop.xlane.xlu0 %1856
        %1858 = vadd.xlane.f32.xlu0 %v1795
        %v1859 = vpop.xlane.xlu0 %1858
        %1860 = vadd.xlane.f32.xlu0 %v1797
        %v1861 = vpop.xlane.xlu0 %1860
        %1862 = vadd.xlane.f32.xlu0 %v1799
        %v1863 = vpop.xlane.xlu0 %1862
        %1864 = vadd.xlane.f32.xlu0 %v1801
        %v1865 = vpop.xlane.xlu0 %1864
        %1866 = vadd.xlane.f32.xlu0 %v1803
        %v1867 = vpop.xlane.xlu0 %1866
        %1868 = vadd.xlane.f32.xlu0 %v1805
        %v1869 = vpop.xlane.xlu0 %1868
        %1870 = vadd.xlane.f32.xlu0 %v1807
        %v1871 = vpop.xlane.xlu0 %1870
        %1872 = vadd.xlane.f32.xlu0 %v1809
        %v1873 = vpop.xlane.xlu0 %1872
        %1874 = vadd.xlane.f32.xlu0 %v1811
        %v1875 = vpop.xlane.xlu0 %1874
        %1876 = vadd.xlane.f32.xlu0 %v1813
        %v1877 = vpop.xlane.xlu0 %1876
        %1878 = vadd.xlane.f32.xlu0 %v1815
        %v1879 = vpop.xlane.xlu0 %1878
        %1880 = vadd.xlane.f32.xlu0 %v1817
        %v1881 = vpop.xlane.xlu0 %1880
        %1882 = vadd.xlane.f32.xlu0 %v1819
        %v1883 = vpop.xlane.xlu0 %1882
        %1884 = vadd.xlane.f32.xlu0 %v1821
        %v1885 = vpop.xlane.xlu0 %1884
        %1886 = vadd.xlane.f32.xlu0 %v1823
        %v1887 = vpop.xlane.xlu0 %1886
        %1888 = vadd.xlane.f32.xlu0 %v1825
        %v1889 = vpop.xlane.xlu0 %1888
        %1890 = vadd.xlane.f32.xlu0 %v1827
        %v1891 = vpop.xlane.xlu0 %1890
        %1892 = vadd.xlane.f32.xlu0 %v1829
        %v1893 = vpop.xlane.xlu0 %1892
        %1894 = vadd.xlane.f32.xlu0 %v1831
        %v1895 = vpop.xlane.xlu0 %1894
        %1896 = vadd.xlane.f32.xlu0 %v1833
        %v1897 = vpop.xlane.xlu0 %1896
        %1898 = vadd.xlane.f32.xlu0 %v1835
        %v1899 = vpop.xlane.xlu0 %1898
        %1900 = vadd.xlane.f32.xlu0 %v1837
        %v1901 = vpop.xlane.xlu0 %1900
        %1902 = vadd.xlane.f32.xlu0 %v1839
        %v1903 = vpop.xlane.xlu0 %1902
        %1904 = vadd.xlane.f32.xlu0 %v1841
        %v1905 = vpop.xlane.xlu0 %1904
        %1906 = vadd.xlane.f32.xlu0 %v1843
        %v1907 = vpop.xlane.xlu0 %1906
        %1908 = vadd.xlane.f32.xlu0 %v1845
        %v1909 = vpop.xlane.xlu0 %1908
        %1910 = vadd.xlane.f32.xlu0 %v1847
        %v1911 = vpop.xlane.xlu0 %1910
        %1912 = vadd.xlane.f32.xlu0 %v1849
        %v1913 = vpop.xlane.xlu0 %1912
        %v1914 = vrcp.pop %v1851
        %v1915 = vrcp.pop %v1853
        %v1916 = vrcp.pop %v1855
        %v1917 = vrcp.pop %v1857
        %v1918 = vrcp.pop %v1859
        %v1919 = vrcp.pop %v1861
        %v1920 = vrcp.pop %v1863
        %v1921 = vrcp.pop %v1865
        %v1922 = vrcp.pop %v1867
        %v1923 = vrcp.pop %v1869
        %v1924 = vrcp.pop %v1871
        %v1925 = vrcp.pop %v1873
        %v1926 = vrcp.pop %v1875
        %v1927 = vrcp.pop %v1877
        %v1928 = vrcp.pop %v1879
        %v1929 = vrcp.pop %v1881
        %v1930 = vrcp.pop %v1883
        %v1931 = vrcp.pop %v1885
        %v1932 = vrcp.pop %v1887
        %v1933 = vrcp.pop %v1889
        %v1934 = vrcp.pop %v1891
        %v1935 = vrcp.pop %v1893
        %v1936 = vrcp.pop %v1895
        %v1937 = vrcp.pop %v1897
        %v1938 = vrcp.pop %v1899
        %v1939 = vrcp.pop %v1901
        %v1940 = vrcp.pop %v1903
        %v1941 = vrcp.pop %v1905
        %v1942 = vrcp.pop %v1907
        %v1943 = vrcp.pop %v1909
        %v1944 = vrcp.pop %v1911
        %v1945 = vrcp.pop %v1913
        %v1946 = vmul.f32 %v1787, %v1914
        %v1947 = vmul.f32 %v1789, %v1915
        %v1948 = vmul.f32 %v1791, %v1916
        %v1949 = vmul.f32 %v1793, %v1917
        %v1950 = vmul.f32 %v1795, %v1918
        %v1951 = vmul.f32 %v1797, %v1919
        %v1952 = vmul.f32 %v1799, %v1920
        %v1953 = vmul.f32 %v1801, %v1921
        %v1954 = vmul.f32 %v1803, %v1922
        %v1955 = vmul.f32 %v1805, %v1923
        %v1956 = vmul.f32 %v1807, %v1924
        %v1957 = vmul.f32 %v1809, %v1925
        %v1958 = vmul.f32 %v1811, %v1926
        %v1959 = vmul.f32 %v1813, %v1927
        %v1960 = vmul.f32 %v1815, %v1928
        %v1961 = vmul.f32 %v1817, %v1929
        %v1962 = vmul.f32 %v1819, %v1930
        %v1963 = vmul.f32 %v1821, %v1931
        %v1964 = vmul.f32 %v1823, %v1932
        %v1965 = vmul.f32 %v1825, %v1933
        %v1966 = vmul.f32 %v1827, %v1934
        %v1967 = vmul.f32 %v1829, %v1935
        %v1968 = vmul.f32 %v1831, %v1936
        %v1969 = vmul.f32 %v1833, %v1937
        %v1970 = vmul.f32 %v1835, %v1938
        %v1971 = vmul.f32 %v1837, %v1939
        %v1972 = vmul.f32 %v1839, %v1940
        %v1973 = vmul.f32 %v1841, %v1941
        %v1974 = vmul.f32 %v1843, %v1942
        %v1975 = vmul.f32 %v1845, %v1943
        %v1976 = vmul.f32 %v1847, %v1944
        %v1977 = vmul.f32 %v1849, %v1945
        %v1978 = vpack.c.bf16 %v1947, %v1946
        %v1979 = vpack.c.bf16 %v1949, %v1948
        %v1980 = vpack.c.bf16 %v1951, %v1950
        %v1981 = vpack.c.bf16 %v1953, %v1952
        %v1982 = vpack.c.bf16 %v1955, %v1954
        %v1983 = vpack.c.bf16 %v1957, %v1956
        %v1984 = vpack.c.bf16 %v1959, %v1958
        %v1985 = vpack.c.bf16 %v1961, %v1960
        %v1986 = vpack.c.bf16 %v1963, %v1962
        %v1987 = vpack.c.bf16 %v1965, %v1964
        %v1988 = vpack.c.bf16 %v1967, %v1966
        %v1989 = vpack.c.bf16 %v1969, %v1968
        %v1990 = vpack.c.bf16 %v1971, %v1970
        %v1991 = vpack.c.bf16 %v1973, %v1972
        %v1992 = vpack.c.bf16 %v1975, %v1974
        %v1993 = vpack.c.bf16 %v1977, %v1976
        %1994 = vmatprep.subr.bf16.mxu0 0
        %1995 = vmatpush1.bf16.msra.mxu0 %v1480
        %1996 = vmatprep.subr.bf16.mxu0 0
        %1997 = vmatpush1.bf16.msra.mxu0 %v1481
        %1998 = vmatprep.subr.bf16.mxu0 0
        %1999 = vmatpush1.bf16.msra.mxu0 %v1482
        %2000 = vmatprep.subr.bf16.mxu0 0
        %2001 = vmatpush1.bf16.msra.mxu0 %v1483
        %2002 = vmatprep.subr.bf16.mxu0 0
        %2003 = vmatpush1.bf16.msra.mxu0 %v1484
        %2004 = vmatprep.subr.bf16.mxu0 0
        %2005 = vmatpush1.bf16.msra.mxu0 %v1485
        %2006 = vmatprep.subr.bf16.mxu0 0
        %2007 = vmatpush1.bf16.msra.mxu0 %v1486
        %2008 = vmatprep.subr.bf16.mxu0 0
        %2009 = vmatpush1.bf16.msra.mxu0 %v1487
        %2010 = vmatprep.subr.bf16.mxu0 0
        %2011 = vmatpush1.bf16.msra.mxu0 0
        %2012 = vmatprep.subr.bf16.mxu0 0
        %2013 = vmatpush1.bf16.msra.mxu0 0
        %2014 = vmatprep.subr.bf16.mxu0 0
        %2015 = vmatpush1.bf16.msra.mxu0 0
        %2016 = vmatprep.subr.bf16.mxu0 0
        %2017 = vmatpush1.bf16.msra.mxu0 0
        %2018 = vmatprep.subr.bf16.mxu0 0
        %2019 = vmatpush1.bf16.msra.mxu0 0
        %2020 = vmatprep.subr.bf16.mxu0 0
        %2021 = vmatpush1.bf16.msra.mxu0 0
        %2022 = vmatprep.subr.bf16.mxu0 0
        %2023 = vmatpush1.bf16.msra.mxu0 0
        %2024 = vmatprep.subr.bf16.mxu0 0
        %2025 = vmatpush1.bf16.msra.mxu0 0
        %2026 = vmatprep.mubr.bf16.mxu0 0
        %2027 = vmatmul.mubr.bf16.gmra.mrb[0].mxu0 %v1978
        %v2028 = vpop.f32.mrb[0].mxu0
        %v2029 = vadd.f32 0.0, %v2028
        %v2030 = vpop.f32.mrb[0].mxu0
        %v2031 = vpop.f32.mrb[0].mxu0
        %v2032 = vadd.f32 0.0, %v2031
        %v2033 = vpop.f32.mrb[0].mxu0
        %2034 = vmatprep.mubr.bf16.mxu0 0
        %2035 = vmatmul.mubr.bf16.gmra.mrb[0].mxu0 %v1979
        %v2036 = vpop.f32.mrb[0].mxu0
        %v2037 = vadd.f32 0.0, %v2036
        %v2038 = vpop.f32.mrb[0].mxu0
        %v2039 = vpop.f32.mrb[0].mxu0
        %v2040 = vadd.f32 0.0, %v2039
        %v2041 = vpop.f32.mrb[0].mxu0
        %2042 = vmatprep.mubr.bf16.mxu0 0
        %2043 = vmatmul.mubr.bf16.gmra.mrb[0].mxu0 %v1980
        %v2044 = vpop.f32.mrb[0].mxu0
        %v2045 = vadd.f32 0.0, %v2044
        %v2046 = vpop.f32.mrb[0].mxu0
        %v2047 = vpop.f32.mrb[0].mxu0
        %v2048 = vadd.f32 0.0, %v2047
        %v2049 = vpop.f32.mrb[0].mxu0
        %2050 = vmatprep.mubr.bf16.mxu0 0
        %2051 = vmatmul.mubr.bf16.gmra.mrb[0].mxu0 %v1981
        %v2052 = vpop.f32.mrb[0].mxu0
        %v2053 = vadd.f32 0.0, %v2052
        %v2054 = vpop.f32.mrb[0].mxu0
        %v2055 = vpop.f32.mrb[0].mxu0
        %v2056 = vadd.f32 0.0, %v2055
        %v2057 = vpop.f32.mrb[0].mxu0
        %2058 = vmatprep.mubr.bf16.mxu0 0
        %2059 = vmatmul.mubr.bf16.gmra.mrb[0].mxu0 %v1982
        %v2060 = vpop.f32.mrb[0].mxu0
        %v2061 = vadd.f32 0.0, %v2060
        %v2062 = vpop.f32.mrb[0].mxu0
        %v2063 = vpop.f32.mrb[0].mxu0
        %v2064 = vadd.f32 0.0, %v2063
        %v2065 = vpop.f32.mrb[0].mxu0
        %2066 = vmatprep.mubr.bf16.mxu0 0
        %2067 = vmatmul.mubr.bf16.gmra.mrb[0].mxu0 %v1983
        %v2068 = vpop.f32.mrb[0].mxu0
        %v2069 = vadd.f32 0.0, %v2068
        %v2070 = vpop.f32.mrb[0].mxu0
        %v2071 = vpop.f32.mrb[0].mxu0
        %v2072 = vadd.f32 0.0, %v2071
        %v2073 = vpop.f32.mrb[0].mxu0
        %2074 = vmatprep.mubr.bf16.mxu0 0
        %2075 = vmatmul.mubr.bf16.gmra.mrb[0].mxu0 %v1984
        %v2076 = vpop.f32.mrb[0].mxu0
        %v2077 = vadd.f32 0.0, %v2076
        %v2078 = vpop.f32.mrb[0].mxu0
        %v2079 = vpop.f32.mrb[0].mxu0
        %v2080 = vadd.f32 0.0, %v2079
        %v2081 = vpop.f32.mrb[0].mxu0
        %2082 = vmatprep.mubr.bf16.mxu0 0
        %2083 = vmatmul.mubr.bf16.gmra.mrb[0].mxu0 %v1985
        %v2084 = vpop.f32.mrb[0].mxu0
        %v2085 = vadd.f32 0.0, %v2084
        %v2086 = vpop.f32.mrb[0].mxu0
        %v2087 = vpop.f32.mrb[0].mxu0
        %v2088 = vadd.f32 0.0, %v2087
        %v2089 = vpop.f32.mrb[0].mxu0
        %2090 = vdwg.mxu0
        %2091 = vmatprep.subr.bf16.mxu0 0
        %2092 = vmatpush1.bf16.msra.mxu0 %v1488
        %2093 = vmatprep.subr.bf16.mxu0 0
        %2094 = vmatpush1.bf16.msra.mxu0 %v1489
        %2095 = vmatprep.subr.bf16.mxu0 0
        %2096 = vmatpush1.bf16.msra.mxu0 %v1490
        %2097 = vmatprep.subr.bf16.mxu0 0
        %2098 = vmatpush1.bf16.msra.mxu0 %v1491
        %2099 = vmatprep.subr.bf16.mxu0 0
        %2100 = vmatpush1.bf16.msra.mxu0 %v1492
        %2101 = vmatprep.subr.bf16.mxu0 0
        %2102 = vmatpush1.bf16.msra.mxu0 %v1493
        %2103 = vmatprep.subr.bf16.mxu0 0
        %2104 = vmatpush1.bf16.msra.mxu0 %v1494
        %2105 = vmatprep.subr.bf16.mxu0 0
        %2106 = vmatpush1.bf16.msra.mxu0 %v1495
        %2107 = vmatprep.subr.bf16.mxu0 0
        %2108 = vmatpush1.bf16.msra.mxu0 0
        %2109 = vmatprep.subr.bf16.mxu0 0
        %2110 = vmatpush1.bf16.msra.mxu0 0
        %2111 = vmatprep.subr.bf16.mxu0 0
        %2112 = vmatpush1.bf16.msra.mxu0 0
        %2113 = vmatprep.subr.bf16.mxu0 0
        %2114 = vmatpush1.bf16.msra.mxu0 0
        %2115 = vmatprep.subr.bf16.mxu0 0
        %2116 = vmatpush1.bf16.msra.mxu0 0
        %2117 = vmatprep.subr.bf16.mxu0 0
        %2118 = vmatpush1.bf16.msra.mxu0 0
        %2119 = vmatprep.subr.bf16.mxu0 0
        %2120 = vmatpush1.bf16.msra.mxu0 0
        %2121 = vmatprep.subr.bf16.mxu0 0
        %2122 = vmatpush1.bf16.msra.mxu0 0
        %2123 = vmatprep.mubr.bf16.mxu0 0
        %2124 = vmatmul.mubr.bf16.gmra.mrb[0].mxu0 %v1986
        %v2125 = vpop.f32.mrb[0].mxu0
        %v2126 = vadd.f32 0.0, %v2125
        %v2127 = vpop.f32.mrb[0].mxu0
        %v2128 = vpop.f32.mrb[0].mxu0
        %v2129 = vadd.f32 0.0, %v2128
        %v2130 = vpop.f32.mrb[0].mxu0
        %2131 = vmatprep.mubr.bf16.mxu0 0
        %2132 = vmatmul.mubr.bf16.gmra.mrb[0].mxu0 %v1987
        %v2133 = vpop.f32.mrb[0].mxu0
        %v2134 = vadd.f32 0.0, %v2133
        %v2135 = vpop.f32.mrb[0].mxu0
        %v2136 = vpop.f32.mrb[0].mxu0
        %v2137 = vadd.f32 0.0, %v2136
        %v2138 = vpop.f32.mrb[0].mxu0
        %2139 = vmatprep.mubr.bf16.mxu0 0
        %2140 = vmatmul.mubr.bf16.gmra.mrb[0].mxu0 %v1988
        %v2141 = vpop.f32.mrb[0].mxu0
        %v2142 = vadd.f32 0.0, %v2141
        %v2143 = vpop.f32.mrb[0].mxu0
        %v2144 = vpop.f32.mrb[0].mxu0
        %v2145 = vadd.f32 0.0, %v2144
        %v2146 = vpop.f32.mrb[0].mxu0
        %2147 = vmatprep.mubr.bf16.mxu0 0
        %2148 = vmatmul.mubr.bf16.gmra.mrb[0].mxu0 %v1989
        %v2149 = vpop.f32.mrb[0].mxu0
        %v2150 = vadd.f32 0.0, %v2149
        %v2151 = vpop.f32.mrb[0].mxu0
        %v2152 = vpop.f32.mrb[0].mxu0
        %v2153 = vadd.f32 0.0, %v2152
        %v2154 = vpop.f32.mrb[0].mxu0
        %2155 = vmatprep.mubr.bf16.mxu0 0
        %2156 = vmatmul.mubr.bf16.gmra.mrb[0].mxu0 %v1990
        %v2157 = vpop.f32.mrb[0].mxu0
        %v2158 = vadd.f32 0.0, %v2157
        %v2159 = vpop.f32.mrb[0].mxu0
        %v2160 = vpop.f32.mrb[0].mxu0
        %v2161 = vadd.f32 0.0, %v2160
        %v2162 = vpop.f32.mrb[0].mxu0
        %2163 = vmatprep.mubr.bf16.mxu0 0
        %2164 = vmatmul.mubr.bf16.gmra.mrb[0].mxu0 %v1991
        %v2165 = vpop.f32.mrb[0].mxu0
        %v2166 = vadd.f32 0.0, %v2165
        %v2167 = vpop.f32.mrb[0].mxu0
        %v2168 = vpop.f32.mrb[0].mxu0
        %v2169 = vadd.f32 0.0, %v2168
        %v2170 = vpop.f32.mrb[0].mxu0
        %2171 = vmatprep.mubr.bf16.mxu0 0
        %2172 = vmatmul.mubr.bf16.gmra.mrb[0].mxu0 %v1992
        %v2173 = vpop.f32.mrb[0].mxu0
        %v2174 = vadd.f32 0.0, %v2173
        %v2175 = vpop.f32.mrb[0].mxu0
        %v2176 = vpop.f32.mrb[0].mxu0
        %v2177 = vadd.f32 0.0, %v2176
        %v2178 = vpop.f32.mrb[0].mxu0
        %2179 = vmatprep.mubr.bf16.mxu0 0
        %2180 = vmatmul.mubr.bf16.gmra.mrb[0].mxu0 %v1993
        %v2181 = vpop.f32.mrb[0].mxu0
        %v2182 = vadd.f32 0.0, %v2181
        %v2183 = vpop.f32.mrb[0].mxu0
        %v2184 = vpop.f32.mrb[0].mxu0
        %v2185 = vadd.f32 0.0, %v2184
        %v2186 = vpop.f32.mrb[0].mxu0
        %2187 = vdwg.mxu0
        %v2188 = vpack.c.bf16 %v2032, %v2029
        %v2189 = vpack.c.bf16 %v2040, %v2037
        %v2190 = vpack.c.bf16 %v2048, %v2045
        %v2191 = vpack.c.bf16 %v2056, %v2053
        %v2192 = vpack.c.bf16 %v2064, %v2061
        %v2193 = vpack.c.bf16 %v2072, %v2069
        %v2194 = vpack.c.bf16 %v2080, %v2077
        %v2195 = vpack.c.bf16 %v2088, %v2085
        %v2196 = vpack.c.bf16 %v2129, %v2126
        %v2197 = vpack.c.bf16 %v2137, %v2134
        %v2198 = vpack.c.bf16 %v2145, %v2142
        %v2199 = vpack.c.bf16 %v2153, %v2150
        %v2200 = vpack.c.bf16 %v2161, %v2158
        %v2201 = vpack.c.bf16 %v2169, %v2166
        %v2202 = vpack.c.bf16 %v2177, %v2174
        %v2203 = vpack.c.bf16 %v2185, %v2182
        %v2204 = vld [vmem:[#allocation10] sm:$0xf]
        %v2205 = vld [vmem:[#allocation10 + $0x4] sm:$0xf]
        %v2206 = vld [vmem:[#allocation10 + $0x8] sm:$0xf]
        %v2207 = vld [vmem:[#allocation10 + $0xc] sm:$0xf]
        %v2208 = vld [vmem:[#allocation10 + $0x10] sm:$0xf]
        %v2209 = vld [vmem:[#allocation10 + $0x14] sm:$0xf]
        %v2210 = vld [vmem:[#allocation10 + $0x18] sm:$0xf]
        %v2211 = vld [vmem:[#allocation10 + $0x1c] sm:$0xf]
        %v2212 = vld [vmem:[#allocation10 + $0x20] sm:$0xf]
        %v2213 = vld [vmem:[#allocation10 + $0x24] sm:$0xf]
        %v2214 = vld [vmem:[#allocation10 + $0x28] sm:$0xf]
        %v2215 = vld [vmem:[#allocation10 + $0x2c] sm:$0xf]
        %v2216 = vld [vmem:[#allocation10 + $0x30] sm:$0xf]
        %v2217 = vld [vmem:[#allocation10 + $0x34] sm:$0xf]
        %v2218 = vld [vmem:[#allocation10 + $0x38] sm:$0xf]
        %v2219 = vld [vmem:[#allocation10 + $0x3c] sm:$0xf]
        %v2220 = vld [vmem:[%s5] sm:$0x1]
        %v2222 = vlaneseq
        %v2223 = vshrl.u32 %v2222, 7
        %v2224 = vsub.s32 0, %v2223
        %v2225 = vrot.slane %v2220, %v2224
        %v2243 = vunpack.c.l.b16 %v2204
        %v2244 = vunpack.c.l.b16 %v2205
        %v2245 = vunpack.c.l.b16 %v2206
        %v2246 = vunpack.c.l.b16 %v2207
        %v2247 = vunpack.c.l.b16 %v2208
        %v2248 = vunpack.c.l.b16 %v2209
        %v2249 = vunpack.c.l.b16 %v2210
        %v2250 = vunpack.c.l.b16 %v2211
        %v2251 = vunpack.c.l.b16 %v2212
        %v2252 = vunpack.c.l.b16 %v2213
        %v2253 = vunpack.c.l.b16 %v2214
        %v2254 = vunpack.c.l.b16 %v2215
        %v2255 = vunpack.c.l.b16 %v2216
        %v2256 = vunpack.c.l.b16 %v2217
        %v2257 = vunpack.c.l.b16 %v2218
        %v2258 = vunpack.c.l.b16 %v2219
        %v2259 = vpack.c.b16 %v2244, %v2243
        %v2260 = vpack.c.b16 %v2246, %v2245
        %v2261 = vpack.c.b16 %v2248, %v2247
        %v2262 = vpack.c.b16 %v2250, %v2249
        %v2263 = vpack.c.b16 %v2252, %v2251
        %v2264 = vpack.c.b16 %v2254, %v2253
        %v2265 = vpack.c.b16 %v2256, %v2255
        %v2266 = vpack.c.b16 %v2258, %v2257
        %2275 = vmatprep.subr.bf16.mxu0 0
        %2276 = vmatpush1.bf16.msra.mxu0 %v2259
        %2277 = vmatprep.subr.bf16.mxu0 0
        %2278 = vmatpush1.bf16.msra.mxu0 %v2260
        %2279 = vmatprep.subr.bf16.mxu0 0
        %2280 = vmatpush1.bf16.msra.mxu0 %v2261
        %2281 = vmatprep.subr.bf16.mxu0 0
        %2282 = vmatpush1.bf16.msra.mxu0 %v2262
        %2283 = vmatprep.subr.bf16.mxu0 0
        %2284 = vmatpush1.bf16.msra.mxu0 %v2263
        %2285 = vmatprep.subr.bf16.mxu0 0
        %2286 = vmatpush1.bf16.msra.mxu0 %v2264
        %2287 = vmatprep.subr.bf16.mxu0 0
        %2288 = vmatpush1.bf16.msra.mxu0 %v2265
        %2289 = vmatprep.subr.bf16.mxu0 0
        %2290 = vmatpush1.bf16.msra.mxu0 %v2266
        %2291 = vmatprep.subr.bf16.mxu0 0
        %2292 = vmatpush1.bf16.msra.mxu0 0
        %2293 = vmatprep.subr.bf16.mxu0 0
        %2294 = vmatpush1.bf16.msra.mxu0 0
        %2295 = vmatprep.subr.bf16.mxu0 0
        %2296 = vmatpush1.bf16.msra.mxu0 0
        %2297 = vmatprep.subr.bf16.mxu0 0
        %2298 = vmatpush1.bf16.msra.mxu0 0
        %2299 = vmatprep.subr.bf16.mxu0 0
        %2300 = vmatpush1.bf16.msra.mxu0 0
        %2301 = vmatprep.subr.bf16.mxu0 0
        %2302 = vmatpush1.bf16.msra.mxu0 0
        %2303 = vmatprep.subr.bf16.mxu0 0
        %2304 = vmatpush1.bf16.msra.mxu0 0
        %2305 = vmatprep.subr.bf16.mxu0 0
        %2306 = vmatpush1.bf16.msra.mxu0 0
        %2307 = vmatprep.mubr.bf16.mxu0 0
        %2308 = vmatmul.mubr.bf16.gmra.mrb[0].mxu0 %v2188
        %v2309 = vpop.f32.mrb[0].mxu0
        %v2310 = vadd.f32 %v2225, %v2309
        %v2311 = vpop.f32.mrb[0].mxu0
        %v2312 = vpop.f32.mrb[0].mxu0
        %v2313 = vadd.f32 %v2225, %v2312
        %v2314 = vpop.f32.mrb[0].mxu0
        %2315 = vmatprep.mubr.bf16.mxu0 0
        %2316 = vmatmul.mubr.bf16.gmra.mrb[0].mxu0 %v2189
        %v2317 = vpop.f32.mrb[0].mxu0
        %v2318 = vadd.f32 %v2225, %v2317
        %v2319 = vpop.f32.mrb[0].mxu0
        %v2320 = vpop.f32.mrb[0].mxu0
        %v2321 = vadd.f32 %v2225, %v2320
        %v2322 = vpop.f32.mrb[0].mxu0
        %2323 = vmatprep.mubr.bf16.mxu0 0
        %2324 = vmatmul.mubr.bf16.gmra.mrb[0].mxu0 %v2190
        %v2325 = vpop.f32.mrb[0].mxu0
        %v2326 = vadd.f32 %v2225, %v2325
        %v2327 = vpop.f32.mrb[0].mxu0
        %v2328 = vpop.f32.mrb[0].mxu0
        %v2329 = vadd.f32 %v2225, %v2328
        %v2330 = vpop.f32.mrb[0].mxu0
        %2331 = vmatprep.mubr.bf16.mxu0 0
        %2332 = vmatmul.mubr.bf16.gmra.mrb[0].mxu0 %v2191
        %v2333 = vpop.f32.mrb[0].mxu0
        %v2334 = vadd.f32 %v2225, %v2333
        %v2335 = vpop.f32.mrb[0].mxu0
        %v2336 = vpop.f32.mrb[0].mxu0
        %v2337 = vadd.f32 %v2225, %v2336
        %v2338 = vpop.f32.mrb[0].mxu0
        %2339 = vmatprep.mubr.bf16.mxu0 0
        %2340 = vmatmul.mubr.bf16.gmra.mrb[0].mxu0 %v2192
        %v2341 = vpop.f32.mrb[0].mxu0
        %v2342 = vadd.f32 %v2225, %v2341
        %v2343 = vpop.f32.mrb[0].mxu0
        %v2344 = vpop.f32.mrb[0].mxu0
        %v2345 = vadd.f32 %v2225, %v2344
        %v2346 = vpop.f32.mrb[0].mxu0
        %2347 = vmatprep.mubr.bf16.mxu0 0
        %2348 = vmatmul.mubr.bf16.gmra.mrb[0].mxu0 %v2193
        %v2349 = vpop.f32.mrb[0].mxu0
        %v2350 = vadd.f32 %v2225, %v2349
        %v2351 = vpop.f32.mrb[0].mxu0
        %v2352 = vpop.f32.mrb[0].mxu0
        %v2353 = vadd.f32 %v2225, %v2352
        %v2354 = vpop.f32.mrb[0].mxu0
        %2355 = vmatprep.mubr.bf16.mxu0 0
        %2356 = vmatmul.mubr.bf16.gmra.mrb[0].mxu0 %v2194
        %v2357 = vpop.f32.mrb[0].mxu0
        %v2358 = vadd.f32 %v2225, %v2357
        %v2359 = vpop.f32.mrb[0].mxu0
        %v2360 = vpop.f32.mrb[0].mxu0
        %v2361 = vadd.f32 %v2225, %v2360
        %v2362 = vpop.f32.mrb[0].mxu0
        %2363 = vmatprep.mubr.bf16.mxu0 0
        %2364 = vmatmul.mubr.bf16.gmra.mrb[0].mxu0 %v2195
        %v2365 = vpop.f32.mrb[0].mxu0
        %v2366 = vadd.f32 %v2225, %v2365
        %v2367 = vpop.f32.mrb[0].mxu0
        %v2368 = vpop.f32.mrb[0].mxu0
        %v2369 = vadd.f32 %v2225, %v2368
        %v2370 = vpop.f32.mrb[0].mxu0
        %2371 = vmatprep.mubr.bf16.mxu0 0
        %2372 = vmatmul.mubr.bf16.gmra.mrb[0].mxu0 %v2196
        %v2373 = vpop.f32.mrb[0].mxu0
        %v2374 = vadd.f32 %v2225, %v2373
        %v2375 = vpop.f32.mrb[0].mxu0
        %v2376 = vpop.f32.mrb[0].mxu0
        %v2377 = vadd.f32 %v2225, %v2376
        %v2378 = vpop.f32.mrb[0].mxu0
        %2379 = vmatprep.mubr.bf16.mxu0 0
        %2380 = vmatmul.mubr.bf16.gmra.mrb[0].mxu0 %v2197
        %v2381 = vpop.f32.mrb[0].mxu0
        %v2382 = vadd.f32 %v2225, %v2381
        %v2383 = vpop.f32.mrb[0].mxu0
        %v2384 = vpop.f32.mrb[0].mxu0
        %v2385 = vadd.f32 %v2225, %v2384
        %v2386 = vpop.f32.mrb[0].mxu0
        %2387 = vmatprep.mubr.bf16.mxu0 0
        %2388 = vmatmul.mubr.bf16.gmra.mrb[0].mxu0 %v2198
        %v2389 = vpop.f32.mrb[0].mxu0
        %v2390 = vadd.f32 %v2225, %v2389
        %v2391 = vpop.f32.mrb[0].mxu0
        %v2392 = vpop.f32.mrb[0].mxu0
        %v2393 = vadd.f32 %v2225, %v2392
        %v2394 = vpop.f32.mrb[0].mxu0
        %2395 = vmatprep.mubr.bf16.mxu0 0
        %2396 = vmatmul.mubr.bf16.gmra.mrb[0].mxu0 %v2199
        %v2397 = vpop.f32.mrb[0].mxu0
        %v2398 = vadd.f32 %v2225, %v2397
        %v2399 = vpop.f32.mrb[0].mxu0
        %v2400 = vpop.f32.mrb[0].mxu0
        %v2401 = vadd.f32 %v2225, %v2400
        %v2402 = vpop.f32.mrb[0].mxu0
        %2403 = vmatprep.mubr.bf16.mxu0 0
        %2404 = vmatmul.mubr.bf16.gmra.mrb[0].mxu0 %v2200
        %v2405 = vpop.f32.mrb[0].mxu0
        %v2406 = vadd.f32 %v2225, %v2405
        %v2407 = vpop.f32.mrb[0].mxu0
        %v2408 = vpop.f32.mrb[0].mxu0
        %v2409 = vadd.f32 %v2225, %v2408
        %v2410 = vpop.f32.mrb[0].mxu0
        %2411 = vmatprep.mubr.bf16.mxu0 0
        %2412 = vmatmul.mubr.bf16.gmra.mrb[0].mxu0 %v2201
        %v2413 = vpop.f32.mrb[0].mxu0
        %v2414 = vadd.f32 %v2225, %v2413
        %v2415 = vpop.f32.mrb[0].mxu0
        %v2416 = vpop.f32.mrb[0].mxu0
        %v2417 = vadd.f32 %v2225, %v2416
        %v2418 = vpop.f32.mrb[0].mxu0
        %2419 = vmatprep.mubr.bf16.mxu0 0
        %2420 = vmatmul.mubr.bf16.gmra.mrb[0].mxu0 %v2202
        %v2421 = vpop.f32.mrb[0].mxu0
        %v2422 = vadd.f32 %v2225, %v2421
        %v2423 = vpop.f32.mrb[0].mxu0
        %v2424 = vpop.f32.mrb[0].mxu0
        %v2425 = vadd.f32 %v2225, %v2424
        %v2426 = vpop.f32.mrb[0].mxu0
        %2427 = vmatprep.mubr.bf16.mxu0 0
        %2428 = vmatmul.mubr.bf16.gmra.mrb[0].mxu0 %v2203
        %v2429 = vpop.f32.mrb[0].mxu0
        %v2430 = vadd.f32 %v2225, %v2429
        %v2431 = vpop.f32.mrb[0].mxu0
        %v2432 = vpop.f32.mrb[0].mxu0
        %v2433 = vadd.f32 %v2225, %v2432
        %v2434 = vpop.f32.mrb[0].mxu0
        %2435 = vdwg.mxu0
        %v2436 = vadd.f32 %v2310, %v629
        %v2437 = vadd.f32 %v2313, %v630
        %v2438 = vadd.f32 %v2318, %v631
        %v2439 = vadd.f32 %v2321, %v632
        %v2440 = vadd.f32 %v2326, %v633
        %v2441 = vadd.f32 %v2329, %v634
        %v2442 = vadd.f32 %v2334, %v635
        %v2443 = vadd.f32 %v2337, %v636
        %v2444 = vadd.f32 %v2342, %v637
        %v2445 = vadd.f32 %v2345, %v638
        %v2446 = vadd.f32 %v2350, %v639
        %v2447 = vadd.f32 %v2353, %v640
        %v2448 = vadd.f32 %v2358, %v641
        %v2449 = vadd.f32 %v2361, %v642
        %v2450 = vadd.f32 %v2366, %v643
        %v2451 = vadd.f32 %v2369, %v644
        %v2452 = vadd.f32 %v2374, %v645
        %v2453 = vadd.f32 %v2377, %v646
        %v2454 = vadd.f32 %v2382, %v647
        %v2455 = vadd.f32 %v2385, %v648
        %v2456 = vadd.f32 %v2390, %v649
        %v2457 = vadd.f32 %v2393, %v650
        %v2458 = vadd.f32 %v2398, %v651
        %v2459 = vadd.f32 %v2401, %v652
        %v2460 = vadd.f32 %v2406, %v653
        %v2461 = vadd.f32 %v2409, %v654
        %v2462 = vadd.f32 %v2414, %v655
        %v2463 = vadd.f32 %v2417, %v656
        %v2464 = vadd.f32 %v2422, %v657
        %v2465 = vadd.f32 %v2425, %v658
        %v2466 = vadd.f32 %v2430, %v659
        %v2467 = vadd.f32 %v2433, %v660
        %v2468 = vld [vmem:[%s6] sm:$0x1]
        %v2469 = vld [vmem:[%s7] sm:$0x1]
        %2470 = vadd.xlane.f32.xlu0 %v2436
        %v2471 = vpop.xlane.xlu0 %2470
        %2472 = vadd.xlane.f32.xlu0 %v2437
        %v2473 = vpop.xlane.xlu0 %2472
        %2474 = vadd.xlane.f32.xlu0 %v2438
        %v2475 = vpop.xlane.xlu0 %2474
        %2476 = vadd.xlane.f32.xlu0 %v2439
        %v2477 = vpop.xlane.xlu0 %2476
        %2478 = vadd.xlane.f32.xlu0 %v2440
        %v2479 = vpop.xlane.xlu0 %2478
        %2480 = vadd.xlane.f32.xlu0 %v2441
        %v2481 = vpop.xlane.xlu0 %2480
        %2482 = vadd.xlane.f32.xlu0 %v2442
        %v2483 = vpop.xlane.xlu0 %2482
        %2484 = vadd.xlane.f32.xlu0 %v2443
        %v2485 = vpop.xlane.xlu0 %2484
        %2486 = vadd.xlane.f32.xlu0 %v2444
        %v2487 = vpop.xlane.xlu0 %2486
        %2488 = vadd.xlane.f32.xlu0 %v2445
        %v2489 = vpop.xlane.xlu0 %2488
        %2490 = vadd.xlane.f32.xlu0 %v2446
        %v2491 = vpop.xlane.xlu0 %2490
        %2492 = vadd.xlane.f32.xlu0 %v2447
        %v2493 = vpop.xlane.xlu0 %2492
        %2494 = vadd.xlane.f32.xlu0 %v2448
        %v2495 = vpop.xlane.xlu0 %2494
        %2496 = vadd.xlane.f32.xlu0 %v2449
        %v2497 = vpop.xlane.xlu0 %2496
        %2498 = vadd.xlane.f32.xlu0 %v2450
        %v2499 = vpop.xlane.xlu0 %2498
        %2500 = vadd.xlane.f32.xlu0 %v2451
        %v2501 = vpop.xlane.xlu0 %2500
        %2502 = vadd.xlane.f32.xlu0 %v2452
        %v2503 = vpop.xlane.xlu0 %2502
        %2504 = vadd.xlane.f32.xlu0 %v2453
        %v2505 = vpop.xlane.xlu0 %2504
        %2506 = vadd.xlane.f32.xlu0 %v2454
        %v2507 = vpop.xlane.xlu0 %2506
        %2508 = vadd.xlane.f32.xlu0 %v2455
        %v2509 = vpop.xlane.xlu0 %2508
        %2510 = vadd.xlane.f32.xlu0 %v2456
        %v2511 = vpop.xlane.xlu0 %2510
        %2512 = vadd.xlane.f32.xlu0 %v2457
        %v2513 = vpop.xlane.xlu0 %2512
        %2514 = vadd.xlane.f32.xlu0 %v2458
        %v2515 = vpop.xlane.xlu0 %2514
        %2516 = vadd.xlane.f32.xlu0 %v2459
        %v2517 = vpop.xlane.xlu0 %2516
        %2518 = vadd.xlane.f32.xlu0 %v2460
        %v2519 = vpop.xlane.xlu0 %2518
        %2520 = vadd.xlane.f32.xlu0 %v2461
        %v2521 = vpop.xlane.xlu0 %2520
        %2522 = vadd.xlane.f32.xlu0 %v2462
        %v2523 = vpop.xlane.xlu0 %2522
        %2524 = vadd.xlane.f32.xlu0 %v2463
        %v2525 = vpop.xlane.xlu0 %2524
        %2526 = vadd.xlane.f32.xlu0 %v2464
        %v2527 = vpop.xlane.xlu0 %2526
        %2528 = vadd.xlane.f32.xlu0 %v2465
        %v2529 = vpop.xlane.xlu0 %2528
        %2530 = vadd.xlane.f32.xlu0 %v2466
        %v2531 = vpop.xlane.xlu0 %2530
        %2532 = vadd.xlane.f32.xlu0 %v2467
        %v2533 = vpop.xlane.xlu0 %2532
        %v2534 = vrcp.pop 128.0
        %v2535 = vmul.f32 %v2471, %v2534
        %v2536 = vmul.f32 %v2473, %v2534
        %v2537 = vmul.f32 %v2475, %v2534
        %v2538 = vmul.f32 %v2477, %v2534
        %v2539 = vmul.f32 %v2479, %v2534
        %v2540 = vmul.f32 %v2481, %v2534
        %v2541 = vmul.f32 %v2483, %v2534
        %v2542 = vmul.f32 %v2485, %v2534
        %v2543 = vmul.f32 %v2487, %v2534
        %v2544 = vmul.f32 %v2489, %v2534
        %v2545 = vmul.f32 %v2491, %v2534
        %v2546 = vmul.f32 %v2493, %v2534
        %v2547 = vmul.f32 %v2495, %v2534
        %v2548 = vmul.f32 %v2497, %v2534
        %v2549 = vmul.f32 %v2499, %v2534
        %v2550 = vmul.f32 %v2501, %v2534
        %v2551 = vmul.f32 %v2503, %v2534
        %v2552 = vmul.f32 %v2505, %v2534
        %v2553 = vmul.f32 %v2507, %v2534
        %v2554 = vmul.f32 %v2509, %v2534
        %v2555 = vmul.f32 %v2511, %v2534
        %v2556 = vmul.f32 %v2513, %v2534
        %v2557 = vmul.f32 %v2515, %v2534
        %v2558 = vmul.f32 %v2517, %v2534
        %v2559 = vmul.f32 %v2519, %v2534
        %v2560 = vmul.f32 %v2521, %v2534
        %v2561 = vmul.f32 %v2523, %v2534
        %v2562 = vmul.f32 %v2525, %v2534
        %v2563 = vmul.f32 %v2527, %v2534
        %v2564 = vmul.f32 %v2529, %v2534
        %v2565 = vmul.f32 %v2531, %v2534
        %v2566 = vmul.f32 %v2533, %v2534
        %v2567 = vsub.f32 %v2436, %v2535
        %v2568 = vsub.f32 %v2437, %v2536
        %v2569 = vsub.f32 %v2438, %v2537
        %v2570 = vsub.f32 %v2439, %v2538
        %v2571 = vsub.f32 %v2440, %v2539
        %v2572 = vsub.f32 %v2441, %v2540
        %v2573 = vsub.f32 %v2442, %v2541
        %v2574 = vsub.f32 %v2443, %v2542
        %v2575 = vsub.f32 %v2444, %v2543
        %v2576 = vsub.f32 %v2445, %v2544
        %v2577 = vsub.f32 %v2446, %v2545
        %v2578 = vsub.f32 %v2447, %v2546
        %v2579 = vsub.f32 %v2448, %v2547
        %v2580 = vsub.f32 %v2449, %v2548
        %v2581 = vsub.f32 %v2450, %v2549
        %v2582 = vsub.f32 %v2451, %v2550
        %v2583 = vsub.f32 %v2452, %v2551
        %v2584 = vsub.f32 %v2453, %v2552
        %v2585 = vsub.f32 %v2454, %v2553
        %v2586 = vsub.f32 %v2455, %v2554
        %v2587 = vsub.f32 %v2456, %v2555
        %v2588 = vsub.f32 %v2457, %v2556
        %v2589 = vsub.f32 %v2458, %v2557
        %v2590 = vsub.f32 %v2459, %v2558
        %v2591 = vsub.f32 %v2460, %v2559
        %v2592 = vsub.f32 %v2461, %v2560
        %v2593 = vsub.f32 %v2462, %v2561
        %v2594 = vsub.f32 %v2463, %v2562
        %v2595 = vsub.f32 %v2464, %v2563
        %v2596 = vsub.f32 %v2465, %v2564
        %v2597 = vsub.f32 %v2466, %v2565
        %v2598 = vsub.f32 %v2467, %v2566
        %v2599 = vmul.f32 %v2567, %v2567
        %v2600 = vmul.f32 %v2568, %v2568
        %v2601 = vmul.f32 %v2569, %v2569
        %v2602 = vmul.f32 %v2570, %v2570
        %v2603 = vmul.f32 %v2571, %v2571
        %v2604 = vmul.f32 %v2572, %v2572
        %v2605 = vmul.f32 %v2573, %v2573
        %v2606 = vmul.f32 %v2574, %v2574
        %v2607 = vmul.f32 %v2575, %v2575
        %v2608 = vmul.f32 %v2576, %v2576
        %v2609 = vmul.f32 %v2577, %v2577
        %v2610 = vmul.f32 %v2578, %v2578
        %v2611 = vmul.f32 %v2579, %v2579
        %v2612 = vmul.f32 %v2580, %v2580
        %v2613 = vmul.f32 %v2581, %v2581
        %v2614 = vmul.f32 %v2582, %v2582
        %v2615 = vmul.f32 %v2583, %v2583
        %v2616 = vmul.f32 %v2584, %v2584
        %v2617 = vmul.f32 %v2585, %v2585
        %v2618 = vmul.f32 %v2586, %v2586
        %v2619 = vmul.f32 %v2587, %v2587
        %v2620 = vmul.f32 %v2588, %v2588
        %v2621 = vmul.f32 %v2589, %v2589
        %v2622 = vmul.f32 %v2590, %v2590
        %v2623 = vmul.f32 %v2591, %v2591
        %v2624 = vmul.f32 %v2592, %v2592
        %v2625 = vmul.f32 %v2593, %v2593
        %v2626 = vmul.f32 %v2594, %v2594
        %v2627 = vmul.f32 %v2595, %v2595
        %v2628 = vmul.f32 %v2596, %v2596
        %v2629 = vmul.f32 %v2597, %v2597
        %v2630 = vmul.f32 %v2598, %v2598
        %2631 = vadd.xlane.f32.xlu0 %v2599
        %v2632 = vpop.xlane.xlu0 %2631
        %2633 = vadd.xlane.f32.xlu0 %v2600
        %v2634 = vpop.xlane.xlu0 %2633
        %2635 = vadd.xlane.f32.xlu0 %v2601
        %v2636 = vpop.xlane.xlu0 %2635
        %2637 = vadd.xlane.f32.xlu0 %v2602
        %v2638 = vpop.xlane.xlu0 %2637
        %2639 = vadd.xlane.f32.xlu0 %v2603
        %v2640 = vpop.xlane.xlu0 %2639
        %2641 = vadd.xlane.f32.xlu0 %v2604
        %v2642 = vpop.xlane.xlu0 %2641
        %2643 = vadd.xlane.f32.xlu0 %v2605
        %v2644 = vpop.xlane.xlu0 %2643
        %2645 = vadd.xlane.f32.xlu0 %v2606
        %v2646 = vpop.xlane.xlu0 %2645
        %2647 = vadd.xlane.f32.xlu0 %v2607
        %v2648 = vpop.xlane.xlu0 %2647
        %2649 = vadd.xlane.f32.xlu0 %v2608
        %v2650 = vpop.xlane.xlu0 %2649
        %2651 = vadd.xlane.f32.xlu0 %v2609
        %v2652 = vpop.xlane.xlu0 %2651
        %2653 = vadd.xlane.f32.xlu0 %v2610
        %v2654 = vpop.xlane.xlu0 %2653
        %2655 = vadd.xlane.f32.xlu0 %v2611
        %v2656 = vpop.xlane.xlu0 %2655
        %2657 = vadd.xlane.f32.xlu0 %v2612
        %v2658 = vpop.xlane.xlu0 %2657
        %2659 = vadd.xlane.f32.xlu0 %v2613
        %v2660 = vpop.xlane.xlu0 %2659
        %2661 = vadd.xlane.f32.xlu0 %v2614
        %v2662 = vpop.xlane.xlu0 %2661
        %2663 = vadd.xlane.f32.xlu0 %v2615
        %v2664 = vpop.xlane.xlu0 %2663
        %2665 = vadd.xlane.f32.xlu0 %v2616
        %v2666 = vpop.xlane.xlu0 %2665
        %2667 = vadd.xlane.f32.xlu0 %v2617
        %v2668 = vpop.xlane.xlu0 %2667
        %2669 = vadd.xlane.f32.xlu0 %v2618
        %v2670 = vpop.xlane.xlu0 %2669
        %2671 = vadd.xlane.f32.xlu0 %v2619
        %v2672 = vpop.xlane.xlu0 %2671
        %2673 = vadd.xlane.f32.xlu0 %v2620
        %v2674 = vpop.xlane.xlu0 %2673
        %2675 = vadd.xlane.f32.xlu0 %v2621
        %v2676 = vpop.xlane.xlu0 %2675
        %2677 = vadd.xlane.f32.xlu0 %v2622
        %v2678 = vpop.xlane.xlu0 %2677
        %2679 = vadd.xlane.f32.xlu0 %v2623
        %v2680 = vpop.xlane.xlu0 %2679
        %2681 = vadd.xlane.f32.xlu0 %v2624
        %v2682 = vpop.xlane.xlu0 %2681
        %2683 = vadd.xlane.f32.xlu0 %v2625
        %v2684 = vpop.xlane.xlu0 %2683
        %2685 = vadd.xlane.f32.xlu0 %v2626
        %v2686 = vpop.xlane.xlu0 %2685
        %2687 = vadd.xlane.f32.xlu0 %v2627
        %v2688 = vpop.xlane.xlu0 %2687
        %2689 = vadd.xlane.f32.xlu0 %v2628
        %v2690 = vpop.xlane.xlu0 %2689
        %2691 = vadd.xlane.f32.xlu0 %v2629
        %v2692 = vpop.xlane.xlu0 %2691
        %2693 = vadd.xlane.f32.xlu0 %v2630
        %v2694 = vpop.xlane.xlu0 %2693
        %v2695 = vmul.f32 %v2632, %v2534
        %v2696 = vmul.f32 %v2634, %v2534
        %v2697 = vmul.f32 %v2636, %v2534
        %v2698 = vmul.f32 %v2638, %v2534
        %v2699 = vmul.f32 %v2640, %v2534
        %v2700 = vmul.f32 %v2642, %v2534
        %v2701 = vmul.f32 %v2644, %v2534
        %v2702 = vmul.f32 %v2646, %v2534
        %v2703 = vmul.f32 %v2648, %v2534
        %v2704 = vmul.f32 %v2650, %v2534
        %v2705 = vmul.f32 %v2652, %v2534
        %v2706 = vmul.f32 %v2654, %v2534
        %v2707 = vmul.f32 %v2656, %v2534
        %v2708 = vmul.f32 %v2658, %v2534
        %v2709 = vmul.f32 %v2660, %v2534
        %v2710 = vmul.f32 %v2662, %v2534
        %v2711 = vmul.f32 %v2664, %v2534
        %v2712 = vmul.f32 %v2666, %v2534
        %v2713 = vmul.f32 %v2668, %v2534
        %v2714 = vmul.f32 %v2670, %v2534
        %v2715 = vmul.f32 %v2672, %v2534
        %v2716 = vmul.f32 %v2674, %v2534
        %v2717 = vmul.f32 %v2676, %v2534
        %v2718 = vmul.f32 %v2678, %v2534
        %v2719 = vmul.f32 %v2680, %v2534
        %v2720 = vmul.f32 %v2682, %v2534
        %v2721 = vmul.f32 %v2684, %v2534
        %v2722 = vmul.f32 %v2686, %v2534
        %v2723 = vmul.f32 %v2688, %v2534
        %v2724 = vmul.f32 %v2690, %v2534
        %v2725 = vmul.f32 %v2692, %v2534
        %v2726 = vmul.f32 %v2694, %v2534
        %v2727 = vadd.f32 %v2695, 1e-05
        %v2728 = vadd.f32 %v2696, 1e-05
        %v2729 = vadd.f32 %v2697, 1e-05
        %v2730 = vadd.f32 %v2698, 1e-05
        %v2731 = vadd.f32 %v2699, 1e-05
        %v2732 = vadd.f32 %v2700, 1e-05
        %v2733 = vadd.f32 %v2701, 1e-05
        %v2734 = vadd.f32 %v2702, 1e-05
        %v2735 = vadd.f32 %v2703, 1e-05
        %v2736 = vadd.f32 %v2704, 1e-05
        %v2737 = vadd.f32 %v2705, 1e-05
        %v2738 = vadd.f32 %v2706, 1e-05
        %v2739 = vadd.f32 %v2707, 1e-05
        %v2740 = vadd.f32 %v2708, 1e-05
        %v2741 = vadd.f32 %v2709, 1e-05
        %v2742 = vadd.f32 %v2710, 1e-05
        %v2743 = vadd.f32 %v2711, 1e-05
        %v2744 = vadd.f32 %v2712, 1e-05
        %v2745 = vadd.f32 %v2713, 1e-05
        %v2746 = vadd.f32 %v2714, 1e-05
        %v2747 = vadd.f32 %v2715, 1e-05
        %v2748 = vadd.f32 %v2716, 1e-05
        %v2749 = vadd.f32 %v2717, 1e-05
        %v2750 = vadd.f32 %v2718, 1e-05
        %v2751 = vadd.f32 %v2719, 1e-05
        %v2752 = vadd.f32 %v2720, 1e-05
        %v2753 = vadd.f32 %v2721, 1e-05
        %v2754 = vadd.f32 %v2722, 1e-05
        %v2755 = vadd.f32 %v2723, 1e-05
        %v2756 = vadd.f32 %v2724, 1e-05
        %v2757 = vadd.f32 %v2725, 1e-05
        %v2758 = vadd.f32 %v2726, 1e-05
        %v2759 = vrsqrt.pop %v2727
        %v2760 = vrsqrt.pop %v2728
        %v2761 = vrsqrt.pop %v2729
        %v2762 = vrsqrt.pop %v2730
        %v2763 = vrsqrt.pop %v2731
        %v2764 = vrsqrt.pop %v2732
        %v2765 = vrsqrt.pop %v2733
        %v2766 = vrsqrt.pop %v2734
        %v2767 = vrsqrt.pop %v2735
        %v2768 = vrsqrt.pop %v2736
        %v2769 = vrsqrt.pop %v2737
        %v2770 = vrsqrt.pop %v2738
        %v2771 = vrsqrt.pop %v2739
        %v2772 = vrsqrt.pop %v2740
        %v2773 = vrsqrt.pop %v2741
        %v2774 = vrsqrt.pop %v2742
        %v2775 = vrsqrt.pop %v2743
        %v2776 = vrsqrt.pop %v2744
        %v2777 = vrsqrt.pop %v2745
        %v2778 = vrsqrt.pop %v2746
        %v2779 = vrsqrt.pop %v2747
        %v2780 = vrsqrt.pop %v2748
        %v2781 = vrsqrt.pop %v2749
        %v2782 = vrsqrt.pop %v2750
        %v2783 = vrsqrt.pop %v2751
        %v2784 = vrsqrt.pop %v2752
        %v2785 = vrsqrt.pop %v2753
        %v2786 = vrsqrt.pop %v2754
        %v2787 = vrsqrt.pop %v2755
        %v2788 = vrsqrt.pop %v2756
        %v2789 = vrsqrt.pop %v2757
        %v2790 = vrsqrt.pop %v2758
        %v2791 = vmul.f32 %v2567, %v2759
        %v2792 = vmul.f32 %v2568, %v2760
        %v2793 = vmul.f32 %v2569, %v2761
        %v2794 = vmul.f32 %v2570, %v2762
        %v2795 = vmul.f32 %v2571, %v2763
        %v2796 = vmul.f32 %v2572, %v2764
        %v2797 = vmul.f32 %v2573, %v2765
        %v2798 = vmul.f32 %v2574, %v2766
        %v2799 = vmul.f32 %v2575, %v2767
        %v2800 = vmul.f32 %v2576, %v2768
        %v2801 = vmul.f32 %v2577, %v2769
        %v2802 = vmul.f32 %v2578, %v2770
        %v2803 = vmul.f32 %v2579, %v2771
        %v2804 = vmul.f32 %v2580, %v2772
        %v2805 = vmul.f32 %v2581, %v2773
        %v2806 = vmul.f32 %v2582, %v2774
        %v2807 = vmul.f32 %v2583, %v2775
        %v2808 = vmul.f32 %v2584, %v2776
        %v2809 = vmul.f32 %v2585, %v2777
        %v2810 = vmul.f32 %v2586, %v2778
        %v2811 = vmul.f32 %v2587, %v2779
        %v2812 = vmul.f32 %v2588, %v2780
        %v2813 = vmul.f32 %v2589, %v2781
        %v2814 = vmul.f32 %v2590, %v2782
        %v2815 = vmul.f32 %v2591, %v2783
        %v2816 = vmul.f32 %v2592, %v2784
        %v2817 = vmul.f32 %v2593, %v2785
        %v2818 = vmul.f32 %v2594, %v2786
        %v2819 = vmul.f32 %v2595, %v2787
        %v2820 = vmul.f32 %v2596, %v2788
        %v2821 = vmul.f32 %v2597, %v2789
        %v2822 = vmul.f32 %v2598, %v2790
        %v2824 = vlaneseq
        %v2825 = vshrl.u32 %v2824, 7
        %v2826 = vsub.s32 0, %v2825
        %v2827 = vrot.slane %v2468, %v2826
        %v2829 = vmul.f32 %v2791, %v2827
        %v2830 = vmul.f32 %v2792, %v2827
        %v2831 = vmul.f32 %v2793, %v2827
        %v2832 = vmul.f32 %v2794, %v2827
        %v2833 = vmul.f32 %v2795, %v2827
        %v2834 = vmul.f32 %v2796, %v2827
        %v2835 = vmul.f32 %v2797, %v2827
        %v2836 = vmul.f32 %v2798, %v2827
        %v2837 = vmul.f32 %v2799, %v2827
        %v2838 = vmul.f32 %v2800, %v2827
        %v2839 = vmul.f32 %v2801, %v2827
        %v2840 = vmul.f32 %v2802, %v2827
        %v2841 = vmul.f32 %v2803, %v2827
        %v2842 = vmul.f32 %v2804, %v2827
        %v2843 = vmul.f32 %v2805, %v2827
        %v2844 = vmul.f32 %v2806, %v2827
        %v2845 = vmul.f32 %v2807, %v2827
        %v2846 = vmul.f32 %v2808, %v2827
        %v2847 = vmul.f32 %v2809, %v2827
        %v2848 = vmul.f32 %v2810, %v2827
        %v2849 = vmul.f32 %v2811, %v2827
        %v2850 = vmul.f32 %v2812, %v2827
        %v2851 = vmul.f32 %v2813, %v2827
        %v2852 = vmul.f32 %v2814, %v2827
        %v2853 = vmul.f32 %v2815, %v2827
        %v2854 = vmul.f32 %v2816, %v2827
        %v2855 = vmul.f32 %v2817, %v2827
        %v2856 = vmul.f32 %v2818, %v2827
        %v2857 = vmul.f32 %v2819, %v2827
        %v2858 = vmul.f32 %v2820, %v2827
        %v2859 = vmul.f32 %v2821, %v2827
        %v2860 = vmul.f32 %v2822, %v2827
        %v2862 = vlaneseq
        %v2863 = vshrl.u32 %v2862, 7
        %v2864 = vsub.s32 0, %v2863
        %v2865 = vrot.slane %v2469, %v2864
        %v2867 = vadd.f32 %v2829, %v2865
        %v2868 = vadd.f32 %v2830, %v2865
        %v2869 = vadd.f32 %v2831, %v2865
        %v2870 = vadd.f32 %v2832, %v2865
        %v2871 = vadd.f32 %v2833, %v2865
        %v2872 = vadd.f32 %v2834, %v2865
        %v2873 = vadd.f32 %v2835, %v2865
        %v2874 = vadd.f32 %v2836, %v2865
        %v2875 = vadd.f32 %v2837, %v2865
        %v2876 = vadd.f32 %v2838, %v2865
        %v2877 = vadd.f32 %v2839, %v2865
        %v2878 = vadd.f32 %v2840, %v2865
        %v2879 = vadd.f32 %v2841, %v2865
        %v2880 = vadd.f32 %v2842, %v2865
        %v2881 = vadd.f32 %v2843, %v2865
        %v2882 = vadd.f32 %v2844, %v2865
        %v2883 = vadd.f32 %v2845, %v2865
        %v2884 = vadd.f32 %v2846, %v2865
        %v2885 = vadd.f32 %v2847, %v2865
        %v2886 = vadd.f32 %v2848, %v2865
        %v2887 = vadd.f32 %v2849, %v2865
        %v2888 = vadd.f32 %v2850, %v2865
        %v2889 = vadd.f32 %v2851, %v2865
        %v2890 = vadd.f32 %v2852, %v2865
        %v2891 = vadd.f32 %v2853, %v2865
        %v2892 = vadd.f32 %v2854, %v2865
        %v2893 = vadd.f32 %v2855, %v2865
        %v2894 = vadd.f32 %v2856, %v2865
        %v2895 = vadd.f32 %v2857, %v2865
        %v2896 = vadd.f32 %v2858, %v2865
        %v2897 = vadd.f32 %v2859, %v2865
        %v2898 = vadd.f32 %v2860, %v2865
        %v2899 = vpack.c.bf16 %v2868, %v2867
        %v2900 = vpack.c.bf16 %v2870, %v2869
        %v2901 = vpack.c.bf16 %v2872, %v2871
        %v2902 = vpack.c.bf16 %v2874, %v2873
        %v2903 = vpack.c.bf16 %v2876, %v2875
        %v2904 = vpack.c.bf16 %v2878, %v2877
        %v2905 = vpack.c.bf16 %v2880, %v2879
        %v2906 = vpack.c.bf16 %v2882, %v2881
        %v2907 = vpack.c.bf16 %v2884, %v2883
        %v2908 = vpack.c.bf16 %v2886, %v2885
        %v2909 = vpack.c.bf16 %v2888, %v2887
        %v2910 = vpack.c.bf16 %v2890, %v2889
        %v2911 = vpack.c.bf16 %v2892, %v2891
        %v2912 = vpack.c.bf16 %v2894, %v2893
        %v2913 = vpack.c.bf16 %v2896, %v2895
        %v2914 = vpack.c.bf16 %v2898, %v2897
        %v2915 = vld [vmem:[#allocation11] sm:$0xff]
        %v2916 = vld [vmem:[#allocation11 + $0x8] sm:$0xff]
        %v2917 = vld [vmem:[#allocation11 + $0x10] sm:$0xff]
        %v2918 = vld [vmem:[#allocation11 + $0x18] sm:$0xff]
        %v2919 = vld [vmem:[#allocation11 + $0x20] sm:$0xff]
        %v2920 = vld [vmem:[#allocation11 + $0x28] sm:$0xff]
        %v2921 = vld [vmem:[#allocation11 + $0x30] sm:$0xff]
        %v2922 = vld [vmem:[#allocation11 + $0x38] sm:$0xff]
        %v2923 = vld [vmem:[#allocation11 + $0x40] sm:$0xff]
        %v2924 = vld [vmem:[#allocation11 + $0x48] sm:$0xff]
        %v2925 = vld [vmem:[#allocation11 + $0x50] sm:$0xff]
        %v2926 = vld [vmem:[#allocation11 + $0x58] sm:$0xff]
        %v2927 = vld [vmem:[#allocation11 + $0x60] sm:$0xff]
        %v2928 = vld [vmem:[#allocation11 + $0x68] sm:$0xff]
        %v2929 = vld [vmem:[#allocation11 + $0x70] sm:$0xff]
        %v2930 = vld [vmem:[#allocation11 + $0x78] sm:$0xff]
        %v2931 = vld [vmem:[#allocation11 + $0x80] sm:$0xff]
        %v2932 = vld [vmem:[#allocation11 + $0x88] sm:$0xff]
        %v2933 = vld [vmem:[#allocation11 + $0x90] sm:$0xff]
        %v2934 = vld [vmem:[#allocation11 + $0x98] sm:$0xff]
        %v2935 = vld [vmem:[#allocation11 + $0xa0] sm:$0xff]
        %v2936 = vld [vmem:[#allocation11 + $0xa8] sm:$0xff]
        %v2937 = vld [vmem:[#allocation11 + $0xb0] sm:$0xff]
        %v2938 = vld [vmem:[#allocation11 + $0xb8] sm:$0xff]
        %v2939 = vld [vmem:[#allocation11 + $0xc0] sm:$0xff]
        %v2940 = vld [vmem:[#allocation11 + $0xc8] sm:$0xff]
        %v2941 = vld [vmem:[#allocation11 + $0xd0] sm:$0xff]
        %v2942 = vld [vmem:[#allocation11 + $0xd8] sm:$0xff]
        %v2943 = vld [vmem:[#allocation11 + $0xe0] sm:$0xff]
        %v2944 = vld [vmem:[#allocation11 + $0xe8] sm:$0xff]
        %v2945 = vld [vmem:[#allocation11 + $0xf0] sm:$0xff]
        %v2946 = vld [vmem:[#allocation11 + $0xf8] sm:$0xff]
        %v2947 = vld [vmem:[%s9] sm:$0xf]
        %v2949 = vlaneseq
        %v2950 = vshrl.u32 %v2949, 7
        %v2951 = vsub.s32 0, %v2950
        %v2952 = vrot.slane %v2947, %v2951
        %v2953 = vlaneseq
        %v2954 = vshrl.u32 %v2953, 7
        %v2955 = vsub.s32 1, %v2954
        %v2956 = vrot.slane %v2947, %v2955
        %v2957 = vlaneseq
        %v2958 = vshrl.u32 %v2957, 7
        %v2959 = vsub.s32 2, %v2958
        %v2960 = vrot.slane %v2947, %v2959
        %v2961 = vlaneseq
        %v2962 = vshrl.u32 %v2961, 7
        %v2963 = vsub.s32 3, %v2962
        %v2964 = vrot.slane %v2947, %v2963
        %v3001 = vunpack.c.l.b16 %v2915
        %v3002 = vunpack.c.h.b16 %v2915
        %v3003 = vunpack.c.l.b16 %v2916
        %v3004 = vunpack.c.h.b16 %v2916
        %v3005 = vunpack.c.l.b16 %v2917
        %v3006 = vunpack.c.h.b16 %v2917
        %v3007 = vunpack.c.l.b16 %v2918
        %v3008 = vunpack.c.h.b16 %v2918
        %v3009 = vunpack.c.l.b16 %v2919
        %v3010 = vunpack.c.h.b16 %v2919
        %v3011 = vunpack.c.l.b16 %v2920
        %v3012 = vunpack.c.h.b16 %v2920
        %v3013 = vunpack.c.l.b16 %v2921
        %v3014 = vunpack.c.h.b16 %v2921
        %v3015 = vunpack.c.l.b16 %v2922
        %v3016 = vunpack.c.h.b16 %v2922
        %v3017 = vunpack.c.l.b16 %v2923
        %v3018 = vunpack.c.h.b16 %v2923
        %v3019 = vunpack.c.l.b16 %v2924
        %v3020 = vunpack.c.h.b16 %v2924
        %v3021 = vunpack.c.l.b16 %v2925
        %v3022 = vunpack.c.h.b16 %v2925
        %v3023 = vunpack.c.l.b16 %v2926
        %v3024 = vunpack.c.h.b16 %v2926
        %v3025 = vunpack.c.l.b16 %v2927
        %v3026 = vunpack.c.h.b16 %v2927
        %v3027 = vunpack.c.l.b16 %v2928
        %v3028 = vunpack.c.h.b16 %v2928
        %v3029 = vunpack.c.l.b16 %v2929
        %v3030 = vunpack.c.h.b16 %v2929
        %v3031 = vunpack.c.l.b16 %v2930
        %v3032 = vunpack.c.h.b16 %v2930
        %v3033 = vunpack.c.l.b16 %v2931
        %v3034 = vunpack.c.h.b16 %v2931
        %v3035 = vunpack.c.l.b16 %v2932
        %v3036 = vunpack.c.h.b16 %v2932
        %v3037 = vunpack.c.l.b16 %v2933
        %v3038 = vunpack.c.h.b16 %v2933
        %v3039 = vunpack.c.l.b16 %v2934
        %v3040 = vunpack.c.h.b16 %v2934
        %v3041 = vunpack.c.l.b16 %v2935
        %v3042 = vunpack.c.h.b16 %v2935
        %v3043 = vunpack.c.l.b16 %v2936
        %v3044 = vunpack.c.h.b16 %v2936
        %v3045 = vunpack.c.l.b16 %v2937
        %v3046 = vunpack.c.h.b16 %v2937
        %v3047 = vunpack.c.l.b16 %v2938
        %v3048 = vunpack.c.h.b16 %v2938
        %v3049 = vunpack.c.l.b16 %v2939
        %v3050 = vunpack.c.h.b16 %v2939
        %v3051 = vunpack.c.l.b16 %v2940
        %v3052 = vunpack.c.h.b16 %v2940
        %v3053 = vunpack.c.l.b16 %v2941
        %v3054 = vunpack.c.h.b16 %v2941
        %v3055 = vunpack.c.l.b16 %v2942
        %v3056 = vunpack.c.h.b16 %v2942
        %v3057 = vunpack.c.l.b16 %v2943
        %v3058 = vunpack.c.h.b16 %v2943
        %v3059 = vunpack.c.l.b16 %v2944
        %v3060 = vunpack.c.h.b16 %v2944
        %v3061 = vunpack.c.l.b16 %v2945
        %v3062 = vunpack.c.h.b16 %v2945
        %v3063 = vunpack.c.l.b16 %v2946
        %v3064 = vunpack.c.h.b16 %v2946
        %v3065 = vpack.c.b16 %v3005, %v3001
        %v3066 = vpack.c.b16 %v3006, %v3002
        %v3067 = vpack.c.b16 %v3007, %v3003
        %v3068 = vpack.c.b16 %v3008, %v3004
        %v3069 = vpack.c.b16 %v3013, %v3009
        %v3070 = vpack.c.b16 %v3014, %v3010
        %v3071 = vpack.c.b16 %v3015, %v3011
        %v3072 = vpack.c.b16 %v3016, %v3012
        %v3073 = vpack.c.b16 %v3021, %v3017
        %v3074 = vpack.c.b16 %v3022, %v3018
        %v3075 = vpack.c.b16 %v3023, %v3019
        %v3076 = vpack.c.b16 %v3024, %v3020
        %v3077 = vpack.c.b16 %v3029, %v3025
        %v3078 = vpack.c.b16 %v3030, %v3026
        %v3079 = vpack.c.b16 %v3031, %v3027
        %v3080 = vpack.c.b16 %v3032, %v3028
        %v3081 = vpack.c.b16 %v3037, %v3033
        %v3082 = vpack.c.b16 %v3038, %v3034
        %v3083 = vpack.c.b16 %v3039, %v3035
        %v3084 = vpack.c.b16 %v3040, %v3036
        %v3085 = vpack.c.b16 %v3045, %v3041
        %v3086 = vpack.c.b16 %v3046, %v3042
        %v3087 = vpack.c.b16 %v3047, %v3043
        %v3088 = vpack.c.b16 %v3048, %v3044
        %v3089 = vpack.c.b16 %v3053, %v3049
        %v3090 = vpack.c.b16 %v3054, %v3050
        %v3091 = vpack.c.b16 %v3055, %v3051
        %v3092 = vpack.c.b16 %v3056, %v3052
        %v3093 = vpack.c.b16 %v3061, %v3057
        %v3094 = vpack.c.b16 %v3062, %v3058
        %v3095 = vpack.c.b16 %v3063, %v3059
        %v3096 = vpack.c.b16 %v3064, %v3060
        %3129 = vmatprep.subr.bf16.mxu0 %v3066
        %3130 = vmatpush1.bf16.msra.mxu0 %v3065
        %3131 = vmatprep.subr.bf16.mxu0 %v3070
        %3132 = vmatpush1.bf16.msra.mxu0 %v3069
        %3133 = vmatprep.subr.bf16.mxu0 %v3074
        %3134 = vmatpush1.bf16.msra.mxu0 %v3073
        %3135 = vmatprep.subr.bf16.mxu0 %v3078
        %3136 = vmatpush1.bf16.msra.mxu0 %v3077
        %3137 = vmatprep.subr.bf16.mxu0 %v3082
        %3138 = vmatpush1.bf16.msra.mxu0 %v3081
        %3139 = vmatprep.subr.bf16.mxu0 %v3086
        %3140 = vmatpush1.bf16.msra.mxu0 %v3085
        %3141 = vmatprep.subr.bf16.mxu0 %v3090
        %3142 = vmatpush1.bf16.msra.mxu0 %v3089
        %3143 = vmatprep.subr.bf16.mxu0 %v3094
        %3144 = vmatpush1.bf16.msra.mxu0 %v3093
        %3145 = vmatprep.subr.bf16.mxu0 0
        %3146 = vmatpush1.bf16.msra.mxu0 0
        %3147 = vmatprep.subr.bf16.mxu0 0
        %3148 = vmatpush1.bf16.msra.mxu0 0
        %3149 = vmatprep.subr.bf16.mxu0 0
        %3150 = vmatpush1.bf16.msra.mxu0 0
        %3151 = vmatprep.subr.bf16.mxu0 0
        %3152 = vmatpush1.bf16.msra.mxu0 0
        %3153 = vmatprep.subr.bf16.mxu0 0
        %3154 = vmatpush1.bf16.msra.mxu0 0
        %3155 = vmatprep.subr.bf16.mxu0 0
        %3156 = vmatpush1.bf16.msra.mxu0 0
        %3157 = vmatprep.subr.bf16.mxu0 0
        %3158 = vmatpush1.bf16.msra.mxu0 0
        %3159 = vmatprep.subr.bf16.mxu0 0
        %3160 = vmatpush1.bf16.msra.mxu0 0
        %3161 = vmatprep.mubr.bf16.mxu0 0
        %3162 = vmatmul.mubr.bf16.gmra.mrb[0].mxu0 %v2899
        %v3163 = vpop.f32.mrb[0].mxu0
        %v3164 = vadd.f32 %v2952, %v3163
        %v3165 = vpop.f32.mrb[0].mxu0
        %v3166 = vadd.f32 %v2956, %v3165
        %v3167 = vpop.f32.mrb[0].mxu0
        %v3168 = vadd.f32 %v2952, %v3167
        %v3169 = vpop.f32.mrb[0].mxu0
        %v3170 = vadd.f32 %v2956, %v3169
        %3171 = vmatprep.mubr.bf16.mxu0 0
        %3172 = vmatmul.mubr.bf16.gmra.mrb[0].mxu0 %v2900
        %v3173 = vpop.f32.mrb[0].mxu0
        %v3174 = vadd.f32 %v2952, %v3173
        %v3175 = vpop.f32.mrb[0].mxu0
        %v3176 = vadd.f32 %v2956, %v3175
        %v3177 = vpop.f32.mrb[0].mxu0
        %v3178 = vadd.f32 %v2952, %v3177
        %v3179 = vpop.f32.mrb[0].mxu0
        %v3180 = vadd.f32 %v2956, %v3179
        %3181 = vmatprep.mubr.bf16.mxu0 0
        %3182 = vmatmul.mubr.bf16.gmra.mrb[0].mxu0 %v2901
        %v3183 = vpop.f32.mrb[0].mxu0
        %v3184 = vadd.f32 %v2952, %v3183
        %v3185 = vpop.f32.mrb[0].mxu0
        %v3186 = vadd.f32 %v2956, %v3185
        %v3187 = vpop.f32.mrb[0].mxu0
        %v3188 = vadd.f32 %v2952, %v3187
        %v3189 = vpop.f32.mrb[0].mxu0
        %v3190 = vadd.f32 %v2956, %v3189
        %3191 = vmatprep.mubr.bf16.mxu0 0
        %3192 = vmatmul.mubr.bf16.gmra.mrb[0].mxu0 %v2902
        %v3193 = vpop.f32.mrb[0].mxu0
        %v3194 = vadd.f32 %v2952, %v3193
        %v3195 = vpop.f32.mrb[0].mxu0
        %v3196 = vadd.f32 %v2956, %v3195
        %v3197 = vpop.f32.mrb[0].mxu0
        %v3198 = vadd.f32 %v2952, %v3197
        %v3199 = vpop.f32.mrb[0].mxu0
        %v3200 = vadd.f32 %v2956, %v3199
        %3201 = vmatprep.mubr.bf16.mxu0 0
        %3202 = vmatmul.mubr.bf16.gmra.mrb[0].mxu0 %v2903
        %v3203 = vpop.f32.mrb[0].mxu0
        %v3204 = vadd.f32 %v2952, %v3203
        %v3205 = vpop.f32.mrb[0].mxu0
        %v3206 = vadd.f32 %v2956, %v3205
        %v3207 = vpop.f32.mrb[0].mxu0
        %v3208 = vadd.f32 %v2952, %v3207
        %v3209 = vpop.f32.mrb[0].mxu0
        %v3210 = vadd.f32 %v2956, %v3209
        %3211 = vmatprep.mubr.bf16.mxu0 0
        %3212 = vmatmul.mubr.bf16.gmra.mrb[0].mxu0 %v2904
        %v3213 = vpop.f32.mrb[0].mxu0
        %v3214 = vadd.f32 %v2952, %v3213
        %v3215 = vpop.f32.mrb[0].mxu0
        %v3216 = vadd.f32 %v2956, %v3215
        %v3217 = vpop.f32.mrb[0].mxu0
        %v3218 = vadd.f32 %v2952, %v3217
        %v3219 = vpop.f32.mrb[0].mxu0
        %v3220 = vadd.f32 %v2956, %v3219
        %3221 = vmatprep.mubr.bf16.mxu0 0
        %3222 = vmatmul.mubr.bf16.gmra.mrb[0].mxu0 %v2905
        %v3223 = vpop.f32.mrb[0].mxu0
        %v3224 = vadd.f32 %v2952, %v3223
        %v3225 = vpop.f32.mrb[0].mxu0
        %v3226 = vadd.f32 %v2956, %v3225
        %v3227 = vpop.f32.mrb[0].mxu0
        %v3228 = vadd.f32 %v2952, %v3227
        %v3229 = vpop.f32.mrb[0].mxu0
        %v3230 = vadd.f32 %v2956, %v3229
        %3231 = vmatprep.mubr.bf16.mxu0 0
        %3232 = vmatmul.mubr.bf16.gmra.mrb[0].mxu0 %v2906
        %v3233 = vpop.f32.mrb[0].mxu0
        %v3234 = vadd.f32 %v2952, %v3233
        %v3235 = vpop.f32.mrb[0].mxu0
        %v3236 = vadd.f32 %v2956, %v3235
        %v3237 = vpop.f32.mrb[0].mxu0
        %v3238 = vadd.f32 %v2952, %v3237
        %v3239 = vpop.f32.mrb[0].mxu0
        %v3240 = vadd.f32 %v2956, %v3239
        %3241 = vmatprep.mubr.bf16.mxu0 0
        %3242 = vmatmul.mubr.bf16.gmra.mrb[0].mxu0 %v2907
        %v3243 = vpop.f32.mrb[0].mxu0
        %v3244 = vadd.f32 %v2952, %v3243
        %v3245 = vpop.f32.mrb[0].mxu0
        %v3246 = vadd.f32 %v2956, %v3245
        %v3247 = vpop.f32.mrb[0].mxu0
        %v3248 = vadd.f32 %v2952, %v3247
        %v3249 = vpop.f32.mrb[0].mxu0
        %v3250 = vadd.f32 %v2956, %v3249
        %3251 = vmatprep.mubr.bf16.mxu0 0
        %3252 = vmatmul.mubr.bf16.gmra.mrb[0].mxu0 %v2908
        %v3253 = vpop.f32.mrb[0].mxu0
        %v3254 = vadd.f32 %v2952, %v3253
        %v3255 = vpop.f32.mrb[0].mxu0
        %v3256 = vadd.f32 %v2956, %v3255
        %v3257 = vpop.f32.mrb[0].mxu0
        %v3258 = vadd.f32 %v2952, %v3257
        %v3259 = vpop.f32.mrb[0].mxu0
        %v3260 = vadd.f32 %v2956, %v3259
        %3261 = vmatprep.mubr.bf16.mxu0 0
        %3262 = vmatmul.mubr.bf16.gmra.mrb[0].mxu0 %v2909
        %v3263 = vpop.f32.mrb[0].mxu0
        %v3264 = vadd.f32 %v2952, %v3263
        %v3265 = vpop.f32.mrb[0].mxu0
        %v3266 = vadd.f32 %v2956, %v3265
        %v3267 = vpop.f32.mrb[0].mxu0
        %v3268 = vadd.f32 %v2952, %v3267
        %v3269 = vpop.f32.mrb[0].mxu0
        %v3270 = vadd.f32 %v2956, %v3269
        %3271 = vmatprep.mubr.bf16.mxu0 0
        %3272 = vmatmul.mubr.bf16.gmra.mrb[0].mxu0 %v2910
        %v3273 = vpop.f32.mrb[0].mxu0
        %v3274 = vadd.f32 %v2952, %v3273
        %v3275 = vpop.f32.mrb[0].mxu0
        %v3276 = vadd.f32 %v2956, %v3275
        %v3277 = vpop.f32.mrb[0].mxu0
        %v3278 = vadd.f32 %v2952, %v3277
        %v3279 = vpop.f32.mrb[0].mxu0
        %v3280 = vadd.f32 %v2956, %v3279
        %3281 = vmatprep.mubr.bf16.mxu0 0
        %3282 = vmatmul.mubr.bf16.gmra.mrb[0].mxu0 %v2911
        %v3283 = vpop.f32.mrb[0].mxu0
        %v3284 = vadd.f32 %v2952, %v3283
        %v3285 = vpop.f32.mrb[0].mxu0
        %v3286 = vadd.f32 %v2956, %v3285
        %v3287 = vpop.f32.mrb[0].mxu0
        %v3288 = vadd.f32 %v2952, %v3287
        %v3289 = vpop.f32.mrb[0].mxu0
        %v3290 = vadd.f32 %v2956, %v3289
        %3291 = vmatprep.mubr.bf16.mxu0 0
        %3292 = vmatmul.mubr.bf16.gmra.mrb[0].mxu0 %v2912
        %v3293 = vpop.f32.mrb[0].mxu0
        %v3294 = vadd.f32 %v2952, %v3293
        %v3295 = vpop.f32.mrb[0].mxu0
        %v3296 = vadd.f32 %v2956, %v3295
        %v3297 = vpop.f32.mrb[0].mxu0
        %v3298 = vadd.f32 %v2952, %v3297
        %v3299 = vpop.f32.mrb[0].mxu0
        %v3300 = vadd.f32 %v2956, %v3299
        %3301 = vmatprep.mubr.bf16.mxu0 0
        %3302 = vmatmul.mubr.bf16.gmra.mrb[0].mxu0 %v2913
        %v3303 = vpop.f32.mrb[0].mxu0
        %v3304 = vadd.f32 %v2952, %v3303
        %v3305 = vpop.f32.mrb[0].mxu0
        %v3306 = vadd.f32 %v2956, %v3305
        %v3307 = vpop.f32.mrb[0].mxu0
        %v3308 = vadd.f32 %v2952, %v3307
        %v3309 = vpop.f32.mrb[0].mxu0
        %v3310 = vadd.f32 %v2956, %v3309
        %3311 = vmatprep.mubr.bf16.mxu0 0
        %3312 = vmatmul.mubr.bf16.gmra.mrb[0].mxu0 %v2914
        %v3313 = vpop.f32.mrb[0].mxu0
        %v3314 = vadd.f32 %v2952, %v3313
        %v3315 = vpop.f32.mrb[0].mxu0
        %v3316 = vadd.f32 %v2956, %v3315
        %v3317 = vpop.f32.mrb[0].mxu0
        %v3318 = vadd.f32 %v2952, %v3317
        %v3319 = vpop.f32.mrb[0].mxu0
        %v3320 = vadd.f32 %v2956, %v3319
        %3321 = vdwg.mxu0
        %3322 = vmatprep.subr.bf16.mxu0 %v3068
        %3323 = vmatpush1.bf16.msra.mxu0 %v3067
        %3324 = vmatprep.subr.bf16.mxu0 %v3072
        %3325 = vmatpush1.bf16.msra.mxu0 %v3071
        %3326 = vmatprep.subr.bf16.mxu0 %v3076
        %3327 = vmatpush1.bf16.msra.mxu0 %v3075
        %3328 = vmatprep.subr.bf16.mxu0 %v3080
        %3329 = vmatpush1.bf16.msra.mxu0 %v3079
        %3330 = vmatprep.subr.bf16.mxu0 %v3084
        %3331 = vmatpush1.bf16.msra.mxu0 %v3083
        %3332 = vmatprep.subr.bf16.mxu0 %v3088
        %3333 = vmatpush1.bf16.msra.mxu0 %v3087
        %3334 = vmatprep.subr.bf16.mxu0 %v3092
        %3335 = vmatpush1.bf16.msra.mxu0 %v3091
        %3336 = vmatprep.subr.bf16.mxu0 %v3096
        %3337 = vmatpush1.bf16.msra.mxu0 %v3095
        %3338 = vmatprep.subr.bf16.mxu0 0
        %3339 = vmatpush1.bf16.msra.mxu0 0
        %3340 = vmatprep.subr.bf16.mxu0 0
        %3341 = vmatpush1.bf16.msra.mxu0 0
        %3342 = vmatprep.subr.bf16.mxu0 0
        %3343 = vmatpush1.bf16.msra.mxu0 0
        %3344 = vmatprep.subr.bf16.mxu0 0
        %3345 = vmatpush1.bf16.msra.mxu0 0
        %3346 = vmatprep.subr.bf16.mxu0 0
        %3347 = vmatpush1.bf16.msra.mxu0 0
        %3348 = vmatprep.subr.bf16.mxu0 0
        %3349 = vmatpush1.bf16.msra.mxu0 0
        %3350 = vmatprep.subr.bf16.mxu0 0
        %3351 = vmatpush1.bf16.msra.mxu0 0
        %3352 = vmatprep.subr.bf16.mxu0 0
        %3353 = vmatpush1.bf16.msra.mxu0 0
        %3354 = vmatprep.mubr.bf16.mxu0 0
        %3355 = vmatmul.mubr.bf16.gmra.mrb[0].mxu0 %v2899
        %v3356 = vpop.f32.mrb[0].mxu0
        %v3357 = vadd.f32 %v2960, %v3356
        %v3358 = vpop.f32.mrb[0].mxu0
        %v3359 = vadd.f32 %v2964, %v3358
        %v3360 = vpop.f32.mrb[0].mxu0
        %v3361 = vadd.f32 %v2960, %v3360
        %v3362 = vpop.f32.mrb[0].mxu0
        %v3363 = vadd.f32 %v2964, %v3362
        %3364 = vmatprep.mubr.bf16.mxu0 0
        %3365 = vmatmul.mubr.bf16.gmra.mrb[0].mxu0 %v2900
        %v3366 = vpop.f32.mrb[0].mxu0
        %v3367 = vadd.f32 %v2960, %v3366
        %v3368 = vpop.f32.mrb[0].mxu0
        %v3369 = vadd.f32 %v2964, %v3368
        %v3370 = vpop.f32.mrb[0].mxu0
        %v3371 = vadd.f32 %v2960, %v3370
        %v3372 = vpop.f32.mrb[0].mxu0
        %v3373 = vadd.f32 %v2964, %v3372
        %3374 = vmatprep.mubr.bf16.mxu0 0
        %3375 = vmatmul.mubr.bf16.gmra.mrb[0].mxu0 %v2901
        %v3376 = vpop.f32.mrb[0].mxu0
        %v3377 = vadd.f32 %v2960, %v3376
        %v3378 = vpop.f32.mrb[0].mxu0
        %v3379 = vadd.f32 %v2964, %v3378
        %v3380 = vpop.f32.mrb[0].mxu0
        %v3381 = vadd.f32 %v2960, %v3380
        %v3382 = vpop.f32.mrb[0].mxu0
        %v3383 = vadd.f32 %v2964, %v3382
        %3384 = vmatprep.mubr.bf16.mxu0 0
        %3385 = vmatmul.mubr.bf16.gmra.mrb[0].mxu0 %v2902
        %v3386 = vpop.f32.mrb[0].mxu0
        %v3387 = vadd.f32 %v2960, %v3386
        %v3388 = vpop.f32.mrb[0].mxu0
        %v3389 = vadd.f32 %v2964, %v3388
        %v3390 = vpop.f32.mrb[0].mxu0
        %v3391 = vadd.f32 %v2960, %v3390
        %v3392 = vpop.f32.mrb[0].mxu0
        %v3393 = vadd.f32 %v2964, %v3392
        %3394 = vmatprep.mubr.bf16.mxu0 0
        %3395 = vmatmul.mubr.bf16.gmra.mrb[0].mxu0 %v2903
        %v3396 = vpop.f32.mrb[0].mxu0
        %v3397 = vadd.f32 %v2960, %v3396
        %v3398 = vpop.f32.mrb[0].mxu0
        %v3399 = vadd.f32 %v2964, %v3398
        %v3400 = vpop.f32.mrb[0].mxu0
        %v3401 = vadd.f32 %v2960, %v3400
        %v3402 = vpop.f32.mrb[0].mxu0
        %v3403 = vadd.f32 %v2964, %v3402
        %3404 = vmatprep.mubr.bf16.mxu0 0
        %3405 = vmatmul.mubr.bf16.gmra.mrb[0].mxu0 %v2904
        %v3406 = vpop.f32.mrb[0].mxu0
        %v3407 = vadd.f32 %v2960, %v3406
        %v3408 = vpop.f32.mrb[0].mxu0
        %v3409 = vadd.f32 %v2964, %v3408
        %v3410 = vpop.f32.mrb[0].mxu0
        %v3411 = vadd.f32 %v2960, %v3410
        %v3412 = vpop.f32.mrb[0].mxu0
        %v3413 = vadd.f32 %v2964, %v3412
        %3414 = vmatprep.mubr.bf16.mxu0 0
        %3415 = vmatmul.mubr.bf16.gmra.mrb[0].mxu0 %v2905
        %v3416 = vpop.f32.mrb[0].mxu0
        %v3417 = vadd.f32 %v2960, %v3416
        %v3418 = vpop.f32.mrb[0].mxu0
        %v3419 = vadd.f32 %v2964, %v3418
        %v3420 = vpop.f32.mrb[0].mxu0
        %v3421 = vadd.f32 %v2960, %v3420
        %v3422 = vpop.f32.mrb[0].mxu0
        %v3423 = vadd.f32 %v2964, %v3422
        %3424 = vmatprep.mubr.bf16.mxu0 0
        %3425 = vmatmul.mubr.bf16.gmra.mrb[0].mxu0 %v2906
        %v3426 = vpop.f32.mrb[0].mxu0
        %v3427 = vadd.f32 %v2960, %v3426
        %v3428 = vpop.f32.mrb[0].mxu0
        %v3429 = vadd.f32 %v2964, %v3428
        %v3430 = vpop.f32.mrb[0].mxu0
        %v3431 = vadd.f32 %v2960, %v3430
        %v3432 = vpop.f32.mrb[0].mxu0
        %v3433 = vadd.f32 %v2964, %v3432
        %3434 = vmatprep.mubr.bf16.mxu0 0
        %3435 = vmatmul.mubr.bf16.gmra.mrb[0].mxu0 %v2907
        %v3436 = vpop.f32.mrb[0].mxu0
        %v3437 = vadd.f32 %v2960, %v3436
        %v3438 = vpop.f32.mrb[0].mxu0
        %v3439 = vadd.f32 %v2964, %v3438
        %v3440 = vpop.f32.mrb[0].mxu0
        %v3441 = vadd.f32 %v2960, %v3440
        %v3442 = vpop.f32.mrb[0].mxu0
        %v3443 = vadd.f32 %v2964, %v3442
        %3444 = vmatprep.mubr.bf16.mxu0 0
        %3445 = vmatmul.mubr.bf16.gmra.mrb[0].mxu0 %v2908
        %v3446 = vpop.f32.mrb[0].mxu0
        %v3447 = vadd.f32 %v2960, %v3446
        %v3448 = vpop.f32.mrb[0].mxu0
        %v3449 = vadd.f32 %v2964, %v3448
        %v3450 = vpop.f32.mrb[0].mxu0
        %v3451 = vadd.f32 %v2960, %v3450
        %v3452 = vpop.f32.mrb[0].mxu0
        %v3453 = vadd.f32 %v2964, %v3452
        %3454 = vmatprep.mubr.bf16.mxu0 0
        %3455 = vmatmul.mubr.bf16.gmra.mrb[0].mxu0 %v2909
        %v3456 = vpop.f32.mrb[0].mxu0
        %v3457 = vadd.f32 %v2960, %v3456
        %v3458 = vpop.f32.mrb[0].mxu0
        %v3459 = vadd.f32 %v2964, %v3458
        %v3460 = vpop.f32.mrb[0].mxu0
        %v3461 = vadd.f32 %v2960, %v3460
        %v3462 = vpop.f32.mrb[0].mxu0
        %v3463 = vadd.f32 %v2964, %v3462
        %3464 = vmatprep.mubr.bf16.mxu0 0
        %3465 = vmatmul.mubr.bf16.gmra.mrb[0].mxu0 %v2910
        %v3466 = vpop.f32.mrb[0].mxu0
        %v3467 = vadd.f32 %v2960, %v3466
        %v3468 = vpop.f32.mrb[0].mxu0
        %v3469 = vadd.f32 %v2964, %v3468
        %v3470 = vpop.f32.mrb[0].mxu0
        %v3471 = vadd.f32 %v2960, %v3470
        %v3472 = vpop.f32.mrb[0].mxu0
        %v3473 = vadd.f32 %v2964, %v3472
        %3474 = vmatprep.mubr.bf16.mxu0 0
        %3475 = vmatmul.mubr.bf16.gmra.mrb[0].mxu0 %v2911
        %v3476 = vpop.f32.mrb[0].mxu0
        %v3477 = vadd.f32 %v2960, %v3476
        %v3478 = vpop.f32.mrb[0].mxu0
        %v3479 = vadd.f32 %v2964, %v3478
        %v3480 = vpop.f32.mrb[0].mxu0
        %v3481 = vadd.f32 %v2960, %v3480
        %v3482 = vpop.f32.mrb[0].mxu0
        %v3483 = vadd.f32 %v2964, %v3482
        %3484 = vmatprep.mubr.bf16.mxu0 0
        %3485 = vmatmul.mubr.bf16.gmra.mrb[0].mxu0 %v2912
        %v3486 = vpop.f32.mrb[0].mxu0
        %v3487 = vadd.f32 %v2960, %v3486
        %v3488 = vpop.f32.mrb[0].mxu0
        %v3489 = vadd.f32 %v2964, %v3488
        %v3490 = vpop.f32.mrb[0].mxu0
        %v3491 = vadd.f32 %v2960, %v3490
        %v3492 = vpop.f32.mrb[0].mxu0
        %v3493 = vadd.f32 %v2964, %v3492
        %3494 = vmatprep.mubr.bf16.mxu0 0
        %3495 = vmatmul.mubr.bf16.gmra.mrb[0].mxu0 %v2913
        %v3496 = vpop.f32.mrb[0].mxu0
        %v3497 = vadd.f32 %v2960, %v3496
        %v3498 = vpop.f32.mrb[0].mxu0
        %v3499 = vadd.f32 %v2964, %v3498
        %v3500 = vpop.f32.mrb[0].mxu0
        %v3501 = vadd.f32 %v2960, %v3500
        %v3502 = vpop.f32.mrb[0].mxu0
        %v3503 = vadd.f32 %v2964, %v3502
        %3504 = vmatprep.mubr.bf16.mxu0 0
        %3505 = vmatmul.mubr.bf16.gmra.mrb[0].mxu0 %v2914
        %v3506 = vpop.f32.mrb[0].mxu0
        %v3507 = vadd.f32 %v2960, %v3506
        %v3508 = vpop.f32.mrb[0].mxu0
        %v3509 = vadd.f32 %v2964, %v3508
        %v3510 = vpop.f32.mrb[0].mxu0
        %v3511 = vadd.f32 %v2960, %v3510
        %v3512 = vpop.f32.mrb[0].mxu0
        %v3513 = vadd.f32 %v2964, %v3512
        %3514 = vdwg.mxu0
        %v3515 = vmax.f32 %v3164, 0.0
        %v3516 = vmax.f32 %v3166, 0.0
        %v3517 = vmax.f32 %v3357, 0.0
        %v3518 = vmax.f32 %v3359, 0.0
        %v3519 = vmax.f32 %v3168, 0.0
        %v3520 = vmax.f32 %v3170, 0.0
        %v3521 = vmax.f32 %v3361, 0.0
        %v3522 = vmax.f32 %v3363, 0.0
        %v3523 = vmax.f32 %v3174, 0.0
        %v3524 = vmax.f32 %v3176, 0.0
        %v3525 = vmax.f32 %v3367, 0.0
        %v3526 = vmax.f32 %v3369, 0.0
        %v3527 = vmax.f32 %v3178, 0.0
        %v3528 = vmax.f32 %v3180, 0.0
        %v3529 = vmax.f32 %v3371, 0.0
        %v3530 = vmax.f32 %v3373, 0.0
        %v3531 = vmax.f32 %v3184, 0.0
        %v3532 = vmax.f32 %v3186, 0.0
        %v3533 = vmax.f32 %v3377, 0.0
        %v3534 = vmax.f32 %v3379, 0.0
        %v3535 = vmax.f32 %v3188, 0.0
        %v3536 = vmax.f32 %v3190, 0.0
        %v3537 = vmax.f32 %v3381, 0.0
        %v3538 = vmax.f32 %v3383, 0.0
        %v3539 = vmax.f32 %v3194, 0.0
        %v3540 = vmax.f32 %v3196, 0.0
        %v3541 = vmax.f32 %v3387, 0.0
        %v3542 = vmax.f32 %v3389, 0.0
        %v3543 = vmax.f32 %v3198, 0.0
        %v3544 = vmax.f32 %v3200, 0.0
        %v3545 = vmax.f32 %v3391, 0.0
        %v3546 = vmax.f32 %v3393, 0.0
        %v3547 = vmax.f32 %v3204, 0.0
        %v3548 = vmax.f32 %v3206, 0.0
        %v3549 = vmax.f32 %v3397, 0.0
        %v3550 = vmax.f32 %v3399, 0.0
        %v3551 = vmax.f32 %v3208, 0.0
        %v3552 = vmax.f32 %v3210, 0.0
        %v3553 = vmax.f32 %v3401, 0.0
        %v3554 = vmax.f32 %v3403, 0.0
        %v3555 = vmax.f32 %v3214, 0.0
        %v3556 = vmax.f32 %v3216, 0.0
        %v3557 = vmax.f32 %v3407, 0.0
        %v3558 = vmax.f32 %v3409, 0.0
        %v3559 = vmax.f32 %v3218, 0.0
        %v3560 = vmax.f32 %v3220, 0.0
        %v3561 = vmax.f32 %v3411, 0.0
        %v3562 = vmax.f32 %v3413, 0.0
        %v3563 = vmax.f32 %v3224, 0.0
        %v3564 = vmax.f32 %v3226, 0.0
        %v3565 = vmax.f32 %v3417, 0.0
        %v3566 = vmax.f32 %v3419, 0.0
        %v3567 = vmax.f32 %v3228, 0.0
        %v3568 = vmax.f32 %v3230, 0.0
        %v3569 = vmax.f32 %v3421, 0.0
        %v3570 = vmax.f32 %v3423, 0.0
        %v3571 = vmax.f32 %v3234, 0.0
        %v3572 = vmax.f32 %v3236, 0.0
        %v3573 = vmax.f32 %v3427, 0.0
        %v3574 = vmax.f32 %v3429, 0.0
        %v3575 = vmax.f32 %v3238, 0.0
        %v3576 = vmax.f32 %v3240, 0.0
        %v3577 = vmax.f32 %v3431, 0.0
        %v3578 = vmax.f32 %v3433, 0.0
        %v3579 = vmax.f32 %v3244, 0.0
        %v3580 = vmax.f32 %v3246, 0.0
        %v3581 = vmax.f32 %v3437, 0.0
        %v3582 = vmax.f32 %v3439, 0.0
        %v3583 = vmax.f32 %v3248, 0.0
        %v3584 = vmax.f32 %v3250, 0.0
        %v3585 = vmax.f32 %v3441, 0.0
        %v3586 = vmax.f32 %v3443, 0.0
        %v3587 = vmax.f32 %v3254, 0.0
        %v3588 = vmax.f32 %v3256, 0.0
        %v3589 = vmax.f32 %v3447, 0.0
        %v3590 = vmax.f32 %v3449, 0.0
        %v3591 = vmax.f32 %v3258, 0.0
        %v3592 = vmax.f32 %v3260, 0.0
        %v3593 = vmax.f32 %v3451, 0.0
        %v3594 = vmax.f32 %v3453, 0.0
        %v3595 = vmax.f32 %v3264, 0.0
        %v3596 = vmax.f32 %v3266, 0.0
        %v3597 = vmax.f32 %v3457, 0.0
        %v3598 = vmax.f32 %v3459, 0.0
        %v3599 = vmax.f32 %v3268, 0.0
        %v3600 = vmax.f32 %v3270, 0.0
        %v3601 = vmax.f32 %v3461, 0.0
        %v3602 = vmax.f32 %v3463, 0.0
        %v3603 = vmax.f32 %v3274, 0.0
        %v3604 = vmax.f32 %v3276, 0.0
        %v3605 = vmax.f32 %v3467, 0.0
        %v3606 = vmax.f32 %v3469, 0.0
        %v3607 = vmax.f32 %v3278, 0.0
        %v3608 = vmax.f32 %v3280, 0.0
        %v3609 = vmax.f32 %v3471, 0.0
        %v3610 = vmax.f32 %v3473, 0.0
        %v3611 = vmax.f32 %v3284, 0.0
        %v3612 = vmax.f32 %v3286, 0.0
        %v3613 = vmax.f32 %v3477, 0.0
        %v3614 = vmax.f32 %v3479, 0.0
        %v3615 = vmax.f32 %v3288, 0.0
        %v3616 = vmax.f32 %v3290, 0.0
        %v3617 = vmax.f32 %v3481, 0.0
        %v3618 = vmax.f32 %v3483, 0.0
        %v3619 = vmax.f32 %v3294, 0.0
        %v3620 = vmax.f32 %v3296, 0.0
        %v3621 = vmax.f32 %v3487, 0.0
        %v3622 = vmax.f32 %v3489, 0.0
        %v3623 = vmax.f32 %v3298, 0.0
        %v3624 = vmax.f32 %v3300, 0.0
        %v3625 = vmax.f32 %v3491, 0.0
        %v3626 = vmax.f32 %v3493, 0.0
        %v3627 = vmax.f32 %v3304, 0.0
        %v3628 = vmax.f32 %v3306, 0.0
        %v3629 = vmax.f32 %v3497, 0.0
        %v3630 = vmax.f32 %v3499, 0.0
        %v3631 = vmax.f32 %v3308, 0.0
        %v3632 = vmax.f32 %v3310, 0.0
        %v3633 = vmax.f32 %v3501, 0.0
        %v3634 = vmax.f32 %v3503, 0.0
        %v3635 = vmax.f32 %v3314, 0.0
        %v3636 = vmax.f32 %v3316, 0.0
        %v3637 = vmax.f32 %v3507, 0.0
        %v3638 = vmax.f32 %v3509, 0.0
        %v3639 = vmax.f32 %v3318, 0.0
        %v3640 = vmax.f32 %v3320, 0.0
        %v3641 = vmax.f32 %v3511, 0.0
        %v3642 = vmax.f32 %v3513, 0.0
        %v3643 = vpack.c.bf16 %v3519, %v3515
        %v3644 = vpack.c.bf16 %v3520, %v3516
        %v3645 = vpack.c.bf16 %v3521, %v3517
        %v3646 = vpack.c.bf16 %v3522, %v3518
        %v3647 = vpack.c.bf16 %v3527, %v3523
        %v3648 = vpack.c.bf16 %v3528, %v3524
        %v3649 = vpack.c.bf16 %v3529, %v3525
        %v3650 = vpack.c.bf16 %v3530, %v3526
        %v3651 = vpack.c.bf16 %v3535, %v3531
        %v3652 = vpack.c.bf16 %v3536, %v3532
        %v3653 = vpack.c.bf16 %v3537, %v3533
        %v3654 = vpack.c.bf16 %v3538, %v3534
        %v3655 = vpack.c.bf16 %v3543, %v3539
        %v3656 = vpack.c.bf16 %v3544, %v3540
        %v3657 = vpack.c.bf16 %v3545, %v3541
        %v3658 = vpack.c.bf16 %v3546, %v3542
        %v3659 = vpack.c.bf16 %v3551, %v3547
        %v3660 = vpack.c.bf16 %v3552, %v3548
        %v3661 = vpack.c.bf16 %v3553, %v3549
        %v3662 = vpack.c.bf16 %v3554, %v3550
        %v3663 = vpack.c.bf16 %v3559, %v3555
        %v3664 = vpack.c.bf16 %v3560, %v3556
        %v3665 = vpack.c.bf16 %v3561, %v3557
        %v3666 = vpack.c.bf16 %v3562, %v3558
        %v3667 = vpack.c.bf16 %v3567, %v3563
        %v3668 = vpack.c.bf16 %v3568, %v3564
        %v3669 = vpack.c.bf16 %v3569, %v3565
        %v3670 = vpack.c.bf16 %v3570, %v3566
        %v3671 = vpack.c.bf16 %v3575, %v3571
        %v3672 = vpack.c.bf16 %v3576, %v3572
        %v3673 = vpack.c.bf16 %v3577, %v3573
        %v3674 = vpack.c.bf16 %v3578, %v3574
        %v3675 = vpack.c.bf16 %v3583, %v3579
        %v3676 = vpack.c.bf16 %v3584, %v3580
        %v3677 = vpack.c.bf16 %v3585, %v3581
        %v3678 = vpack.c.bf16 %v3586, %v3582
        %v3679 = vpack.c.bf16 %v3591, %v3587
        %v3680 = vpack.c.bf16 %v3592, %v3588
        %v3681 = vpack.c.bf16 %v3593, %v3589
        %v3682 = vpack.c.bf16 %v3594, %v3590
        %v3683 = vpack.c.bf16 %v3599, %v3595
        %v3684 = vpack.c.bf16 %v3600, %v3596
        %v3685 = vpack.c.bf16 %v3601, %v3597
        %v3686 = vpack.c.bf16 %v3602, %v3598
        %v3687 = vpack.c.bf16 %v3607, %v3603
        %v3688 = vpack.c.bf16 %v3608, %v3604
        %v3689 = vpack.c.bf16 %v3609, %v3605
        %v3690 = vpack.c.bf16 %v3610, %v3606
        %v3691 = vpack.c.bf16 %v3615, %v3611
        %v3692 = vpack.c.bf16 %v3616, %v3612
        %v3693 = vpack.c.bf16 %v3617, %v3613
        %v3694 = vpack.c.bf16 %v3618, %v3614
        %v3695 = vpack.c.bf16 %v3623, %v3619
        %v3696 = vpack.c.bf16 %v3624, %v3620
        %v3697 = vpack.c.bf16 %v3625, %v3621
        %v3698 = vpack.c.bf16 %v3626, %v3622
        %v3699 = vpack.c.bf16 %v3631, %v3627
        %v3700 = vpack.c.bf16 %v3632, %v3628
        %v3701 = vpack.c.bf16 %v3633, %v3629
        %v3702 = vpack.c.bf16 %v3634, %v3630
        %v3703 = vpack.c.bf16 %v3639, %v3635
        %v3704 = vpack.c.bf16 %v3640, %v3636
        %v3705 = vpack.c.bf16 %v3641, %v3637
        %v3706 = vpack.c.bf16 %v3642, %v3638
        %v3707 = vld [vmem:[#allocation13] sm:$0xf]
        %v3708 = vld [vmem:[#allocation13 + $0x4] sm:$0xf]
        %v3709 = vld [vmem:[#allocation13 + $0x8] sm:$0xf]
        %v3710 = vld [vmem:[#allocation13 + $0xc] sm:$0xf]
        %v3711 = vld [vmem:[#allocation13 + $0x10] sm:$0xf]
        %v3712 = vld [vmem:[#allocation13 + $0x14] sm:$0xf]
        %v3713 = vld [vmem:[#allocation13 + $0x18] sm:$0xf]
        %v3714 = vld [vmem:[#allocation13 + $0x1c] sm:$0xf]
        %v3715 = vld [vmem:[#allocation13 + $0x20] sm:$0xf]
        %v3716 = vld [vmem:[#allocation13 + $0x24] sm:$0xf]
        %v3717 = vld [vmem:[#allocation13 + $0x28] sm:$0xf]
        %v3718 = vld [vmem:[#allocation13 + $0x2c] sm:$0xf]
        %v3719 = vld [vmem:[#allocation13 + $0x30] sm:$0xf]
        %v3720 = vld [vmem:[#allocation13 + $0x34] sm:$0xf]
        %v3721 = vld [vmem:[#allocation13 + $0x38] sm:$0xf]
        %v3722 = vld [vmem:[#allocation13 + $0x3c] sm:$0xf]
        %v3723 = vld [vmem:[#allocation13 + $0x40] sm:$0xf]
        %v3724 = vld [vmem:[#allocation13 + $0x44] sm:$0xf]
        %v3725 = vld [vmem:[#allocation13 + $0x48] sm:$0xf]
        %v3726 = vld [vmem:[#allocation13 + $0x4c] sm:$0xf]
        %v3727 = vld [vmem:[#allocation13 + $0x50] sm:$0xf]
        %v3728 = vld [vmem:[#allocation13 + $0x54] sm:$0xf]
        %v3729 = vld [vmem:[#allocation13 + $0x58] sm:$0xf]
        %v3730 = vld [vmem:[#allocation13 + $0x5c] sm:$0xf]
        %v3731 = vld [vmem:[#allocation13 + $0x60] sm:$0xf]
        %v3732 = vld [vmem:[#allocation13 + $0x64] sm:$0xf]
        %v3733 = vld [vmem:[#allocation13 + $0x68] sm:$0xf]
        %v3734 = vld [vmem:[#allocation13 + $0x6c] sm:$0xf]
        %v3735 = vld [vmem:[#allocation13 + $0x70] sm:$0xf]
        %v3736 = vld [vmem:[#allocation13 + $0x74] sm:$0xf]
        %v3737 = vld [vmem:[#allocation13 + $0x78] sm:$0xf]
        %v3738 = vld [vmem:[#allocation13 + $0x7c] sm:$0xf]
        %v3739 = vld [vmem:[#allocation13 + $0x80] sm:$0xf]
        %v3740 = vld [vmem:[#allocation13 + $0x84] sm:$0xf]
        %v3741 = vld [vmem:[#allocation13 + $0x88] sm:$0xf]
        %v3742 = vld [vmem:[#allocation13 + $0x8c] sm:$0xf]
        %v3743 = vld [vmem:[#allocation13 + $0x90] sm:$0xf]
        %v3744 = vld [vmem:[#allocation13 + $0x94] sm:$0xf]
        %v3745 = vld [vmem:[#allocation13 + $0x98] sm:$0xf]
        %v3746 = vld [vmem:[#allocation13 + $0x9c] sm:$0xf]
        %v3747 = vld [vmem:[#allocation13 + $0xa0] sm:$0xf]
        %v3748 = vld [vmem:[#allocation13 + $0xa4] sm:$0xf]
        %v3749 = vld [vmem:[#allocation13 + $0xa8] sm:$0xf]
        %v3750 = vld [vmem:[#allocation13 + $0xac] sm:$0xf]
        %v3751 = vld [vmem:[#allocation13 + $0xb0] sm:$0xf]
        %v3752 = vld [vmem:[#allocation13 + $0xb4] sm:$0xf]
        %v3753 = vld [vmem:[#allocation13 + $0xb8] sm:$0xf]
        %v3754 = vld [vmem:[#allocation13 + $0xbc] sm:$0xf]
        %v3755 = vld [vmem:[#allocation13 + $0xc0] sm:$0xf]
        %v3756 = vld [vmem:[#allocation13 + $0xc4] sm:$0xf]
        %v3757 = vld [vmem:[#allocation13 + $0xc8] sm:$0xf]
        %v3758 = vld [vmem:[#allocation13 + $0xcc] sm:$0xf]
        %v3759 = vld [vmem:[#allocation13 + $0xd0] sm:$0xf]
        %v3760 = vld [vmem:[#allocation13 + $0xd4] sm:$0xf]
        %v3761 = vld [vmem:[#allocation13 + $0xd8] sm:$0xf]
        %v3762 = vld [vmem:[#allocation13 + $0xdc] sm:$0xf]
        %v3763 = vld [vmem:[#allocation13 + $0xe0] sm:$0xf]
        %v3764 = vld [vmem:[#allocation13 + $0xe4] sm:$0xf]
        %v3765 = vld [vmem:[#allocation13 + $0xe8] sm:$0xf]
        %v3766 = vld [vmem:[#allocation13 + $0xec] sm:$0xf]
        %v3767 = vld [vmem:[#allocation13 + $0xf0] sm:$0xf]
        %v3768 = vld [vmem:[#allocation13 + $0xf4] sm:$0xf]
        %v3769 = vld [vmem:[#allocation13 + $0xf8] sm:$0xf]
        %v3770 = vld [vmem:[#allocation13 + $0xfc] sm:$0xf]
        %v3771 = vld [vmem:[%s11] sm:$0x1]
        %v3773 = vlaneseq
        %v3774 = vshrl.u32 %v3773, 7
        %v3775 = vsub.s32 0, %v3774
        %v3776 = vrot.slane %v3771, %v3775
        %v3842 = vunpack.c.l.b16 %v3707
        %v3843 = vunpack.c.l.b16 %v3708
        %v3844 = vunpack.c.l.b16 %v3709
        %v3845 = vunpack.c.l.b16 %v3710
        %v3846 = vunpack.c.l.b16 %v3711
        %v3847 = vunpack.c.l.b16 %v3712
        %v3848 = vunpack.c.l.b16 %v3713
        %v3849 = vunpack.c.l.b16 %v3714
        %v3850 = vunpack.c.l.b16 %v3715
        %v3851 = vunpack.c.l.b16 %v3716
        %v3852 = vunpack.c.l.b16 %v3717
        %v3853 = vunpack.c.l.b16 %v3718
        %v3854 = vunpack.c.l.b16 %v3719
        %v3855 = vunpack.c.l.b16 %v3720
        %v3856 = vunpack.c.l.b16 %v3721
        %v3857 = vunpack.c.l.b16 %v3722
        %v3858 = vunpack.c.l.b16 %v3723
        %v3859 = vunpack.c.l.b16 %v3724
        %v3860 = vunpack.c.l.b16 %v3725
        %v3861 = vunpack.c.l.b16 %v3726
        %v3862 = vunpack.c.l.b16 %v3727
        %v3863 = vunpack.c.l.b16 %v3728
        %v3864 = vunpack.c.l.b16 %v3729
        %v3865 = vunpack.c.l.b16 %v3730
        %v3866 = vunpack.c.l.b16 %v3731
        %v3867 = vunpack.c.l.b16 %v3732
        %v3868 = vunpack.c.l.b16 %v3733
        %v3869 = vunpack.c.l.b16 %v3734
        %v3870 = vunpack.c.l.b16 %v3735
        %v3871 = vunpack.c.l.b16 %v3736
        %v3872 = vunpack.c.l.b16 %v3737
        %v3873 = vunpack.c.l.b16 %v3738
        %v3874 = vunpack.c.l.b16 %v3739
        %v3875 = vunpack.c.l.b16 %v3740
        %v3876 = vunpack.c.l.b16 %v3741
        %v3877 = vunpack.c.l.b16 %v3742
        %v3878 = vunpack.c.l.b16 %v3743
        %v3879 = vunpack.c.l.b16 %v3744
        %v3880 = vunpack.c.l.b16 %v3745
        %v3881 = vunpack.c.l.b16 %v3746
        %v3882 = vunpack.c.l.b16 %v3747
        %v3883 = vunpack.c.l.b16 %v3748
        %v3884 = vunpack.c.l.b16 %v3749
        %v3885 = vunpack.c.l.b16 %v3750
        %v3886 = vunpack.c.l.b16 %v3751
        %v3887 = vunpack.c.l.b16 %v3752
        %v3888 = vunpack.c.l.b16 %v3753
        %v3889 = vunpack.c.l.b16 %v3754
        %v3890 = vunpack.c.l.b16 %v3755
        %v3891 = vunpack.c.l.b16 %v3756
        %v3892 = vunpack.c.l.b16 %v3757
        %v3893 = vunpack.c.l.b16 %v3758
        %v3894 = vunpack.c.l.b16 %v3759
        %v3895 = vunpack.c.l.b16 %v3760
        %v3896 = vunpack.c.l.b16 %v3761
        %v3897 = vunpack.c.l.b16 %v3762
        %v3898 = vunpack.c.l.b16 %v3763
        %v3899 = vunpack.c.l.b16 %v3764
        %v3900 = vunpack.c.l.b16 %v3765
        %v3901 = vunpack.c.l.b16 %v3766
        %v3902 = vunpack.c.l.b16 %v3767
        %v3903 = vunpack.c.l.b16 %v3768
        %v3904 = vunpack.c.l.b16 %v3769
        %v3905 = vunpack.c.l.b16 %v3770
        %v3906 = vpack.c.b16 %v3843, %v3842
        %v3907 = vpack.c.b16 %v3845, %v3844
        %v3908 = vpack.c.b16 %v3847, %v3846
        %v3909 = vpack.c.b16 %v3849, %v3848
        %v3910 = vpack.c.b16 %v3851, %v3850
        %v3911 = vpack.c.b16 %v3853, %v3852
        %v3912 = vpack.c.b16 %v3855, %v3854
        %v3913 = vpack.c.b16 %v3857, %v3856
        %v3914 = vpack.c.b16 %v3859, %v3858
        %v3915 = vpack.c.b16 %v3861, %v3860
        %v3916 = vpack.c.b16 %v3863, %v3862
        %v3917 = vpack.c.b16 %v3865, %v3864
        %v3918 = vpack.c.b16 %v3867, %v3866
        %v3919 = vpack.c.b16 %v3869, %v3868
        %v3920 = vpack.c.b16 %v3871, %v3870
        %v3921 = vpack.c.b16 %v3873, %v3872
        %v3922 = vpack.c.b16 %v3875, %v3874
        %v3923 = vpack.c.b16 %v3877, %v3876
        %v3924 = vpack.c.b16 %v3879, %v3878
        %v3925 = vpack.c.b16 %v3881, %v3880
        %v3926 = vpack.c.b16 %v3883, %v3882
        %v3927 = vpack.c.b16 %v3885, %v3884
        %v3928 = vpack.c.b16 %v3887, %v3886
        %v3929 = vpack.c.b16 %v3889, %v3888
        %v3930 = vpack.c.b16 %v3891, %v3890
        %v3931 = vpack.c.b16 %v3893, %v3892
        %v3932 = vpack.c.b16 %v3895, %v3894
        %v3933 = vpack.c.b16 %v3897, %v3896
        %v3934 = vpack.c.b16 %v3899, %v3898
        %v3935 = vpack.c.b16 %v3901, %v3900
        %v3936 = vpack.c.b16 %v3903, %v3902
        %v3937 = vpack.c.b16 %v3905, %v3904
        %3970 = vmatprep.subr.bf16.mxu0 0
        %3971 = vmatpush1.bf16.msra.mxu0 %v3906
        %3972 = vmatprep.subr.bf16.mxu0 0
        %3973 = vmatpush1.bf16.msra.mxu0 %v3907
        %3974 = vmatprep.subr.bf16.mxu0 0
        %3975 = vmatpush1.bf16.msra.mxu0 %v3908
        %3976 = vmatprep.subr.bf16.mxu0 0
        %3977 = vmatpush1.bf16.msra.mxu0 %v3909
        %3978 = vmatprep.subr.bf16.mxu0 0
        %3979 = vmatpush1.bf16.msra.mxu0 %v3910
        %3980 = vmatprep.subr.bf16.mxu0 0
        %3981 = vmatpush1.bf16.msra.mxu0 %v3911
        %3982 = vmatprep.subr.bf16.mxu0 0
        %3983 = vmatpush1.bf16.msra.mxu0 %v3912
        %3984 = vmatprep.subr.bf16.mxu0 0
        %3985 = vmatpush1.bf16.msra.mxu0 %v3913
        %3986 = vmatprep.subr.bf16.mxu0 0
        %3987 = vmatpush1.bf16.msra.mxu0 %v3914
        %3988 = vmatprep.subr.bf16.mxu0 0
        %3989 = vmatpush1.bf16.msra.mxu0 %v3915
        %3990 = vmatprep.subr.bf16.mxu0 0
        %3991 = vmatpush1.bf16.msra.mxu0 %v3916
        %3992 = vmatprep.subr.bf16.mxu0 0
        %3993 = vmatpush1.bf16.msra.mxu0 %v3917
        %3994 = vmatprep.subr.bf16.mxu0 0
        %3995 = vmatpush1.bf16.msra.mxu0 %v3918
        %3996 = vmatprep.subr.bf16.mxu0 0
        %3997 = vmatpush1.bf16.msra.mxu0 %v3919
        %3998 = vmatprep.subr.bf16.mxu0 0
        %3999 = vmatpush1.bf16.msra.mxu0 %v3920
        %4000 = vmatprep.subr.bf16.mxu0 0
        %4001 = vmatpush1.bf16.msra.mxu0 %v3921
        %4002 = vmatprep.mubr.bf16.mxu0 %v3644
        %4003 = vmatmul.mubr.bf16.gmra.mrb[0].mxu0 %v3643
        %v4004 = vpop.f32.mrb[0].mxu0
        %v4005 = vadd.f32 %v3776, %v4004
        %v4006 = vpop.f32.mrb[0].mxu0
        %v4007 = vpop.f32.mrb[0].mxu0
        %v4008 = vadd.f32 %v3776, %v4007
        %v4009 = vpop.f32.mrb[0].mxu0
        %4010 = vmatprep.mubr.bf16.mxu0 %v3648
        %4011 = vmatmul.mubr.bf16.gmra.mrb[0].mxu0 %v3647
        %v4012 = vpop.f32.mrb[0].mxu0
        %v4013 = vadd.f32 %v3776, %v4012
        %v4014 = vpop.f32.mrb[0].mxu0
        %v4015 = vpop.f32.mrb[0].mxu0
        %v4016 = vadd.f32 %v3776, %v4015
        %v4017 = vpop.f32.mrb[0].mxu0
        %4018 = vmatprep.mubr.bf16.mxu0 %v3652
        %4019 = vmatmul.mubr.bf16.gmra.mrb[0].mxu0 %v3651
        %v4020 = vpop.f32.mrb[0].mxu0
        %v4021 = vadd.f32 %v3776, %v4020
        %v4022 = vpop.f32.mrb[0].mxu0
        %v4023 = vpop.f32.mrb[0].mxu0
        %v4024 = vadd.f32 %v3776, %v4023
        %v4025 = vpop.f32.mrb[0].mxu0
        %4026 = vmatprep.mubr.bf16.mxu0 %v3656
        %4027 = vmatmul.mubr.bf16.gmra.mrb[0].mxu0 %v3655
        %v4028 = vpop.f32.mrb[0].mxu0
        %v4029 = vadd.f32 %v3776, %v4028
        %v4030 = vpop.f32.mrb[0].mxu0
        %v4031 = vpop.f32.mrb[0].mxu0
        %v4032 = vadd.f32 %v3776, %v4031
        %v4033 = vpop.f32.mrb[0].mxu0
        %4034 = vmatprep.mubr.bf16.mxu0 %v3660
        %4035 = vmatmul.mubr.bf16.gmra.mrb[0].mxu0 %v3659
        %v4036 = vpop.f32.mrb[0].mxu0
        %v4037 = vadd.f32 %v3776, %v4036
        %v4038 = vpop.f32.mrb[0].mxu0
        %v4039 = vpop.f32.mrb[0].mxu0
        %v4040 = vadd.f32 %v3776, %v4039
        %v4041 = vpop.f32.mrb[0].mxu0
        %4042 = vmatprep.mubr.bf16.mxu0 %v3664
        %4043 = vmatmul.mubr.bf16.gmra.mrb[0].mxu0 %v3663
        %v4044 = vpop.f32.mrb[0].mxu0
        %v4045 = vadd.f32 %v3776, %v4044
        %v4046 = vpop.f32.mrb[0].mxu0
        %v4047 = vpop.f32.mrb[0].mxu0
        %v4048 = vadd.f32 %v3776, %v4047
        %v4049 = vpop.f32.mrb[0].mxu0
        %4050 = vmatprep.mubr.bf16.mxu0 %v3668
        %4051 = vmatmul.mubr.bf16.gmra.mrb[0].mxu0 %v3667
        %v4052 = vpop.f32.mrb[0].mxu0
        %v4053 = vadd.f32 %v3776, %v4052
        %v4054 = vpop.f32.mrb[0].mxu0
        %v4055 = vpop.f32.mrb[0].mxu0
        %v4056 = vadd.f32 %v3776, %v4055
        %v4057 = vpop.f32.mrb[0].mxu0
        %4058 = vmatprep.mubr.bf16.mxu0 %v3672
        %4059 = vmatmul.mubr.bf16.gmra.mrb[0].mxu0 %v3671
        %v4060 = vpop.f32.mrb[0].mxu0
        %v4061 = vadd.f32 %v3776, %v4060
        %v4062 = vpop.f32.mrb[0].mxu0
        %v4063 = vpop.f32.mrb[0].mxu0
        %v4064 = vadd.f32 %v3776, %v4063
        %v4065 = vpop.f32.mrb[0].mxu0
        %4066 = vmatprep.mubr.bf16.mxu0 %v3676
        %4067 = vmatmul.mubr.bf16.gmra.mrb[0].mxu0 %v3675
        %v4068 = vpop.f32.mrb[0].mxu0
        %v4069 = vadd.f32 %v3776, %v4068
        %v4070 = vpop.f32.mrb[0].mxu0
        %v4071 = vpop.f32.mrb[0].mxu0
        %v4072 = vadd.f32 %v3776, %v4071
        %v4073 = vpop.f32.mrb[0].mxu0
        %4074 = vmatprep.mubr.bf16.mxu0 %v3680
        %4075 = vmatmul.mubr.bf16.gmra.mrb[0].mxu0 %v3679
        %v4076 = vpop.f32.mrb[0].mxu0
        %v4077 = vadd.f32 %v3776, %v4076
        %v4078 = vpop.f32.mrb[0].mxu0
        %v4079 = vpop.f32.mrb[0].mxu0
        %v4080 = vadd.f32 %v3776, %v4079
        %v4081 = vpop.f32.mrb[0].mxu0
        %4082 = vmatprep.mubr.bf16.mxu0 %v3684
        %4083 = vmatmul.mubr.bf16.gmra.mrb[0].mxu0 %v3683
        %v4084 = vpop.f32.mrb[0].mxu0
        %v4085 = vadd.f32 %v3776, %v4084
        %v4086 = vpop.f32.mrb[0].mxu0
        %v4087 = vpop.f32.mrb[0].mxu0
        %v4088 = vadd.f32 %v3776, %v4087
        %v4089 = vpop.f32.mrb[0].mxu0
        %4090 = vmatprep.mubr.bf16.mxu0 %v3688
        %4091 = vmatmul.mubr.bf16.gmra.mrb[0].mxu0 %v3687
        %v4092 = vpop.f32.mrb[0].mxu0
        %v4093 = vadd.f32 %v3776, %v4092
        %v4094 = vpop.f32.mrb[0].mxu0
        %v4095 = vpop.f32.mrb[0].mxu0
        %v4096 = vadd.f32 %v3776, %v4095
        %v4097 = vpop.f32.mrb[0].mxu0
        %4098 = vmatprep.mubr.bf16.mxu0 %v3692
        %4099 = vmatmul.mubr.bf16.gmra.mrb[0].mxu0 %v3691
        %v4100 = vpop.f32.mrb[0].mxu0
        %v4101 = vadd.f32 %v3776, %v4100
        %v4102 = vpop.f32.mrb[0].mxu0
        %v4103 = vpop.f32.mrb[0].mxu0
        %v4104 = vadd.f32 %v3776, %v4103
        %v4105 = vpop.f32.mrb[0].mxu0
        %4106 = vmatprep.mubr.bf16.mxu0 %v3696
        %4107 = vmatmul.mubr.bf16.gmra.mrb[0].mxu0 %v3695
        %v4108 = vpop.f32.mrb[0].mxu0
        %v4109 = vadd.f32 %v3776, %v4108
        %v4110 = vpop.f32.mrb[0].mxu0
        %v4111 = vpop.f32.mrb[0].mxu0
        %v4112 = vadd.f32 %v3776, %v4111
        %v4113 = vpop.f32.mrb[0].mxu0
        %4114 = vmatprep.mubr.bf16.mxu0 %v3700
        %4115 = vmatmul.mubr.bf16.gmra.mrb[0].mxu0 %v3699
        %v4116 = vpop.f32.mrb[0].mxu0
        %v4117 = vadd.f32 %v3776, %v4116
        %v4118 = vpop.f32.mrb[0].mxu0
        %v4119 = vpop.f32.mrb[0].mxu0
        %v4120 = vadd.f32 %v3776, %v4119
        %v4121 = vpop.f32.mrb[0].mxu0
        %4122 = vmatprep.mubr.bf16.mxu0 %v3704
        %4123 = vmatmul.mubr.bf16.gmra.mrb[0].mxu0 %v3703
        %v4124 = vpop.f32.mrb[0].mxu0
        %v4125 = vadd.f32 %v3776, %v4124
        %v4126 = vpop.f32.mrb[0].mxu0
        %v4127 = vpop.f32.mrb[0].mxu0
        %v4128 = vadd.f32 %v3776, %v4127
        %v4129 = vpop.f32.mrb[0].mxu0
        %4130 = vdwg.mxu0
        %4131 = vmatprep.subr.bf16.mxu0 0
        %4132 = vmatpush1.bf16.msra.mxu0 %v3922
        %4133 = vmatprep.subr.bf16.mxu0 0
        %4134 = vmatpush1.bf16.msra.mxu0 %v3923
        %4135 = vmatprep.subr.bf16.mxu0 0
        %4136 = vmatpush1.bf16.msra.mxu0 %v3924
        %4137 = vmatprep.subr.bf16.mxu0 0
        %4138 = vmatpush1.bf16.msra.mxu0 %v3925
        %4139 = vmatprep.subr.bf16.mxu0 0
        %4140 = vmatpush1.bf16.msra.mxu0 %v3926
        %4141 = vmatprep.subr.bf16.mxu0 0
        %4142 = vmatpush1.bf16.msra.mxu0 %v3927
        %4143 = vmatprep.subr.bf16.mxu0 0
        %4144 = vmatpush1.bf16.msra.mxu0 %v3928
        %4145 = vmatprep.subr.bf16.mxu0 0
        %4146 = vmatpush1.bf16.msra.mxu0 %v3929
        %4147 = vmatprep.subr.bf16.mxu0 0
        %4148 = vmatpush1.bf16.msra.mxu0 %v3930
        %4149 = vmatprep.subr.bf16.mxu0 0
        %4150 = vmatpush1.bf16.msra.mxu0 %v3931
        %4151 = vmatprep.subr.bf16.mxu0 0
        %4152 = vmatpush1.bf16.msra.mxu0 %v3932
        %4153 = vmatprep.subr.bf16.mxu0 0
        %4154 = vmatpush1.bf16.msra.mxu0 %v3933
        %4155 = vmatprep.subr.bf16.mxu0 0
        %4156 = vmatpush1.bf16.msra.mxu0 %v3934
        %4157 = vmatprep.subr.bf16.mxu0 0
        %4158 = vmatpush1.bf16.msra.mxu0 %v3935
        %4159 = vmatprep.subr.bf16.mxu0 0
        %4160 = vmatpush1.bf16.msra.mxu0 %v3936
        %4161 = vmatprep.subr.bf16.mxu0 0
        %4162 = vmatpush1.bf16.msra.mxu0 %v3937
        %4163 = vmatprep.mubr.bf16.mxu0 %v3646
        %4164 = vmatmul.mubr.bf16.gmra.mrb[0].mxu0 %v3645
        %v4165 = vpop.f32.mrb[0].mxu0
        %v4166 = vadd.f32 %v4005, %v4165
        %v4167 = vpop.f32.mrb[0].mxu0
        %v4168 = vpop.f32.mrb[0].mxu0
        %v4169 = vadd.f32 %v4008, %v4168
        %v4170 = vpop.f32.mrb[0].mxu0
        %4171 = vmatprep.mubr.bf16.mxu0 %v3650
        %4172 = vmatmul.mubr.bf16.gmra.mrb[0].mxu0 %v3649
        %v4173 = vpop.f32.mrb[0].mxu0
        %v4174 = vadd.f32 %v4013, %v4173
        %v4175 = vpop.f32.mrb[0].mxu0
        %v4176 = vpop.f32.mrb[0].mxu0
        %v4177 = vadd.f32 %v4016, %v4176
        %v4178 = vpop.f32.mrb[0].mxu0
        %4179 = vmatprep.mubr.bf16.mxu0 %v3654
        %4180 = vmatmul.mubr.bf16.gmra.mrb[0].mxu0 %v3653
        %v4181 = vpop.f32.mrb[0].mxu0
        %v4182 = vadd.f32 %v4021, %v4181
        %v4183 = vpop.f32.mrb[0].mxu0
        %v4184 = vpop.f32.mrb[0].mxu0
        %v4185 = vadd.f32 %v4024, %v4184
        %v4186 = vpop.f32.mrb[0].mxu0
        %4187 = vmatprep.mubr.bf16.mxu0 %v3658
        %4188 = vmatmul.mubr.bf16.gmra.mrb[0].mxu0 %v3657
        %v4189 = vpop.f32.mrb[0].mxu0
        %v4190 = vadd.f32 %v4029, %v4189
        %v4191 = vpop.f32.mrb[0].mxu0
        %v4192 = vpop.f32.mrb[0].mxu0
        %v4193 = vadd.f32 %v4032, %v4192
        %v4194 = vpop.f32.mrb[0].mxu0
        %4195 = vmatprep.mubr.bf16.mxu0 %v3662
        %4196 = vmatmul.mubr.bf16.gmra.mrb[0].mxu0 %v3661
        %v4197 = vpop.f32.mrb[0].mxu0
        %v4198 = vadd.f32 %v4037, %v4197
        %v4199 = vpop.f32.mrb[0].mxu0
        %v4200 = vpop.f32.mrb[0].mxu0
        %v4201 = vadd.f32 %v4040, %v4200
        %v4202 = vpop.f32.mrb[0].mxu0
        %4203 = vmatprep.mubr.bf16.mxu0 %v3666
        %4204 = vmatmul.mubr.bf16.gmra.mrb[0].mxu0 %v3665
        %v4205 = vpop.f32.mrb[0].mxu0
        %v4206 = vadd.f32 %v4045, %v4205
        %v4207 = vpop.f32.mrb[0].mxu0
        %v4208 = vpop.f32.mrb[0].mxu0
        %v4209 = vadd.f32 %v4048, %v4208
        %v4210 = vpop.f32.mrb[0].mxu0
        %4211 = vmatprep.mubr.bf16.mxu0 %v3670
        %4212 = vmatmul.mubr.bf16.gmra.mrb[0].mxu0 %v3669
        %v4213 = vpop.f32.mrb[0].mxu0
        %v4214 = vadd.f32 %v4053, %v4213
        %v4215 = vpop.f32.mrb[0].mxu0
        %v4216 = vpop.f32.mrb[0].mxu0
        %v4217 = vadd.f32 %v4056, %v4216
        %v4218 = vpop.f32.mrb[0].mxu0
        %4219 = vmatprep.mubr.bf16.mxu0 %v3674
        %4220 = vmatmul.mubr.bf16.gmra.mrb[0].mxu0 %v3673
        %v4221 = vpop.f32.mrb[0].mxu0
        %v4222 = vadd.f32 %v4061, %v4221
        %v4223 = vpop.f32.mrb[0].mxu0
        %v4224 = vpop.f32.mrb[0].mxu0
        %v4225 = vadd.f32 %v4064, %v4224
        %v4226 = vpop.f32.mrb[0].mxu0
        %4227 = vmatprep.mubr.bf16.mxu0 %v3678
        %4228 = vmatmul.mubr.bf16.gmra.mrb[0].mxu0 %v3677
        %v4229 = vpop.f32.mrb[0].mxu0
        %v4230 = vadd.f32 %v4069, %v4229
        %v4231 = vpop.f32.mrb[0].mxu0
        %v4232 = vpop.f32.mrb[0].mxu0
        %v4233 = vadd.f32 %v4072, %v4232
        %v4234 = vpop.f32.mrb[0].mxu0
        %4235 = vmatprep.mubr.bf16.mxu0 %v3682
        %4236 = vmatmul.mubr.bf16.gmra.mrb[0].mxu0 %v3681
        %v4237 = vpop.f32.mrb[0].mxu0
        %v4238 = vadd.f32 %v4077, %v4237
        %v4239 = vpop.f32.mrb[0].mxu0
        %v4240 = vpop.f32.mrb[0].mxu0
        %v4241 = vadd.f32 %v4080, %v4240
        %v4242 = vpop.f32.mrb[0].mxu0
        %4243 = vmatprep.mubr.bf16.mxu0 %v3686
        %4244 = vmatmul.mubr.bf16.gmra.mrb[0].mxu0 %v3685
        %v4245 = vpop.f32.mrb[0].mxu0
        %v4246 = vadd.f32 %v4085, %v4245
        %v4247 = vpop.f32.mrb[0].mxu0
        %v4248 = vpop.f32.mrb[0].mxu0
        %v4249 = vadd.f32 %v4088, %v4248
        %v4250 = vpop.f32.mrb[0].mxu0
        %4251 = vmatprep.mubr.bf16.mxu0 %v3690
        %4252 = vmatmul.mubr.bf16.gmra.mrb[0].mxu0 %v3689
        %v4253 = vpop.f32.mrb[0].mxu0
        %v4254 = vadd.f32 %v4093, %v4253
        %v4255 = vpop.f32.mrb[0].mxu0
        %v4256 = vpop.f32.mrb[0].mxu0
        %v4257 = vadd.f32 %v4096, %v4256
        %v4258 = vpop.f32.mrb[0].mxu0
        %4259 = vmatprep.mubr.bf16.mxu0 %v3694
        %4260 = vmatmul.mubr.bf16.gmra.mrb[0].mxu0 %v3693
        %v4261 = vpop.f32.mrb[0].mxu0
        %v4262 = vadd.f32 %v4101, %v4261
        %v4263 = vpop.f32.mrb[0].mxu0
        %v4264 = vpop.f32.mrb[0].mxu0
        %v4265 = vadd.f32 %v4104, %v4264
        %v4266 = vpop.f32.mrb[0].mxu0
        %4267 = vmatprep.mubr.bf16.mxu0 %v3698
        %4268 = vmatmul.mubr.bf16.gmra.mrb[0].mxu0 %v3697
        %v4269 = vpop.f32.mrb[0].mxu0
        %v4270 = vadd.f32 %v4109, %v4269
        %v4271 = vpop.f32.mrb[0].mxu0
        %v4272 = vpop.f32.mrb[0].mxu0
        %v4273 = vadd.f32 %v4112, %v4272
        %v4274 = vpop.f32.mrb[0].mxu0
        %4275 = vmatprep.mubr.bf16.mxu0 %v3702
        %4276 = vmatmul.mubr.bf16.gmra.mrb[0].mxu0 %v3701
        %v4277 = vpop.f32.mrb[0].mxu0
        %v4278 = vadd.f32 %v4117, %v4277
        %v4279 = vpop.f32.mrb[0].mxu0
        %v4280 = vpop.f32.mrb[0].mxu0
        %v4281 = vadd.f32 %v4120, %v4280
        %v4282 = vpop.f32.mrb[0].mxu0
        %4283 = vmatprep.mubr.bf16.mxu0 %v3706
        %4284 = vmatmul.mubr.bf16.gmra.mrb[0].mxu0 %v3705
        %v4285 = vpop.f32.mrb[0].mxu0
        %v4286 = vadd.f32 %v4125, %v4285
        %v4287 = vpop.f32.mrb[0].mxu0
        %v4288 = vpop.f32.mrb[0].mxu0
        %v4289 = vadd.f32 %v4128, %v4288
        %v4290 = vpop.f32.mrb[0].mxu0
        %4291 = vdwg.mxu0
        %v4292 = vadd.f32 %v4166, %v2867
        %v4293 = vadd.f32 %v4169, %v2868
        %v4294 = vadd.f32 %v4174, %v2869
        %v4295 = vadd.f32 %v4177, %v2870
        %v4296 = vadd.f32 %v4182, %v2871
        %v4297 = vadd.f32 %v4185, %v2872
        %v4298 = vadd.f32 %v4190, %v2873
        %v4299 = vadd.f32 %v4193, %v2874
        %v4300 = vadd.f32 %v4198, %v2875
        %v4301 = vadd.f32 %v4201, %v2876
        %v4302 = vadd.f32 %v4206, %v2877
        %v4303 = vadd.f32 %v4209, %v2878
        %v4304 = vadd.f32 %v4214, %v2879
        %v4305 = vadd.f32 %v4217, %v2880
        %v4306 = vadd.f32 %v4222, %v2881
        %v4307 = vadd.f32 %v4225, %v2882
        %v4308 = vadd.f32 %v4230, %v2883
        %v4309 = vadd.f32 %v4233, %v2884
        %v4310 = vadd.f32 %v4238, %v2885
        %v4311 = vadd.f32 %v4241, %v2886
        %v4312 = vadd.f32 %v4246, %v2887
        %v4313 = vadd.f32 %v4249, %v2888
        %v4314 = vadd.f32 %v4254, %v2889
        %v4315 = vadd.f32 %v4257, %v2890
        %v4316 = vadd.f32 %v4262, %v2891
        %v4317 = vadd.f32 %v4265, %v2892
        %v4318 = vadd.f32 %v4270, %v2893
        %v4319 = vadd.f32 %v4273, %v2894
        %v4320 = vadd.f32 %v4278, %v2895
        %v4321 = vadd.f32 %v4281, %v2896
        %v4322 = vadd.f32 %v4286, %v2897
        %v4323 = vadd.f32 %v4289, %v2898
        %v4324 = vld [vmem:[%s12] sm:$0x1]
        %v4325 = vld [vmem:[%s13] sm:$0x1]
        %4326 = vadd.xlane.f32.xlu0 %v4292
        %v4327 = vpop.xlane.xlu0 %4326
        %4328 = vadd.xlane.f32.xlu0 %v4293
        %v4329 = vpop.xlane.xlu0 %4328
        %4330 = vadd.xlane.f32.xlu0 %v4294
        %v4331 = vpop.xlane.xlu0 %4330
        %4332 = vadd.xlane.f32.xlu0 %v4295
        %v4333 = vpop.xlane.xlu0 %4332
        %4334 = vadd.xlane.f32.xlu0 %v4296
        %v4335 = vpop.xlane.xlu0 %4334
        %4336 = vadd.xlane.f32.xlu0 %v4297
        %v4337 = vpop.xlane.xlu0 %4336
        %4338 = vadd.xlane.f32.xlu0 %v4298
        %v4339 = vpop.xlane.xlu0 %4338
        %4340 = vadd.xlane.f32.xlu0 %v4299
        %v4341 = vpop.xlane.xlu0 %4340
        %4342 = vadd.xlane.f32.xlu0 %v4300
        %v4343 = vpop.xlane.xlu0 %4342
        %4344 = vadd.xlane.f32.xlu0 %v4301
        %v4345 = vpop.xlane.xlu0 %4344
        %4346 = vadd.xlane.f32.xlu0 %v4302
        %v4347 = vpop.xlane.xlu0 %4346
        %4348 = vadd.xlane.f32.xlu0 %v4303
        %v4349 = vpop.xlane.xlu0 %4348
        %4350 = vadd.xlane.f32.xlu0 %v4304
        %v4351 = vpop.xlane.xlu0 %4350
        %4352 = vadd.xlane.f32.xlu0 %v4305
        %v4353 = vpop.xlane.xlu0 %4352
        %4354 = vadd.xlane.f32.xlu0 %v4306
        %v4355 = vpop.xlane.xlu0 %4354
        %4356 = vadd.xlane.f32.xlu0 %v4307
        %v4357 = vpop.xlane.xlu0 %4356
        %4358 = vadd.xlane.f32.xlu0 %v4308
        %v4359 = vpop.xlane.xlu0 %4358
        %4360 = vadd.xlane.f32.xlu0 %v4309
        %v4361 = vpop.xlane.xlu0 %4360
        %4362 = vadd.xlane.f32.xlu0 %v4310
        %v4363 = vpop.xlane.xlu0 %4362
        %4364 = vadd.xlane.f32.xlu0 %v4311
        %v4365 = vpop.xlane.xlu0 %4364
        %4366 = vadd.xlane.f32.xlu0 %v4312
        %v4367 = vpop.xlane.xlu0 %4366
        %4368 = vadd.xlane.f32.xlu0 %v4313
        %v4369 = vpop.xlane.xlu0 %4368
        %4370 = vadd.xlane.f32.xlu0 %v4314
        %v4371 = vpop.xlane.xlu0 %4370
        %4372 = vadd.xlane.f32.xlu0 %v4315
        %v4373 = vpop.xlane.xlu0 %4372
        %4374 = vadd.xlane.f32.xlu0 %v4316
        %v4375 = vpop.xlane.xlu0 %4374
        %4376 = vadd.xlane.f32.xlu0 %v4317
        %v4377 = vpop.xlane.xlu0 %4376
        %4378 = vadd.xlane.f32.xlu0 %v4318
        %v4379 = vpop.xlane.xlu0 %4378
        %4380 = vadd.xlane.f32.xlu0 %v4319
        %v4381 = vpop.xlane.xlu0 %4380
        %4382 = vadd.xlane.f32.xlu0 %v4320
        %v4383 = vpop.xlane.xlu0 %4382
        %4384 = vadd.xlane.f32.xlu0 %v4321
        %v4385 = vpop.xlane.xlu0 %4384
        %4386 = vadd.xlane.f32.xlu0 %v4322
        %v4387 = vpop.xlane.xlu0 %4386
        %4388 = vadd.xlane.f32.xlu0 %v4323
        %v4389 = vpop.xlane.xlu0 %4388
        %v4390 = vmul.f32 %v4327, %v2534
        %v4391 = vmul.f32 %v4329, %v2534
        %v4392 = vmul.f32 %v4331, %v2534
        %v4393 = vmul.f32 %v4333, %v2534
        %v4394 = vmul.f32 %v4335, %v2534
        %v4395 = vmul.f32 %v4337, %v2534
        %v4396 = vmul.f32 %v4339, %v2534
        %v4397 = vmul.f32 %v4341, %v2534
        %v4398 = vmul.f32 %v4343, %v2534
        %v4399 = vmul.f32 %v4345, %v2534
        %v4400 = vmul.f32 %v4347, %v2534
        %v4401 = vmul.f32 %v4349, %v2534
        %v4402 = vmul.f32 %v4351, %v2534
        %v4403 = vmul.f32 %v4353, %v2534
        %v4404 = vmul.f32 %v4355, %v2534
        %v4405 = vmul.f32 %v4357, %v2534
        %v4406 = vmul.f32 %v4359, %v2534
        %v4407 = vmul.f32 %v4361, %v2534
        %v4408 = vmul.f32 %v4363, %v2534
        %v4409 = vmul.f32 %v4365, %v2534
        %v4410 = vmul.f32 %v4367, %v2534
        %v4411 = vmul.f32 %v4369, %v2534
        %v4412 = vmul.f32 %v4371, %v2534
        %v4413 = vmul.f32 %v4373, %v2534
        %v4414 = vmul.f32 %v4375, %v2534
        %v4415 = vmul.f32 %v4377, %v2534
        %v4416 = vmul.f32 %v4379, %v2534
        %v4417 = vmul.f32 %v4381, %v2534
        %v4418 = vmul.f32 %v4383, %v2534
        %v4419 = vmul.f32 %v4385, %v2534
        %v4420 = vmul.f32 %v4387, %v2534
        %v4421 = vmul.f32 %v4389, %v2534
        %v4422 = vsub.f32 %v4292, %v4390
        %v4423 = vsub.f32 %v4293, %v4391
        %v4424 = vsub.f32 %v4294, %v4392
        %v4425 = vsub.f32 %v4295, %v4393
        %v4426 = vsub.f32 %v4296, %v4394
        %v4427 = vsub.f32 %v4297, %v4395
        %v4428 = vsub.f32 %v4298, %v4396
        %v4429 = vsub.f32 %v4299, %v4397
        %v4430 = vsub.f32 %v4300, %v4398
        %v4431 = vsub.f32 %v4301, %v4399
        %v4432 = vsub.f32 %v4302, %v4400
        %v4433 = vsub.f32 %v4303, %v4401
        %v4434 = vsub.f32 %v4304, %v4402
        %v4435 = vsub.f32 %v4305, %v4403
        %v4436 = vsub.f32 %v4306, %v4404
        %v4437 = vsub.f32 %v4307, %v4405
        %v4438 = vsub.f32 %v4308, %v4406
        %v4439 = vsub.f32 %v4309, %v4407
        %v4440 = vsub.f32 %v4310, %v4408
        %v4441 = vsub.f32 %v4311, %v4409
        %v4442 = vsub.f32 %v4312, %v4410
        %v4443 = vsub.f32 %v4313, %v4411
        %v4444 = vsub.f32 %v4314, %v4412
        %v4445 = vsub.f32 %v4315, %v4413
        %v4446 = vsub.f32 %v4316, %v4414
        %v4447 = vsub.f32 %v4317, %v4415
        %v4448 = vsub.f32 %v4318, %v4416
        %v4449 = vsub.f32 %v4319, %v4417
        %v4450 = vsub.f32 %v4320, %v4418
        %v4451 = vsub.f32 %v4321, %v4419
        %v4452 = vsub.f32 %v4322, %v4420
        %v4453 = vsub.f32 %v4323, %v4421
        %v4454 = vmul.f32 %v4422, %v4422
        %v4455 = vmul.f32 %v4423, %v4423
        %v4456 = vmul.f32 %v4424, %v4424
        %v4457 = vmul.f32 %v4425, %v4425
        %v4458 = vmul.f32 %v4426, %v4426
        %v4459 = vmul.f32 %v4427, %v4427
        %v4460 = vmul.f32 %v4428, %v4428
        %v4461 = vmul.f32 %v4429, %v4429
        %v4462 = vmul.f32 %v4430, %v4430
        %v4463 = vmul.f32 %v4431, %v4431
        %v4464 = vmul.f32 %v4432, %v4432
        %v4465 = vmul.f32 %v4433, %v4433
        %v4466 = vmul.f32 %v4434, %v4434
        %v4467 = vmul.f32 %v4435, %v4435
        %v4468 = vmul.f32 %v4436, %v4436
        %v4469 = vmul.f32 %v4437, %v4437
        %v4470 = vmul.f32 %v4438, %v4438
        %v4471 = vmul.f32 %v4439, %v4439
        %v4472 = vmul.f32 %v4440, %v4440
        %v4473 = vmul.f32 %v4441, %v4441
        %v4474 = vmul.f32 %v4442, %v4442
        %v4475 = vmul.f32 %v4443, %v4443
        %v4476 = vmul.f32 %v4444, %v4444
        %v4477 = vmul.f32 %v4445, %v4445
        %v4478 = vmul.f32 %v4446, %v4446
        %v4479 = vmul.f32 %v4447, %v4447
        %v4480 = vmul.f32 %v4448, %v4448
        %v4481 = vmul.f32 %v4449, %v4449
        %v4482 = vmul.f32 %v4450, %v4450
        %v4483 = vmul.f32 %v4451, %v4451
        %v4484 = vmul.f32 %v4452, %v4452
        %v4485 = vmul.f32 %v4453, %v4453
        %4486 = vadd.xlane.f32.xlu0 %v4454
        %v4487 = vpop.xlane.xlu0 %4486
        %4488 = vadd.xlane.f32.xlu0 %v4455
        %v4489 = vpop.xlane.xlu0 %4488
        %4490 = vadd.xlane.f32.xlu0 %v4456
        %v4491 = vpop.xlane.xlu0 %4490
        %4492 = vadd.xlane.f32.xlu0 %v4457
        %v4493 = vpop.xlane.xlu0 %4492
        %4494 = vadd.xlane.f32.xlu0 %v4458
        %v4495 = vpop.xlane.xlu0 %4494
        %4496 = vadd.xlane.f32.xlu0 %v4459
        %v4497 = vpop.xlane.xlu0 %4496
        %4498 = vadd.xlane.f32.xlu0 %v4460
        %v4499 = vpop.xlane.xlu0 %4498
        %4500 = vadd.xlane.f32.xlu0 %v4461
        %v4501 = vpop.xlane.xlu0 %4500
        %4502 = vadd.xlane.f32.xlu0 %v4462
        %v4503 = vpop.xlane.xlu0 %4502
        %4504 = vadd.xlane.f32.xlu0 %v4463
        %v4505 = vpop.xlane.xlu0 %4504
        %4506 = vadd.xlane.f32.xlu0 %v4464
        %v4507 = vpop.xlane.xlu0 %4506
        %4508 = vadd.xlane.f32.xlu0 %v4465
        %v4509 = vpop.xlane.xlu0 %4508
        %4510 = vadd.xlane.f32.xlu0 %v4466
        %v4511 = vpop.xlane.xlu0 %4510
        %4512 = vadd.xlane.f32.xlu0 %v4467
        %v4513 = vpop.xlane.xlu0 %4512
        %4514 = vadd.xlane.f32.xlu0 %v4468
        %v4515 = vpop.xlane.xlu0 %4514
        %4516 = vadd.xlane.f32.xlu0 %v4469
        %v4517 = vpop.xlane.xlu0 %4516
        %4518 = vadd.xlane.f32.xlu0 %v4470
        %v4519 = vpop.xlane.xlu0 %4518
        %4520 = vadd.xlane.f32.xlu0 %v4471
        %v4521 = vpop.xlane.xlu0 %4520
        %4522 = vadd.xlane.f32.xlu0 %v4472
        %v4523 = vpop.xlane.xlu0 %4522
        %4524 = vadd.xlane.f32.xlu0 %v4473
        %v4525 = vpop.xlane.xlu0 %4524
        %4526 = vadd.xlane.f32.xlu0 %v4474
        %v4527 = vpop.xlane.xlu0 %4526
        %4528 = vadd.xlane.f32.xlu0 %v4475
        %v4529 = vpop.xlane.xlu0 %4528
        %4530 = vadd.xlane.f32.xlu0 %v4476
        %v4531 = vpop.xlane.xlu0 %4530
        %4532 = vadd.xlane.f32.xlu0 %v4477
        %v4533 = vpop.xlane.xlu0 %4532
        %4534 = vadd.xlane.f32.xlu0 %v4478
        %v4535 = vpop.xlane.xlu0 %4534
        %4536 = vadd.xlane.f32.xlu0 %v4479
        %v4537 = vpop.xlane.xlu0 %4536
        %4538 = vadd.xlane.f32.xlu0 %v4480
        %v4539 = vpop.xlane.xlu0 %4538
        %4540 = vadd.xlane.f32.xlu0 %v4481
        %v4541 = vpop.xlane.xlu0 %4540
        %4542 = vadd.xlane.f32.xlu0 %v4482
        %v4543 = vpop.xlane.xlu0 %4542
        %4544 = vadd.xlane.f32.xlu0 %v4483
        %v4545 = vpop.xlane.xlu0 %4544
        %4546 = vadd.xlane.f32.xlu0 %v4484
        %v4547 = vpop.xlane.xlu0 %4546
        %4548 = vadd.xlane.f32.xlu0 %v4485
        %v4549 = vpop.xlane.xlu0 %4548
        %v4550 = vmul.f32 %v4487, %v2534
        %v4551 = vmul.f32 %v4489, %v2534
        %v4552 = vmul.f32 %v4491, %v2534
        %v4553 = vmul.f32 %v4493, %v2534
        %v4554 = vmul.f32 %v4495, %v2534
        %v4555 = vmul.f32 %v4497, %v2534
        %v4556 = vmul.f32 %v4499, %v2534
        %v4557 = vmul.f32 %v4501, %v2534
        %v4558 = vmul.f32 %v4503, %v2534
        %v4559 = vmul.f32 %v4505, %v2534
        %v4560 = vmul.f32 %v4507, %v2534
        %v4561 = vmul.f32 %v4509, %v2534
        %v4562 = vmul.f32 %v4511, %v2534
        %v4563 = vmul.f32 %v4513, %v2534
        %v4564 = vmul.f32 %v4515, %v2534
        %v4565 = vmul.f32 %v4517, %v2534
        %v4566 = vmul.f32 %v4519, %v2534
        %v4567 = vmul.f32 %v4521, %v2534
        %v4568 = vmul.f32 %v4523, %v2534
        %v4569 = vmul.f32 %v4525, %v2534
        %v4570 = vmul.f32 %v4527, %v2534
        %v4571 = vmul.f32 %v4529, %v2534
        %v4572 = vmul.f32 %v4531, %v2534
        %v4573 = vmul.f32 %v4533, %v2534
        %v4574 = vmul.f32 %v4535, %v2534
        %v4575 = vmul.f32 %v4537, %v2534
        %v4576 = vmul.f32 %v4539, %v2534
        %v4577 = vmul.f32 %v4541, %v2534
        %v4578 = vmul.f32 %v4543, %v2534
        %v4579 = vmul.f32 %v4545, %v2534
        %v4580 = vmul.f32 %v4547, %v2534
        %v4581 = vmul.f32 %v4549, %v2534
        %v4582 = vadd.f32 %v4550, 1e-05
        %v4583 = vadd.f32 %v4551, 1e-05
        %v4584 = vadd.f32 %v4552, 1e-05
        %v4585 = vadd.f32 %v4553, 1e-05
        %v4586 = vadd.f32 %v4554, 1e-05
        %v4587 = vadd.f32 %v4555, 1e-05
        %v4588 = vadd.f32 %v4556, 1e-05
        %v4589 = vadd.f32 %v4557, 1e-05
        %v4590 = vadd.f32 %v4558, 1e-05
        %v4591 = vadd.f32 %v4559, 1e-05
        %v4592 = vadd.f32 %v4560, 1e-05
        %v4593 = vadd.f32 %v4561, 1e-05
        %v4594 = vadd.f32 %v4562, 1e-05
        %v4595 = vadd.f32 %v4563, 1e-05
        %v4596 = vadd.f32 %v4564, 1e-05
        %v4597 = vadd.f32 %v4565, 1e-05
        %v4598 = vadd.f32 %v4566, 1e-05
        %v4599 = vadd.f32 %v4567, 1e-05
        %v4600 = vadd.f32 %v4568, 1e-05
        %v4601 = vadd.f32 %v4569, 1e-05
        %v4602 = vadd.f32 %v4570, 1e-05
        %v4603 = vadd.f32 %v4571, 1e-05
        %v4604 = vadd.f32 %v4572, 1e-05
        %v4605 = vadd.f32 %v4573, 1e-05
        %v4606 = vadd.f32 %v4574, 1e-05
        %v4607 = vadd.f32 %v4575, 1e-05
        %v4608 = vadd.f32 %v4576, 1e-05
        %v4609 = vadd.f32 %v4577, 1e-05
        %v4610 = vadd.f32 %v4578, 1e-05
        %v4611 = vadd.f32 %v4579, 1e-05
        %v4612 = vadd.f32 %v4580, 1e-05
        %v4613 = vadd.f32 %v4581, 1e-05
        %v4614 = vrsqrt.pop %v4582
        %v4615 = vrsqrt.pop %v4583
        %v4616 = vrsqrt.pop %v4584
        %v4617 = vrsqrt.pop %v4585
        %v4618 = vrsqrt.pop %v4586
        %v4619 = vrsqrt.pop %v4587
        %v4620 = vrsqrt.pop %v4588
        %v4621 = vrsqrt.pop %v4589
        %v4622 = vrsqrt.pop %v4590
        %v4623 = vrsqrt.pop %v4591
        %v4624 = vrsqrt.pop %v4592
        %v4625 = vrsqrt.pop %v4593
        %v4626 = vrsqrt.pop %v4594
        %v4627 = vrsqrt.pop %v4595
        %v4628 = vrsqrt.pop %v4596
        %v4629 = vrsqrt.pop %v4597
        %v4630 = vrsqrt.pop %v4598
        %v4631 = vrsqrt.pop %v4599
        %v4632 = vrsqrt.pop %v4600
        %v4633 = vrsqrt.pop %v4601
        %v4634 = vrsqrt.pop %v4602
        %v4635 = vrsqrt.pop %v4603
        %v4636 = vrsqrt.pop %v4604
        %v4637 = vrsqrt.pop %v4605
        %v4638 = vrsqrt.pop %v4606
        %v4639 = vrsqrt.pop %v4607
        %v4640 = vrsqrt.pop %v4608
        %v4641 = vrsqrt.pop %v4609
        %v4642 = vrsqrt.pop %v4610
        %v4643 = vrsqrt.pop %v4611
        %v4644 = vrsqrt.pop %v4612
        %v4645 = vrsqrt.pop %v4613
        %v4646 = vmul.f32 %v4422, %v4614
        %v4647 = vmul.f32 %v4423, %v4615
        %v4648 = vmul.f32 %v4424, %v4616
        %v4649 = vmul.f32 %v4425, %v4617
        %v4650 = vmul.f32 %v4426, %v4618
        %v4651 = vmul.f32 %v4427, %v4619
        %v4652 = vmul.f32 %v4428, %v4620
        %v4653 = vmul.f32 %v4429, %v4621
        %v4654 = vmul.f32 %v4430, %v4622
        %v4655 = vmul.f32 %v4431, %v4623
        %v4656 = vmul.f32 %v4432, %v4624
        %v4657 = vmul.f32 %v4433, %v4625
        %v4658 = vmul.f32 %v4434, %v4626
        %v4659 = vmul.f32 %v4435, %v4627
        %v4660 = vmul.f32 %v4436, %v4628
        %v4661 = vmul.f32 %v4437, %v4629
        %v4662 = vmul.f32 %v4438, %v4630
        %v4663 = vmul.f32 %v4439, %v4631
        %v4664 = vmul.f32 %v4440, %v4632
        %v4665 = vmul.f32 %v4441, %v4633
        %v4666 = vmul.f32 %v4442, %v4634
        %v4667 = vmul.f32 %v4443, %v4635
        %v4668 = vmul.f32 %v4444, %v4636
        %v4669 = vmul.f32 %v4445, %v4637
        %v4670 = vmul.f32 %v4446, %v4638
        %v4671 = vmul.f32 %v4447, %v4639
        %v4672 = vmul.f32 %v4448, %v4640
        %v4673 = vmul.f32 %v4449, %v4641
        %v4674 = vmul.f32 %v4450, %v4642
        %v4675 = vmul.f32 %v4451, %v4643
        %v4676 = vmul.f32 %v4452, %v4644
        %v4677 = vmul.f32 %v4453, %v4645
        %v4679 = vlaneseq
        %v4680 = vshrl.u32 %v4679, 7
        %v4681 = vsub.s32 0, %v4680
        %v4682 = vrot.slane %v4324, %v4681
        %v4684 = vmul.f32 %v4646, %v4682
        %v4685 = vmul.f32 %v4647, %v4682
        %v4686 = vmul.f32 %v4648, %v4682
        %v4687 = vmul.f32 %v4649, %v4682
        %v4688 = vmul.f32 %v4650, %v4682
        %v4689 = vmul.f32 %v4651, %v4682
        %v4690 = vmul.f32 %v4652, %v4682
        %v4691 = vmul.f32 %v4653, %v4682
        %v4692 = vmul.f32 %v4654, %v4682
        %v4693 = vmul.f32 %v4655, %v4682
        %v4694 = vmul.f32 %v4656, %v4682
        %v4695 = vmul.f32 %v4657, %v4682
        %v4696 = vmul.f32 %v4658, %v4682
        %v4697 = vmul.f32 %v4659, %v4682
        %v4698 = vmul.f32 %v4660, %v4682
        %v4699 = vmul.f32 %v4661, %v4682
        %v4700 = vmul.f32 %v4662, %v4682
        %v4701 = vmul.f32 %v4663, %v4682
        %v4702 = vmul.f32 %v4664, %v4682
        %v4703 = vmul.f32 %v4665, %v4682
        %v4704 = vmul.f32 %v4666, %v4682
        %v4705 = vmul.f32 %v4667, %v4682
        %v4706 = vmul.f32 %v4668, %v4682
        %v4707 = vmul.f32 %v4669, %v4682
        %v4708 = vmul.f32 %v4670, %v4682
        %v4709 = vmul.f32 %v4671, %v4682
        %v4710 = vmul.f32 %v4672, %v4682
        %v4711 = vmul.f32 %v4673, %v4682
        %v4712 = vmul.f32 %v4674, %v4682
        %v4713 = vmul.f32 %v4675, %v4682
        %v4714 = vmul.f32 %v4676, %v4682
        %v4715 = vmul.f32 %v4677, %v4682
        %v4717 = vlaneseq
        %v4718 = vshrl.u32 %v4717, 7
        %v4719 = vsub.s32 0, %v4718
        %v4720 = vrot.slane %v4325, %v4719
        %v4722 = vadd.f32 %v4684, %v4720
        %v4723 = vadd.f32 %v4685, %v4720
        %v4724 = vadd.f32 %v4686, %v4720
        %v4725 = vadd.f32 %v4687, %v4720
        %v4726 = vadd.f32 %v4688, %v4720
        %v4727 = vadd.f32 %v4689, %v4720
        %v4728 = vadd.f32 %v4690, %v4720
        %v4729 = vadd.f32 %v4691, %v4720
        %v4730 = vadd.f32 %v4692, %v4720
        %v4731 = vadd.f32 %v4693, %v4720
        %v4732 = vadd.f32 %v4694, %v4720
        %v4733 = vadd.f32 %v4695, %v4720
        %v4734 = vadd.f32 %v4696, %v4720
        %v4735 = vadd.f32 %v4697, %v4720
        %v4736 = vadd.f32 %v4698, %v4720
        %v4737 = vadd.f32 %v4699, %v4720
        %v4738 = vadd.f32 %v4700, %v4720
        %v4739 = vadd.f32 %v4701, %v4720
        %v4740 = vadd.f32 %v4702, %v4720
        %v4741 = vadd.f32 %v4703, %v4720
        %v4742 = vadd.f32 %v4704, %v4720
        %v4743 = vadd.f32 %v4705, %v4720
        %v4744 = vadd.f32 %v4706, %v4720
        %v4745 = vadd.f32 %v4707, %v4720
        %v4746 = vadd.f32 %v4708, %v4720
        %v4747 = vadd.f32 %v4709, %v4720
        %v4748 = vadd.f32 %v4710, %v4720
        %v4749 = vadd.f32 %v4711, %v4720
        %v4750 = vadd.f32 %v4712, %v4720
        %v4751 = vadd.f32 %v4713, %v4720
        %v4752 = vadd.f32 %v4714, %v4720
        %v4753 = vadd.f32 %v4715, %v4720
        %v4754 = vpack.c.bf16 %v4723, %v4722
        %v4755 = vpack.c.bf16 %v4725, %v4724
        %v4756 = vpack.c.bf16 %v4727, %v4726
        %v4757 = vpack.c.bf16 %v4729, %v4728
        %v4758 = vpack.c.bf16 %v4731, %v4730
        %v4759 = vpack.c.bf16 %v4733, %v4732
        %v4760 = vpack.c.bf16 %v4735, %v4734
        %v4761 = vpack.c.bf16 %v4737, %v4736
        %v4762 = vpack.c.bf16 %v4739, %v4738
        %v4763 = vpack.c.bf16 %v4741, %v4740
        %v4764 = vpack.c.bf16 %v4743, %v4742
        %v4765 = vpack.c.bf16 %v4745, %v4744
        %v4766 = vpack.c.bf16 %v4747, %v4746
        %v4767 = vpack.c.bf16 %v4749, %v4748
        %v4768 = vpack.c.bf16 %v4751, %v4750
        %v4769 = vpack.c.bf16 %v4753, %v4752
        %v4786 = vunpack.c.l.b16 %v4754
        %v4787 = vunpack.c.h.b16 %v4754
        %v4788 = vunpack.c.l.b16 %v4755
        %v4789 = vunpack.c.h.b16 %v4755
        %v4790 = vunpack.c.l.b16 %v4756
        %v4791 = vunpack.c.h.b16 %v4756
        %v4792 = vunpack.c.l.b16 %v4757
        %v4793 = vunpack.c.h.b16 %v4757
        %v4794 = vunpack.c.l.b16 %v4758
        %v4795 = vunpack.c.h.b16 %v4758
        %v4796 = vunpack.c.l.b16 %v4759
        %v4797 = vunpack.c.h.b16 %v4759
        %v4798 = vunpack.c.l.b16 %v4760
        %v4799 = vunpack.c.h.b16 %v4760
        %v4800 = vunpack.c.l.b16 %v4761
        %v4801 = vunpack.c.h.b16 %v4761
        %v4802 = vunpack.c.l.b16 %v4762
        %v4803 = vunpack.c.h.b16 %v4762
        %v4804 = vunpack.c.l.b16 %v4763
        %v4805 = vunpack.c.h.b16 %v4763
        %v4806 = vunpack.c.l.b16 %v4764
        %v4807 = vunpack.c.h.b16 %v4764
        %v4808 = vunpack.c.l.b16 %v4765
        %v4809 = vunpack.c.h.b16 %v4765
        %v4810 = vunpack.c.l.b16 %v4766
        %v4811 = vunpack.c.h.b16 %v4766
        %v4812 = vunpack.c.l.b16 %v4767
        %v4813 = vunpack.c.h.b16 %v4767
        %v4814 = vunpack.c.l.b16 %v4768
        %v4815 = vunpack.c.h.b16 %v4768
        %v4816 = vunpack.c.l.b16 %v4769
        %v4817 = vunpack.c.h.b16 %v4769
        %v4818 = vpack.c.b16 %v4786, %v4786
        %v4819 = vpack.c.b16 %v4787, %v4787
        %v4820 = vpack.c.b16 %v4788, %v4788
        %v4821 = vpack.c.b16 %v4789, %v4789
        %v4822 = vpack.c.b16 %v4790, %v4790
        %v4823 = vpack.c.b16 %v4791, %v4791
        %v4824 = vpack.c.b16 %v4792, %v4792
        %v4825 = vpack.c.b16 %v4793, %v4793
        %v4826 = vpack.c.b16 %v4794, %v4794
        %v4827 = vpack.c.b16 %v4795, %v4795
        %v4828 = vpack.c.b16 %v4796, %v4796
        %v4829 = vpack.c.b16 %v4797, %v4797
        %v4830 = vpack.c.b16 %v4798, %v4798
        %v4831 = vpack.c.b16 %v4799, %v4799
        %v4832 = vpack.c.b16 %v4800, %v4800
        %v4833 = vpack.c.b16 %v4801, %v4801
        %v4834 = vpack.c.b16 %v4802, %v4802
        %v4835 = vpack.c.b16 %v4803, %v4803
        %v4836 = vpack.c.b16 %v4804, %v4804
        %v4837 = vpack.c.b16 %v4805, %v4805
        %v4838 = vpack.c.b16 %v4806, %v4806
        %v4839 = vpack.c.b16 %v4807, %v4807
        %v4840 = vpack.c.b16 %v4808, %v4808
        %v4841 = vpack.c.b16 %v4809, %v4809
        %v4842 = vpack.c.b16 %v4810, %v4810
        %v4843 = vpack.c.b16 %v4811, %v4811
        %v4844 = vpack.c.b16 %v4812, %v4812
        %v4845 = vpack.c.b16 %v4813, %v4813
        %v4846 = vpack.c.b16 %v4814, %v4814
        %v4847 = vpack.c.b16 %v4815, %v4815
        %v4848 = vpack.c.b16 %v4816, %v4816
        %v4849 = vpack.c.b16 %v4817, %v4817
        %4882 = vst [vmem:[%s623] sm:$0xf] %v4818
        %4883 = vst [vmem:[%s623 + $0x4] sm:$0xf] %v4819
        %4884 = vst [vmem:[%s623 + $0x8] sm:$0xf] %v4820
        %4885 = vst [vmem:[%s623 + $0xc] sm:$0xf] %v4821
        %4886 = vst [vmem:[%s623 + $0x10] sm:$0xf] %v4822
        %4887 = vst [vmem:[%s623 + $0x14] sm:$0xf] %v4823
        %4888 = vst [vmem:[%s623 + $0x18] sm:$0xf] %v4824
        %4889 = vst [vmem:[%s623 + $0x1c] sm:$0xf] %v4825
        %4890 = vst [vmem:[%s623 + $0x20] sm:$0xf] %v4826
        %4891 = vst [vmem:[%s623 + $0x24] sm:$0xf] %v4827
        %4892 = vst [vmem:[%s623 + $0x28] sm:$0xf] %v4828
        %4893 = vst [vmem:[%s623 + $0x2c] sm:$0xf] %v4829
        %4894 = vst [vmem:[%s623 + $0x30] sm:$0xf] %v4830
        %4895 = vst [vmem:[%s623 + $0x34] sm:$0xf] %v4831
        %4896 = vst [vmem:[%s623 + $0x38] sm:$0xf] %v4832
        %4897 = vst [vmem:[%s623 + $0x3c] sm:$0xf] %v4833
        %4898 = vst [vmem:[%s623 + $0x40] sm:$0xf] %v4834
        %4899 = vst [vmem:[%s623 + $0x44] sm:$0xf] %v4835
        %4900 = vst [vmem:[%s623 + $0x48] sm:$0xf] %v4836
        %4901 = vst [vmem:[%s623 + $0x4c] sm:$0xf] %v4837
        %4902 = vst [vmem:[%s623 + $0x50] sm:$0xf] %v4838
        %4903 = vst [vmem:[%s623 + $0x54] sm:$0xf] %v4839
        %4904 = vst [vmem:[%s623 + $0x58] sm:$0xf] %v4840
        %4905 = vst [vmem:[%s623 + $0x5c] sm:$0xf] %v4841
        %4906 = vst [vmem:[%s623 + $0x60] sm:$0xf] %v4842
        %4907 = vst [vmem:[%s623 + $0x64] sm:$0xf] %v4843
        %4908 = vst [vmem:[%s623 + $0x68] sm:$0xf] %v4844
        %4909 = vst [vmem:[%s623 + $0x6c] sm:$0xf] %v4845
        %4910 = vst [vmem:[%s623 + $0x70] sm:$0xf] %v4846
        %4911 = vst [vmem:[%s623 + $0x74] sm:$0xf] %v4847
        %4912 = vst [vmem:[%s623 + $0x78] sm:$0xf] %v4848
        %4913 = vst [vmem:[%s623 + $0x7c] sm:$0xf] %v4849
        %s4914 = sand.u32 %s353, 1
        %s4915 = scalar_lea.sflag [#allocation4], %s4914
        %s4916 = sand.u32 %s353, 1
        %s4917 = smul.addr %s4916, 128
        %s4918 = scalar_lea.vmem [#allocation14], %s4917
        // Predicated region
        $region105: #{tpu_custom_call.1} parent=75 // pred_check
          %p4919 = pneg %p363
        $region106: #{tpu_custom_call.1} parent=75 // pred_check_branch
          %4921 = sbr.rel (%p4919) target = $region108
        $region107: #{tpu_custom_call.1} parent=75 // pred_region
          %s4922 = smul.u32 2, %s36
          %s4924 = ssub.s32 2048, 2048
          %4925 = vsyncadd %s4915, %s4924
          %s4926 = smul.addr %s4922, 16
          %s4927 = smul.addr %s4926, 64
          %s4928 = scalar_lea.hbm %s14, %s4927
          %s4929 = sshll.u32 %s4918, 4
          %s4930 = int_to_ptr.vmem [resolvable:$true] %s4929
          %4935 = dma.vmem_to_hbm [thread:$0]  %s4930, 2048, %s4928, %s4915, 64, 64, 4
        $region108: #{tpu_custom_call.1} parent=75 // pred_fallthru
          _
      $region76: #{tpu_custom_call.1} parent=5 // pred_fallthru
        _
      %p4936 = scmp.le.s32.totalorder 2, %s31
      // Predicated region
      $region109: #{tpu_custom_call.1} parent=5 // pred_check
        %p4937 = pneg %p4936
      $region110: #{tpu_custom_call.1} parent=5 // pred_check_branch
        %4939 = sbr.rel (%p4937) target = $region112
      $region111: #{tpu_custom_call.1} parent=5 // pred_region
        %s4940 = ssub.s32 %s31, 2
        // Predicated region
        $region113: #{tpu_custom_call.1} parent=111 // pred_check
          %p4941 = pneg %p369
        $region114: #{tpu_custom_call.1} parent=111 // pred_check_branch
          %4943 = sbr.rel (%p4941) target = $region116
        $region115: #{tpu_custom_call.1} parent=111 // pred_region
          %s4944 = sand.u32 %s354, 1
          %s4945 = scalar_lea.sflag [#allocation4], %s4944
          %s4946 = sand.u32 %s354, 1
          %s4947 = smul.addr %s4946, 128
          %s4948 = scalar_lea.vmem [#allocation14], %s4947
          %4949 = dma.done %s4945, 2048
        $region116: #{tpu_custom_call.1} parent=111 // pred_fallthru
          _
      $region112: #{tpu_custom_call.1} parent=5 // pred_fallthru
        _
    $region6: #{tpu_custom_call.1} parent=1 // loop_footer
      %s35 = sadd.s32 1, %s31
    $region7: #{tpu_custom_call.1} parent=1 // loop_footer_branch
      %30 = sbr.rel target = $region3
    $region8: #{tpu_custom_call.1} parent=1 // loop_exit
      _
    %4950 = vsyncpa [#allocation3], 1
    %s4951 = scalar_lea.sflag [#allocation3], 1
    %4952 = vsyncpa %s4951, 1
    %4953 = vsyncpa [#allocation6], 1
    %s4954 = scalar_lea.sflag [#allocation6], 1
    %4955 = vsyncpa %s4954, 1
    %4956 = vsyncpa [#allocation9], 1
    %4957 = vsyncpa [#allocation12], 1
    %4958 = vsyncpa [#allocation4], 1
    %s4959 = scalar_lea.sflag [#allocation4], 1
    %4960 = vsyncpa %s4959, 1

</llo_original>
